<compile_context>
chip_gen: v6e
topology: v6e:2x2x1
jax: 0.10.0
libtpu: 0.0.40
codegen_flags: <defaults>
</compile_context>

<pallas_src>
import functools

import jax
import jax.numpy as jnp
from jax.experimental import pallas as pl
from jax.experimental.pallas import tpu as pltpu


# ----------------------------------------------------------------------------
# Kernel: full forward pass (token embedding -> transformer blocks -> fc1 ->
# GRUCell -> fc2 heads).  All operands for one batch tile live in VMEM.
# ----------------------------------------------------------------------------
def agent_kernel(
    # activations
    x_ref, mask_ref, h_in_ref,
    # attention constants
    head_mask_ref, gsum_ref,
    # token embedding
    w_emb_ref, b_emb_ref,
    # transformer blocks (stacked over a leading n_blocks axis)
    wqkv_ref, bqkv_ref, wo_ref, bo_ref,
    ln1g_ref, ln1b_ref, ln2g_ref, ln2b_ref,
    wf1_ref, bf1_ref, wf2_ref, bf2_ref,
    # fc1
    wfc1_ref, bfc1_ref,
    # GRU cell (PyTorch gate order: r, z, n)
    w_ih_ref, b_ih_ref, w_hh_ref, b_hh_ref,
    # fc2
    wfc2_ref, bfc2_ref,
    # outputs
    q_ref, h_out_ref,
    *,
    b, t, emb, n_heads, n_blocks, hidden,
    n_fixed, n_enemies, n_agents,
    action_enemy_wise, action_ally_wise,
):
    f32 = jnp.float32
    bt = b * t
    ht = n_heads * t

    # ---- token embedding + ReLU --------------------------------------------
    x = x_ref[...].reshape(bt, -1)
    cur = jnp.maximum(
        jnp.dot(x, w_emb_ref[...], preferred_element_type=f32) + b_emb_ref[...],
        0.0,
    )  # (bt, emb)

    # ---- additive key-padding bias, tiled once over heads (lane concat) -----
    # mask[b, k] == 1.0 means token k of sample b is a valid key.
    bias_row = jnp.where(mask_ref[...] > 0.0, 0.0, -1e30)              # (b, t)
    attn_bias = jnp.concatenate([bias_row] * n_heads, axis=-1)[:, None, :]  # (b,1,ht)

    head_mask = head_mask_ref[...]   # (n_heads, emb): 1 where feature e belongs to head h
    gsum = gsum_ref[...]             # (ht, ht): block-diagonal ones (per-head key groups)

    def layer_norm(y, gamma, beta):
        mu = jnp.mean(y, axis=-1, keepdims=True)
        var = jnp.mean((y - mu) ** 2, axis=-1, keepdims=True)
        return (y - mu) * jax.lax.rsqrt(var + 1e-5) * gamma + beta

    # ---- transformer encoder blocks (statically unrolled) ------------------
    for blk in range(n_blocks):
        # Fused QKV projection; 1/sqrt(dh) is pre-folded into the Q columns.
        qkv = (jnp.dot(cur, wqkv_ref[blk], preferred_element_type=f32)
               + bqkv_ref[blk])                                       # (bt, 3*emb)
        q3 = qkv[:, 0 * emb:1 * emb].reshape(b, t, emb)
        k3 = qkv[:, 1 * emb:2 * emb].reshape(b, t, emb)
        v3 = qkv[:, 2 * emb:3 * emb].reshape(b, t, emb)

        # Head-batched attention with zero transposes / head loops: replicate
        # K,V once per head along the key axis and zero everything outside
        # that head's dh-wide feature slice.  The full-emb contraction then
        # only picks up that head's features -> one einsum = all heads.
        k_bd = (k3[:, None, :, :] * head_mask[None, :, None, :]).reshape(b, ht, emb)
        v_bd = (v3[:, None, :, :] * head_mask[None, :, None, :]).reshape(b, ht, emb)

        s = jnp.einsum('bqe,bke->bqk', q3, k_bd,
                       preferred_element_type=f32) + attn_bias        # (b, t, ht)

        # One softmax for all heads.  Shift by the per-(b,q) max over all
        # heads (softmax is shift-invariant within each key group, so this is
        # exact); the per-head-group denominator comes from one matmul with
        # the block-diagonal ones matrix and is broadcast back over the group.
        s = s - jnp.max(s, axis=-1, keepdims=True)
        p = jnp.exp(s).reshape(bt, ht)
        denom = jnp.dot(p, gsum, preferred_element_type=f32)          # (bt, ht)
        p = (p * pl.reciprocal(jnp.maximum(denom, 1e-30), approx=True)
             ).reshape(b, t, ht)

        # Masked-V contraction: per-head context lands directly in its own
        # lane slice of (b, t, emb) -> heads are already concatenated.
        ctx = jnp.einsum('bqk,bke->bqe', p, v_bd,
                         preferred_element_type=f32).reshape(bt, emb)
        attn = jnp.dot(ctx, wo_ref[blk], preferred_element_type=f32) + bo_ref[blk]
        cur = layer_norm(attn + cur, ln1g_ref[blk], ln1b_ref[blk])

        ff = jnp.maximum(
            jnp.dot(cur, wf1_ref[blk], preferred_element_type=f32) + bf1_ref[blk],
            0.0,
        )
        ff = jnp.dot(ff, wf2_ref[blk], preferred_element_type=f32) + bf2_ref[blk]
        cur = layer_norm(ff + cur, ln2g_ref[blk], ln2b_ref[blk])

    # ---- fc1 + ReLU ----------------------------------------------------------
    xg = jnp.maximum(
        jnp.dot(cur, wfc1_ref[...], preferred_element_type=f32) + bfc1_ref[...],
        0.0,
    )  # (bt, hidden)

    # ---- GRUCell (PyTorch semantics, gate order r, z, n) ---------------------
    h_prev = h_in_ref[...].reshape(bt, hidden)
    gi = jnp.dot(xg, w_ih_ref[...], preferred_element_type=f32) + b_ih_ref[...]
    gh = jnp.dot(h_prev, w_hh_ref[...], preferred_element_type=f32) + b_hh_ref[...]
    r = jax.nn.sigmoid(gi[:, 0 * hidden:1 * hidden] + gh[:, 0 * hidden:1 * hidden])
    z = jax.nn.sigmoid(gi[:, 1 * hidden:2 * hidden] + gh[:, 1 * hidden:2 * hidden])
    n = jnp.tanh(gi[:, 2 * hidden:3 * hidden] + r * gh[:, 2 * hidden:3 * hidden])
    h_new = (1.0 - z) * n + z * h_prev                                # (bt, hidden)

    # ---- lane-dense hidden-state output: (b, t, H) flattened to one wide
    #      (b, t*H) slab via a single lane concat, stored unmasked ------------
    h3 = h_new.reshape(b, t, hidden)
    h_out_ref[...] = jnp.concatenate([h3[:, ti, :] for ti in range(t)], axis=-1)

    # ---- fc2 action heads ----------------------------------------------------
    if action_enemy_wise or action_ally_wise:
        # all tokens needed -> ONE matmul, then slice.
        q_all = (jnp.dot(h_new, wfc2_ref[...], preferred_element_type=f32)
                 + bfc2_ref[...]).reshape(b, t, n_fixed)
        q_self = q_all[:, 0, :]
    else:
        q_all = None
        q_self = (jnp.dot(h3[:, 0, :], wfc2_ref[...], preferred_element_type=f32)
                  + bfc2_ref[...])

    # q_ref is a 128-lane padded slab: zero it once, then write each action
    # group into its static column slice (no lane concat of narrow fragments).
    q_ref[...] = jnp.zeros_like(q_ref)
    q_ref[:, 0:n_fixed] = q_self
    col = n_fixed
    if action_enemy_wise:
        # PyTorch reference: fc2(h[:, 1:n_enemies+1]).mean(2)  (mean over logits)
        q_ref[:, col:col + n_enemies] = jnp.mean(q_all[:, 1:1 + n_enemies, :], axis=2)
        col += n_enemies
    if action_ally_wise:
        q_ref[:, col:col + (n_agents - 1)] = jnp.mean(
            q_all[:, t - (n_agents - 1):, :], axis=2)


# ----------------------------------------------------------------------------
# One-time parameter preparation (call once, NOT per forward step).
# ----------------------------------------------------------------------------
def prepare_params(params, cfg):
    E = cfg["emb_dim"]
    n_heads = cfg["n_heads"]
    dh = E // n_heads
    t = 1 + cfg["n_enemies"] + (cfg["n_agents"] - 1)
    scale = 1.0 / (dh ** 0.5)

    p = dict(params)
    # Fuse Q|K|V projection weights; fold the attention scale into the Q part.
    p["wqkv"] = jnp.concatenate(
        [params["wq"] * scale, params["wk"], params["wv"]], axis=-1)   # (NB,E,3E)
    p["bqkv"] = jnp.concatenate(
        [params["bq"] * scale, params["bk"], params["bv"]], axis=-1)   # (NB,1,3E)
    # head_mask[h, e] = 1 iff feature column e belongs to head h.
    feat_head = jnp.arange(E, dtype=jnp.int32) // dh
    p["head_mask"] = (jnp.arange(n_heads, dtype=jnp.int32)[:, None]
                      == feat_head[None, :]).astype(jnp.float32)       # (n_heads, E)
    # Block-diagonal ones: right-multiplying the (bt, n_heads*t) exponentials
    # by it gives each head-group's softmax denominator broadcast over lanes.
    grp = jnp.arange(n_heads * t, dtype=jnp.int32) // t
    p["gsum"] = (grp[:, None] == grp[None, :]).astype(jnp.float32)     # (ht, ht)
    return p


def _tensorcores_per_chip():
    # v7x has 2 TensorCores per chip; v5e/v6e have 1.  A multi-tile "parallel"
    # batch grid only pays off when there is real hardware to shard across.
    try:
        kind = jax.devices()[0].device_kind.lower()
        if "v7" in kind:
            return 2
    except Exception:
        pass
    return 1


# ----------------------------------------------------------------------------
# Wrapper
# ----------------------------------------------------------------------------
def token_wise_trans_agent_forward(params, x, mask, hidden_state, cfg):
    b, t, _ = x.shape
    E = cfg["emb_dim"]
    H = cfg["rnn_hidden_dim"]
    assert params["gsum"].shape[0] == cfg["n_heads"] * t, "token count mismatch"

    n_q = cfg["n_fixed_actions"]
    if cfg["action_enemy_wise"]:
        n_q += cfg["n_enemies"]
    if cfg["action_ally_wise"]:
        n_q += cfg["n_agents"] - 1
    q_pad = ((n_q + 127) // 128) * 128            # lane-dense padded q slab

    weights = [
        params["head_mask"], params["gsum"],
        params["w_emb"], params["b_emb"],
        params["wqkv"], params["bqkv"], params["wo"], params["bo"],
        params["ln1g"], params["ln1b"], params["ln2g"], params["ln2b"],
        params["wf1"], params["bf1"], params["wf2"], params["bf2"],
        params["wfc1"], params["bfc1"],
        params["w_ih"], params["b_ih"], params["w_hh"], params["b_hh"],
        params["wfc2"], params["bfc2"],
    ]

    # ---- batch tiling: split only when 2 TensorCores exist (v7x) and the
    # per-tile batch stays 8-sublane aligned and big enough to be worth it. ---
    n_tc = _tensorcores_per_chip()
    b_tile = b
    if n_tc > 1 and b % n_tc == 0:
        cand = b // n_tc
        if cand % 8 == 0 and cand * t >= 64:
            b_tile = cand
    n_tiles = b // b_tile
    grid = (n_tiles,)

    def act_spec(shape):
        nd = len(shape)
        return pl.BlockSpec((b_tile,) + tuple(shape[1:]),
                            lambda i, _n=nd: (i,) + (0,) * (_n - 1))

    def w_spec(shape):
        nd = len(shape)
        idx = lambda i, _n=nd: (0,) * _n
        if n_tiles > 1:
            # Grid-invariant weights: single-buffer them so a multi-tile grid
            # does not double their VMEM footprint.
            return pl.BlockSpec(tuple(shape), idx, pipeline_mode=pl.Buffered(1))
        return pl.BlockSpec(tuple(shape), idx)

    in_specs = [act_spec(x.shape), act_spec(mask.shape), act_spec(hidden_state.shape)]
    in_specs += [w_spec(w.shape) for w in weights]

    out_specs = (
        pl.BlockSpec((b_tile, q_pad), lambda i: (i, 0)),
        pl.BlockSpec((b_tile, t * H), lambda i: (i, 0)),
    )

    # ---- explicit VMEM budget (v5e's default scoped VMEM is only 16 MiB) ----
    f32b = 4
    w_bytes = sum(int(w.size) * f32b for w in weights)
    act_bytes = (int(x.size) + int(mask.size) + int(hidden_state.size)) // b * b_tile * f32b
    out_bytes = (q_pad + t * H) * b_tile * f32b
    vmem_limit = int(min(64 << 20, max(32 << 20, 4 * (w_bytes + act_bytes + out_bytes))))

    kernel = functools.partial(
        agent_kernel,
        b=b_tile, t=t,
        emb=E, n_heads=cfg["n_heads"], n_blocks=cfg["n_blocks"], hidden=H,
        n_fixed=cfg["n_fixed_actions"], n_enemies=cfg["n_enemies"],
        n_agents=cfg["n_agents"],
        action_enemy_wise=cfg["action_enemy_wise"],
        action_ally_wise=cfg["action_ally_wise"],
    )

    q_slab, h_flat = pl.pallas_call(
        kernel,
        grid=grid,
        out_shape=(
            jax.ShapeDtypeStruct((b, q_pad), jnp.float32),
            jax.ShapeDtypeStruct((b, t * H), jnp.float32),
        ),
        in_specs=in_specs,
        out_specs=out_specs,
        compiler_params=pltpu.CompilerParams(
            dimension_semantics=("parallel",),
            vmem_limit_bytes=vmem_limit),
    )(x, mask, hidden_state, *weights)

    # Row-major views back to the module's shapes (free outside the kernel).
    return q_slab[:, :n_q], h_flat.reshape(b, t, H)


# ----------------------------------------------------------------------------
# Deterministic parameter construction (synthetic weights — no checkpoint load)
# ----------------------------------------------------------------------------
def make_params(key, in_dim, cfg):
    E = cfg["emb_dim"]
    H = cfg["rnn_hidden_dim"]
    NB = cfg["n_blocks"]
    NF = cfg["n_fixed_actions"]
    FF = 4 * E

    keys = iter(jax.random.split(key, 64))

    def w(shape, scale=0.1):
        return (scale * jax.random.normal(next(keys), shape)).astype(jnp.float32)

    return dict(
        w_emb=w((in_dim, E)), b_emb=w((1, E)),
        wq=w((NB, E, E)), bq=w((NB, 1, E)),
        wk=w((NB, E, E)), bk=w((NB, 1, E)),
        wv=w((NB, E, E)), bv=w((NB, 1, E)),
        wo=w((NB, E, E)), bo=w((NB, 1, E)),
        ln1g=jnp.ones((NB, 1, E), jnp.float32), ln1b=jnp.zeros((NB, 1, E), jnp.float32),
        ln2g=jnp.ones((NB, 1, E), jnp.float32), ln2b=jnp.zeros((NB, 1, E), jnp.float32),
        wf1=w((NB, E, FF)), bf1=w((NB, 1, FF)),
        wf2=w((NB, FF, E)), bf2=w((NB, 1, E)),
        wfc1=w((E, H)), bfc1=w((1, H)),
        w_ih=w((H, 3 * H)), b_ih=w((1, 3 * H)),
        w_hh=w((H, 3 * H)), b_hh=w((1, 3 * H)),
        wfc2=w((H, NF)), bfc2=w((1, NF)),
    )


if __name__ == "__main__":
    cfg = dict(
        emb_dim=32,
        n_heads=4,
        n_blocks=2,
        rnn_hidden_dim=32,
        n_fixed_actions=6,
        n_enemies=3,
        n_agents=3,
        action_enemy_wise=True,
        action_ally_wise=True,
    )
    in_dim = 10
    b = 2
    t = 1 + cfg["n_enemies"] + (cfg["n_agents"] - 1)  # self + enemies + allies = 6

    key = jax.random.PRNGKey(0)
    kp, kx = jax.random.split(key)

    params = prepare_params(make_params(kp, in_dim, cfg), cfg)  # one-time prep

    x = jax.random.normal(kx, (b, t, in_dim), dtype=jnp.float32)
    mask = jnp.ones((b, t), dtype=jnp.float32).at[1, t - 1].set(0.0)  # pad last token of sample 1
    hidden_state = jnp.zeros((b, t, cfg["rnn_hidden_dim"]), dtype=jnp.float32)  # init_hidden()

    q, h = token_wise_trans_agent_forward(params, x, mask, hidden_state, cfg)
    q = jax.block_until_ready(q)
    h = jax.block_until_ready(h)

    expected_q_dim = cfg["n_fixed_actions"] + cfg["n_enemies"] + (cfg["n_agents"] - 1)
    assert q.shape == (b, expected_q_dim), q.shape
    assert h.shape == (b, t, cfg["rnn_hidden_dim"]), h.shape
    assert jnp.all(jnp.isfinite(q)) and jnp.all(jnp.isfinite(h))
    print("KERNEL_OK")
</pallas_src>

<mosaic_0001>
module attributes {stable_mosaic.version = 11 : i64} {
  func.func @agent_kernel(%arg0: i32, %arg1: memref<2x6x10xf32, #tpu.memory_space<vmem>>, %arg2: memref<2x6xf32, #tpu.memory_space<vmem>>, %arg3: memref<2x6x32xf32, #tpu.memory_space<vmem>>, %arg4: memref<4x32xf32, #tpu.memory_space<vmem>>, %arg5: memref<24x24xf32, #tpu.memory_space<vmem>>, %arg6: memref<10x32xf32, #tpu.memory_space<vmem>>, %arg7: memref<1x32xf32, #tpu.memory_space<vmem>>, %arg8: memref<2x32x96xf32, #tpu.memory_space<vmem>>, %arg9: memref<2x1x96xf32, #tpu.memory_space<vmem>>, %arg10: memref<2x32x32xf32, #tpu.memory_space<vmem>>, %arg11: memref<2x1x32xf32, #tpu.memory_space<vmem>>, %arg12: memref<2x1x32xf32, #tpu.memory_space<vmem>>, %arg13: memref<2x1x32xf32, #tpu.memory_space<vmem>>, %arg14: memref<2x1x32xf32, #tpu.memory_space<vmem>>, %arg15: memref<2x1x32xf32, #tpu.memory_space<vmem>>, %arg16: memref<2x32x128xf32, #tpu.memory_space<vmem>>, %arg17: memref<2x1x128xf32, #tpu.memory_space<vmem>>, %arg18: memref<2x128x32xf32, #tpu.memory_space<vmem>>, %arg19: memref<2x1x32xf32, #tpu.memory_space<vmem>>, %arg20: memref<32x32xf32, #tpu.memory_space<vmem>>, %arg21: memref<1x32xf32, #tpu.memory_space<vmem>>, %arg22: memref<32x96xf32, #tpu.memory_space<vmem>>, %arg23: memref<1x96xf32, #tpu.memory_space<vmem>>, %arg24: memref<32x96xf32, #tpu.memory_space<vmem>>, %arg25: memref<1x96xf32, #tpu.memory_space<vmem>>, %arg26: memref<32x6xf32, #tpu.memory_space<vmem>>, %arg27: memref<1x6xf32, #tpu.memory_space<vmem>>, %arg28: memref<2x128xf32, #tpu.memory_space<vmem>>, %arg29: memref<2x192xf32, #tpu.memory_space<vmem>>) attributes {dimension_semantics = [#tpu.dimension_semantics<parallel>], iteration_bounds = array<i64: 1>, scalar_prefetch = 0 : i64, scratch_operands = 0 : i64, tpu.core_type = #tpu.core_type<tc>, window_params = [{transform_indices = @transform_0, window_bounds = array<i64: 2, 6, 10>}, {transform_indices = @transform_1, window_bounds = array<i64: 2, 6>}, {transform_indices = @transform_2, window_bounds = array<i64: 2, 6, 32>}, {pipeline_mode = #tpu.pipeline_mode<synchronous>, transform_indices = @transform_3, window_bounds = array<i64: 4, 32>}, {pipeline_mode = #tpu.pipeline_mode<synchronous>, transform_indices = @transform_4, window_bounds = array<i64: 24, 24>}, {pipeline_mode = #tpu.pipeline_mode<synchronous>, transform_indices = @transform_5, window_bounds = array<i64: 10, 32>}, {pipeline_mode = #tpu.pipeline_mode<synchronous>, transform_indices = @transform_6, window_bounds = array<i64: 1, 32>}, {pipeline_mode = #tpu.pipeline_mode<synchronous>, transform_indices = @transform_7, window_bounds = array<i64: 2, 32, 96>}, {pipeline_mode = #tpu.pipeline_mode<synchronous>, transform_indices = @transform_8, window_bounds = array<i64: 2, 1, 96>}, {pipeline_mode = #tpu.pipeline_mode<synchronous>, transform_indices = @transform_9, window_bounds = array<i64: 2, 32, 32>}, {pipeline_mode = #tpu.pipeline_mode<synchronous>, transform_indices = @transform_10, window_bounds = array<i64: 2, 1, 32>}, {pipeline_mode = #tpu.pipeline_mode<synchronous>, transform_indices = @transform_11, window_bounds = array<i64: 2, 1, 32>}, {pipeline_mode = #tpu.pipeline_mode<synchronous>, transform_indices = @transform_12, window_bounds = array<i64: 2, 1, 32>}, {pipeline_mode = #tpu.pipeline_mode<synchronous>, transform_indices = @transform_13, window_bounds = array<i64: 2, 1, 32>}, {pipeline_mode = #tpu.pipeline_mode<synchronous>, transform_indices = @transform_14, window_bounds = array<i64: 2, 1, 32>}, {pipeline_mode = #tpu.pipeline_mode<synchronous>, transform_indices = @transform_15, window_bounds = array<i64: 2, 32, 128>}, {pipeline_mode = #tpu.pipeline_mode<synchronous>, transform_indices = @transform_16, window_bounds = array<i64: 2, 1, 128>}, {pipeline_mode = #tpu.pipeline_mode<synchronous>, transform_indices = @transform_17, window_bounds = array<i64: 2, 128, 32>}, {pipeline_mode = #tpu.pipeline_mode<synchronous>, transform_indices = @transform_18, window_bounds = array<i64: 2, 1, 32>}, {pipeline_mode = #tpu.pipeline_mode<synchronous>, transform_indices = @transform_19, window_bounds = array<i64: 32, 32>}, {pipeline_mode = #tpu.pipeline_mode<synchronous>, transform_indices = @transform_20, window_bounds = array<i64: 1, 32>}, {pipeline_mode = #tpu.pipeline_mode<synchronous>, transform_indices = @transform_21, window_bounds = array<i64: 32, 96>}, {pipeline_mode = #tpu.pipeline_mode<synchronous>, transform_indices = @transform_22, window_bounds = array<i64: 1, 96>}, {pipeline_mode = #tpu.pipeline_mode<synchronous>, transform_indices = @transform_23, window_bounds = array<i64: 32, 96>}, {pipeline_mode = #tpu.pipeline_mode<synchronous>, transform_indices = @transform_24, window_bounds = array<i64: 1, 96>}, {pipeline_mode = #tpu.pipeline_mode<synchronous>, transform_indices = @transform_25, window_bounds = array<i64: 32, 6>}, {pipeline_mode = #tpu.pipeline_mode<synchronous>, transform_indices = @transform_26, window_bounds = array<i64: 1, 6>}, {transform_indices = @transform_27, window_bounds = array<i64: 2, 128>}, {transform_indices = @transform_28, window_bounds = array<i64: 2, 192>}]} {
    %c0 = arith.constant 0 : index
    %c0_0 = arith.constant 0 : index
    %c0_1 = arith.constant 0 : index
    %0 = vector.load %arg1[%c0, %c0_0, %c0_1] : memref<2x6x10xf32, #tpu.memory_space<vmem>>, vector<2x6x10xf32>
    %1 = vector.shape_cast %0 : vector<2x6x10xf32> to vector<12x10xf32>
    %c0_2 = arith.constant 0 : index
    %c0_3 = arith.constant 0 : index
    %2 = vector.load %arg6[%c0_2, %c0_3] : memref<10x32xf32, #tpu.memory_space<vmem>>, vector<10x32xf32>
    %cst = arith.constant dense<0.000000e+00> : vector<12x32xf32>
    %3 = tpu.matmul %1, %2, %cst {dimension_numbers = #tpu.dot_dimension_numbers<[1], [0], [0], [1], [0, 0, 1, 1], [], []>} : vector<12x10xf32>, vector<10x32xf32>, vector<12x32xf32> -> vector<12x32xf32>
    %c0_4 = arith.constant 0 : index
    %c0_5 = arith.constant 0 : index
    %4 = vector.load %arg7[%c0_4, %c0_5] : memref<1x32xf32, #tpu.memory_space<vmem>>, vector<1x32xf32>
    %5 = vector.broadcast %4 : vector<1x32xf32> to vector<12x32xf32>
    %6 = arith.addf %3, %5 : vector<12x32xf32>
    %cst_6 = arith.constant 0.000000e+00 : f32
    %7 = vector.broadcast %cst_6 : f32 to vector<12x32xf32>
    %8 = arith.maximumf %6, %7 : vector<12x32xf32>
    %c0_7 = arith.constant 0 : index
    %c0_8 = arith.constant 0 : index
    %9 = vector.load %arg2[%c0_7, %c0_8] : memref<2x6xf32, #tpu.memory_space<vmem>>, vector<2x6xf32>
    %cst_9 = arith.constant 0.000000e+00 : f32
    %10 = vector.broadcast %cst_9 : f32 to vector<2x6xf32>
    %11 = arith.cmpf ogt, %9, %10 : vector<2x6xf32>
    %cst_10 = arith.constant 0.000000e+00 : f32
    %cst_11 = arith.constant -1.000000e+30 : f32
    %12 = vector.broadcast %cst_10 : f32 to vector<2x6xf32>
    %13 = vector.broadcast %cst_11 : f32 to vector<2x6xf32>
    %14 = arith.select %11, %12, %13 : vector<2x6xi1>, vector<2x6xf32>
    %15 = tpu.concatenate %14, %14, %14, %14 in 1 : vector<2x6xf32>, vector<2x6xf32>, vector<2x6xf32>, vector<2x6xf32> -> vector<2x24xf32>
    %16 = vector.shape_cast %15 : vector<2x24xf32> to vector<2x1x24xf32>
    %c0_12 = arith.constant 0 : index
    %c0_13 = arith.constant 0 : index
    %17 = vector.load %arg4[%c0_12, %c0_13] : memref<4x32xf32, #tpu.memory_space<vmem>>, vector<4x32xf32>
    %c0_14 = arith.constant 0 : index
    %c0_15 = arith.constant 0 : index
    %18 = vector.load %arg5[%c0_14, %c0_15] : memref<24x24xf32, #tpu.memory_space<vmem>>, vector<24x24xf32>
    %c0_16 = arith.constant 0 : index
    %c0_17 = arith.constant 0 : index
    %c0_18 = arith.constant 0 : index
    %19 = vector.load %arg8[%c0_16, %c0_17, %c0_18] : memref<2x32x96xf32, #tpu.memory_space<vmem>>, vector<1x32x96xf32>
    %20 = vector.shape_cast %19 : vector<1x32x96xf32> to vector<32x96xf32>
    %cst_19 = arith.constant dense<0.000000e+00> : vector<12x96xf32>
    %21 = tpu.matmul %8, %20, %cst_19 {dimension_numbers = #tpu.dot_dimension_numbers<[1], [0], [0], [1], [0, 0, 1, 1], [], []>} : vector<12x32xf32>, vector<32x96xf32>, vector<12x96xf32> -> vector<12x96xf32>
    %c0_20 = arith.constant 0 : index
    %c0_21 = arith.constant 0 : index
    %c0_22 = arith.constant 0 : index
    %22 = vector.load %arg9[%c0_20, %c0_21, %c0_22] : memref<2x1x96xf32, #tpu.memory_space<vmem>>, vector<1x1x96xf32>
    %23 = vector.shape_cast %22 : vector<1x1x96xf32> to vector<1x96xf32>
    %24 = vector.broadcast %23 : vector<1x96xf32> to vector<12x96xf32>
    %25 = arith.addf %21, %24 : vector<12x96xf32>
    %26 = vector.extract_strided_slice %25 {offsets = [0, 0], sizes = [12, 32], strides = [1, 1]} : vector<12x96xf32> to vector<12x32xf32>
    %27 = vector.shape_cast %26 : vector<12x32xf32> to vector<2x6x32xf32>
    %28 = vector.extract_strided_slice %25 {offsets = [0, 32], sizes = [12, 32], strides = [1, 1]} : vector<12x96xf32> to vector<12x32xf32>
    %29 = vector.shape_cast %28 : vector<12x32xf32> to vector<2x6x32xf32>
    %30 = vector.extract_strided_slice %25 {offsets = [0, 64], sizes = [12, 32], strides = [1, 1]} : vector<12x96xf32> to vector<12x32xf32>
    %31 = vector.shape_cast %30 : vector<12x32xf32> to vector<2x6x32xf32>
    %32 = vector.shape_cast %29 : vector<2x6x32xf32> to vector<2x1x6x32xf32>
    %33 = vector.shape_cast %17 : vector<4x32xf32> to vector<1x4x1x32xf32>
    %34 = vector.broadcast %32 : vector<2x1x6x32xf32> to vector<2x4x6x32xf32>
    %35 = vector.broadcast %33 : vector<1x4x1x32xf32> to vector<2x4x6x32xf32>
    %36 = arith.mulf %34, %35 : vector<2x4x6x32xf32>
    %37 = vector.shape_cast %36 : vector<2x4x6x32xf32> to vector<2x24x32xf32>
    %38 = vector.shape_cast %31 : vector<2x6x32xf32> to vector<2x1x6x32xf32>
    %39 = vector.shape_cast %17 : vector<4x32xf32> to vector<1x4x1x32xf32>
    %40 = vector.broadcast %38 : vector<2x1x6x32xf32> to vector<2x4x6x32xf32>
    %41 = vector.broadcast %39 : vector<1x4x1x32xf32> to vector<2x4x6x32xf32>
    %42 = arith.mulf %40, %41 : vector<2x4x6x32xf32>
    %43 = vector.shape_cast %42 : vector<2x4x6x32xf32> to vector<2x24x32xf32>
    "tpu.trace_start"() <{level = 10 : i32, message = "bqe,bke->bqk"}> : () -> ()
    %cst_23 = arith.constant dense<0.000000e+00> : vector<2x6x24xf32>
    %44 = tpu.matmul %27, %37, %cst_23 {dimension_numbers = #tpu.dot_dimension_numbers<[2], [2], [1], [1], [0, 0, 0, 1, 1, 1], [0], [0]>} : vector<2x6x32xf32>, vector<2x24x32xf32>, vector<2x6x24xf32> -> vector<2x6x24xf32>
    "tpu.trace_stop"() : () -> ()
    %45 = vector.broadcast %16 : vector<2x1x24xf32> to vector<2x6x24xf32>
    %46 = arith.addf %44, %45 : vector<2x6x24xf32>
    %cst_24 = arith.constant dense<0xFF800000> : vector<2x6xf32>
    %47 = vector.multi_reduction <maximumf>, %46, %cst_24 [2] : vector<2x6x24xf32> to vector<2x6xf32>
    %48 = vector.shape_cast %47 : vector<2x6xf32> to vector<2x6x1xf32>
    %49 = vector.broadcast %48 : vector<2x6x1xf32> to vector<2x6x24xf32>
    %50 = arith.subf %46, %49 : vector<2x6x24xf32>
    %51 = math.exp %50 : vector<2x6x24xf32>
    %52 = vector.shape_cast %51 : vector<2x6x24xf32> to vector<12x24xf32>
    %cst_25 = arith.constant dense<0.000000e+00> : vector<12x24xf32>
    %53 = tpu.matmul %52, %18, %cst_25 {dimension_numbers = #tpu.dot_dimension_numbers<[1], [0], [0], [1], [0, 0, 1, 1], [], []>} : vector<12x24xf32>, vector<24x24xf32>, vector<12x24xf32> -> vector<12x24xf32>
    %cst_26 = arith.constant 1.000000e-30 : f32
    %54 = vector.broadcast %cst_26 : f32 to vector<12x24xf32>
    %55 = arith.maximumf %53, %54 : vector<12x24xf32>
    %56 = tpu.reciprocal %55 {approx = true} : vector<12x24xf32> -> vector<12x24xf32>
    %57 = arith.mulf %52, %56 : vector<12x24xf32>
    %58 = vector.shape_cast %57 : vector<12x24xf32> to vector<2x6x24xf32>
    "tpu.trace_start"() <{level = 10 : i32, message = "bqk,bke->bqe"}> : () -> ()
    %cst_27 = arith.constant dense<0.000000e+00> : vector<2x6x32xf32>
    %59 = tpu.matmul %58, %43, %cst_27 {dimension_numbers = #tpu.dot_dimension_numbers<[2], [1], [1], [2], [0, 0, 0, 1, 1, 2], [0], [0]>} : vector<2x6x24xf32>, vector<2x24x32xf32>, vector<2x6x32xf32> -> vector<2x6x32xf32>
    "tpu.trace_stop"() : () -> ()
    %60 = vector.shape_cast %59 : vector<2x6x32xf32> to vector<12x32xf32>
    %c0_28 = arith.constant 0 : index
    %c0_29 = arith.constant 0 : index
    %c0_30 = arith.constant 0 : index
    %61 = vector.load %arg10[%c0_28, %c0_29, %c0_30] : memref<2x32x32xf32, #tpu.memory_space<vmem>>, vector<1x32x32xf32>
    %62 = vector.shape_cast %61 : vector<1x32x32xf32> to vector<32x32xf32>
    %cst_31 = arith.constant dense<0.000000e+00> : vector<12x32xf32>
    %63 = tpu.matmul %60, %62, %cst_31 {dimension_numbers = #tpu.dot_dimension_numbers<[1], [0], [0], [1], [0, 0, 1, 1], [], []>} : vector<12x32xf32>, vector<32x32xf32>, vector<12x32xf32> -> vector<12x32xf32>
    %c0_32 = arith.constant 0 : index
    %c0_33 = arith.constant 0 : index
    %c0_34 = arith.constant 0 : index
    %64 = vector.load %arg11[%c0_32, %c0_33, %c0_34] : memref<2x1x32xf32, #tpu.memory_space<vmem>>, vector<1x1x32xf32>
    %65 = vector.shape_cast %64 : vector<1x1x32xf32> to vector<1x32xf32>
    %66 = vector.broadcast %65 : vector<1x32xf32> to vector<12x32xf32>
    %67 = arith.addf %63, %66 : vector<12x32xf32>
    %68 = arith.addf %67, %8 : vector<12x32xf32>
    %c0_35 = arith.constant 0 : index
    %c0_36 = arith.constant 0 : index
    %c0_37 = arith.constant 0 : index
    %69 = vector.load %arg12[%c0_35, %c0_36, %c0_37] : memref<2x1x32xf32, #tpu.memory_space<vmem>>, vector<1x1x32xf32>
    %70 = vector.shape_cast %69 : vector<1x1x32xf32> to vector<1x32xf32>
    %c0_38 = arith.constant 0 : index
    %c0_39 = arith.constant 0 : index
    %c0_40 = arith.constant 0 : index
    %71 = vector.load %arg13[%c0_38, %c0_39, %c0_40] : memref<2x1x32xf32, #tpu.memory_space<vmem>>, vector<1x1x32xf32>
    %72 = vector.shape_cast %71 : vector<1x1x32xf32> to vector<1x32xf32>
    %cst_41 = arith.constant dense<0.000000e+00> : vector<12xf32>
    %73 = vector.multi_reduction <add>, %68, %cst_41 [1] : vector<12x32xf32> to vector<12xf32>
    %74 = vector.shape_cast %73 : vector<12xf32> to vector<12x1xf32>
    %cst_42 = arith.constant 3.200000e+01 : f32
    %75 = vector.broadcast %cst_42 : f32 to vector<12x1xf32>
    %76 = arith.divf %74, %75 : vector<12x1xf32>
    %77 = vector.broadcast %76 : vector<12x1xf32> to vector<12x32xf32>
    %78 = arith.subf %68, %77 : vector<12x32xf32>
    %79 = arith.mulf %78, %78 : vector<12x32xf32>
    %cst_43 = arith.constant dense<0.000000e+00> : vector<12xf32>
    %80 = vector.multi_reduction <add>, %79, %cst_43 [1] : vector<12x32xf32> to vector<12xf32>
    %81 = vector.shape_cast %80 : vector<12xf32> to vector<12x1xf32>
    %cst_44 = arith.constant 3.200000e+01 : f32
    %82 = vector.broadcast %cst_44 : f32 to vector<12x1xf32>
    %83 = arith.divf %81, %82 : vector<12x1xf32>
    %84 = vector.broadcast %76 : vector<12x1xf32> to vector<12x32xf32>
    %85 = arith.subf %68, %84 : vector<12x32xf32>
    %cst_45 = arith.constant 9.99999974E-6 : f32
    %86 = vector.broadcast %cst_45 : f32 to vector<12x1xf32>
    %87 = arith.addf %83, %86 : vector<12x1xf32>
    %88 = math.rsqrt %87 : vector<12x1xf32>
    %89 = vector.broadcast %88 : vector<12x1xf32> to vector<12x32xf32>
    %90 = arith.mulf %85, %89 : vector<12x32xf32>
    %91 = vector.broadcast %70 : vector<1x32xf32> to vector<12x32xf32>
    %92 = arith.mulf %90, %91 : vector<12x32xf32>
    %93 = vector.broadcast %72 : vector<1x32xf32> to vector<12x32xf32>
    %94 = arith.addf %92, %93 : vector<12x32xf32>
    %c0_46 = arith.constant 0 : index
    %c0_47 = arith.constant 0 : index
    %c0_48 = arith.constant 0 : index
    %95 = vector.load %arg16[%c0_46, %c0_47, %c0_48] : memref<2x32x128xf32, #tpu.memory_space<vmem>>, vector<1x32x128xf32>
    %96 = vector.shape_cast %95 : vector<1x32x128xf32> to vector<32x128xf32>
    %cst_49 = arith.constant dense<0.000000e+00> : vector<12x128xf32>
    %97 = tpu.matmul %94, %96, %cst_49 {dimension_numbers = #tpu.dot_dimension_numbers<[1], [0], [0], [1], [0, 0, 1, 1], [], []>} : vector<12x32xf32>, vector<32x128xf32>, vector<12x128xf32> -> vector<12x128xf32>
    %c0_50 = arith.constant 0 : index
    %c0_51 = arith.constant 0 : index
    %c0_52 = arith.constant 0 : index
    %98 = vector.load %arg17[%c0_50, %c0_51, %c0_52] : memref<2x1x128xf32, #tpu.memory_space<vmem>>, vector<1x1x128xf32>
    %99 = vector.shape_cast %98 : vector<1x1x128xf32> to vector<1x128xf32>
    %100 = vector.broadcast %99 : vector<1x128xf32> to vector<12x128xf32>
    %101 = arith.addf %97, %100 : vector<12x128xf32>
    %cst_53 = arith.constant 0.000000e+00 : f32
    %102 = vector.broadcast %cst_53 : f32 to vector<12x128xf32>
    %103 = arith.maximumf %101, %102 : vector<12x128xf32>
    %c0_54 = arith.constant 0 : index
    %c0_55 = arith.constant 0 : index
    %c0_56 = arith.constant 0 : index
    %104 = vector.load %arg18[%c0_54, %c0_55, %c0_56] : memref<2x128x32xf32, #tpu.memory_space<vmem>>, vector<1x128x32xf32>
    %105 = vector.shape_cast %104 : vector<1x128x32xf32> to vector<128x32xf32>
    %cst_57 = arith.constant dense<0.000000e+00> : vector<12x32xf32>
    %106 = tpu.matmul %103, %105, %cst_57 {dimension_numbers = #tpu.dot_dimension_numbers<[1], [0], [0], [1], [0, 0, 1, 1], [], []>} : vector<12x128xf32>, vector<128x32xf32>, vector<12x32xf32> -> vector<12x32xf32>
    %c0_58 = arith.constant 0 : index
    %c0_59 = arith.constant 0 : index
    %c0_60 = arith.constant 0 : index
    %107 = vector.load %arg19[%c0_58, %c0_59, %c0_60] : memref<2x1x32xf32, #tpu.memory_space<vmem>>, vector<1x1x32xf32>
    %108 = vector.shape_cast %107 : vector<1x1x32xf32> to vector<1x32xf32>
    %109 = vector.broadcast %108 : vector<1x32xf32> to vector<12x32xf32>
    %110 = arith.addf %106, %109 : vector<12x32xf32>
    %111 = arith.addf %110, %94 : vector<12x32xf32>
    %c0_61 = arith.constant 0 : index
    %c0_62 = arith.constant 0 : index
    %c0_63 = arith.constant 0 : index
    %112 = vector.load %arg14[%c0_61, %c0_62, %c0_63] : memref<2x1x32xf32, #tpu.memory_space<vmem>>, vector<1x1x32xf32>
    %113 = vector.shape_cast %112 : vector<1x1x32xf32> to vector<1x32xf32>
    %c0_64 = arith.constant 0 : index
    %c0_65 = arith.constant 0 : index
    %c0_66 = arith.constant 0 : index
    %114 = vector.load %arg15[%c0_64, %c0_65, %c0_66] : memref<2x1x32xf32, #tpu.memory_space<vmem>>, vector<1x1x32xf32>
    %115 = vector.shape_cast %114 : vector<1x1x32xf32> to vector<1x32xf32>
    %cst_67 = arith.constant dense<0.000000e+00> : vector<12xf32>
    %116 = vector.multi_reduction <add>, %111, %cst_67 [1] : vector<12x32xf32> to vector<12xf32>
    %117 = vector.shape_cast %116 : vector<12xf32> to vector<12x1xf32>
    %cst_68 = arith.constant 3.200000e+01 : f32
    %118 = vector.broadcast %cst_68 : f32 to vector<12x1xf32>
    %119 = arith.divf %117, %118 : vector<12x1xf32>
    %120 = vector.broadcast %119 : vector<12x1xf32> to vector<12x32xf32>
    %121 = arith.subf %111, %120 : vector<12x32xf32>
    %122 = arith.mulf %121, %121 : vector<12x32xf32>
    %cst_69 = arith.constant dense<0.000000e+00> : vector<12xf32>
    %123 = vector.multi_reduction <add>, %122, %cst_69 [1] : vector<12x32xf32> to vector<12xf32>
    %124 = vector.shape_cast %123 : vector<12xf32> to vector<12x1xf32>
    %cst_70 = arith.constant 3.200000e+01 : f32
    %125 = vector.broadcast %cst_70 : f32 to vector<12x1xf32>
    %126 = arith.divf %124, %125 : vector<12x1xf32>
    %127 = vector.broadcast %119 : vector<12x1xf32> to vector<12x32xf32>
    %128 = arith.subf %111, %127 : vector<12x32xf32>
    %cst_71 = arith.constant 9.99999974E-6 : f32
    %129 = vector.broadcast %cst_71 : f32 to vector<12x1xf32>
    %130 = arith.addf %126, %129 : vector<12x1xf32>
    %131 = math.rsqrt %130 : vector<12x1xf32>
    %132 = vector.broadcast %131 : vector<12x1xf32> to vector<12x32xf32>
    %133 = arith.mulf %128, %132 : vector<12x32xf32>
    %134 = vector.broadcast %113 : vector<1x32xf32> to vector<12x32xf32>
    %135 = arith.mulf %133, %134 : vector<12x32xf32>
    %136 = vector.broadcast %115 : vector<1x32xf32> to vector<12x32xf32>
    %137 = arith.addf %135, %136 : vector<12x32xf32>
    %c1 = arith.constant 1 : index
    %c0_72 = arith.constant 0 : index
    %c0_73 = arith.constant 0 : index
    %138 = vector.load %arg8[%c1, %c0_72, %c0_73] : memref<2x32x96xf32, #tpu.memory_space<vmem>>, vector<1x32x96xf32>
    %139 = vector.shape_cast %138 : vector<1x32x96xf32> to vector<32x96xf32>
    %cst_74 = arith.constant dense<0.000000e+00> : vector<12x96xf32>
    %140 = tpu.matmul %137, %139, %cst_74 {dimension_numbers = #tpu.dot_dimension_numbers<[1], [0], [0], [1], [0, 0, 1, 1], [], []>} : vector<12x32xf32>, vector<32x96xf32>, vector<12x96xf32> -> vector<12x96xf32>
    %c1_75 = arith.constant 1 : index
    %c0_76 = arith.constant 0 : index
    %c0_77 = arith.constant 0 : index
    %141 = vector.load %arg9[%c1_75, %c0_76, %c0_77] : memref<2x1x96xf32, #tpu.memory_space<vmem>>, vector<1x1x96xf32>
    %142 = vector.shape_cast %141 : vector<1x1x96xf32> to vector<1x96xf32>
    %143 = vector.broadcast %142 : vector<1x96xf32> to vector<12x96xf32>
    %144 = arith.addf %140, %143 : vector<12x96xf32>
    %145 = vector.extract_strided_slice %144 {offsets = [0, 0], sizes = [12, 32], strides = [1, 1]} : vector<12x96xf32> to vector<12x32xf32>
    %146 = vector.shape_cast %145 : vector<12x32xf32> to vector<2x6x32xf32>
    %147 = vector.extract_strided_slice %144 {offsets = [0, 32], sizes = [12, 32], strides = [1, 1]} : vector<12x96xf32> to vector<12x32xf32>
    %148 = vector.shape_cast %147 : vector<12x32xf32> to vector<2x6x32xf32>
    %149 = vector.extract_strided_slice %144 {offsets = [0, 64], sizes = [12, 32], strides = [1, 1]} : vector<12x96xf32> to vector<12x32xf32>
    %150 = vector.shape_cast %149 : vector<12x32xf32> to vector<2x6x32xf32>
    %151 = vector.shape_cast %148 : vector<2x6x32xf32> to vector<2x1x6x32xf32>
    %152 = vector.shape_cast %17 : vector<4x32xf32> to vector<1x4x1x32xf32>
    %153 = vector.broadcast %151 : vector<2x1x6x32xf32> to vector<2x4x6x32xf32>
    %154 = vector.broadcast %152 : vector<1x4x1x32xf32> to vector<2x4x6x32xf32>
    %155 = arith.mulf %153, %154 : vector<2x4x6x32xf32>
    %156 = vector.shape_cast %155 : vector<2x4x6x32xf32> to vector<2x24x32xf32>
    %157 = vector.shape_cast %150 : vector<2x6x32xf32> to vector<2x1x6x32xf32>
    %158 = vector.shape_cast %17 : vector<4x32xf32> to vector<1x4x1x32xf32>
    %159 = vector.broadcast %157 : vector<2x1x6x32xf32> to vector<2x4x6x32xf32>
    %160 = vector.broadcast %158 : vector<1x4x1x32xf32> to vector<2x4x6x32xf32>
    %161 = arith.mulf %159, %160 : vector<2x4x6x32xf32>
    %162 = vector.shape_cast %161 : vector<2x4x6x32xf32> to vector<2x24x32xf32>
    "tpu.trace_start"() <{level = 10 : i32, message = "bqe,bke->bqk"}> : () -> ()
    %cst_78 = arith.constant dense<0.000000e+00> : vector<2x6x24xf32>
    %163 = tpu.matmul %146, %156, %cst_78 {dimension_numbers = #tpu.dot_dimension_numbers<[2], [2], [1], [1], [0, 0, 0, 1, 1, 1], [0], [0]>} : vector<2x6x32xf32>, vector<2x24x32xf32>, vector<2x6x24xf32> -> vector<2x6x24xf32>
    "tpu.trace_stop"() : () -> ()
    %164 = vector.broadcast %16 : vector<2x1x24xf32> to vector<2x6x24xf32>
    %165 = arith.addf %163, %164 : vector<2x6x24xf32>
    %cst_79 = arith.constant dense<0xFF800000> : vector<2x6xf32>
    %166 = vector.multi_reduction <maximumf>, %165, %cst_79 [2] : vector<2x6x24xf32> to vector<2x6xf32>
    %167 = vector.shape_cast %166 : vector<2x6xf32> to vector<2x6x1xf32>
    %168 = vector.broadcast %167 : vector<2x6x1xf32> to vector<2x6x24xf32>
    %169 = arith.subf %165, %168 : vector<2x6x24xf32>
    %170 = math.exp %169 : vector<2x6x24xf32>
    %171 = vector.shape_cast %170 : vector<2x6x24xf32> to vector<12x24xf32>
    %cst_80 = arith.constant dense<0.000000e+00> : vector<12x24xf32>
    %172 = tpu.matmul %171, %18, %cst_80 {dimension_numbers = #tpu.dot_dimension_numbers<[1], [0], [0], [1], [0, 0, 1, 1], [], []>} : vector<12x24xf32>, vector<24x24xf32>, vector<12x24xf32> -> vector<12x24xf32>
    %cst_81 = arith.constant 1.000000e-30 : f32
    %173 = vector.broadcast %cst_81 : f32 to vector<12x24xf32>
    %174 = arith.maximumf %172, %173 : vector<12x24xf32>
    %175 = tpu.reciprocal %174 {approx = true} : vector<12x24xf32> -> vector<12x24xf32>
    %176 = arith.mulf %171, %175 : vector<12x24xf32>
    %177 = vector.shape_cast %176 : vector<12x24xf32> to vector<2x6x24xf32>
    "tpu.trace_start"() <{level = 10 : i32, message = "bqk,bke->bqe"}> : () -> ()
    %cst_82 = arith.constant dense<0.000000e+00> : vector<2x6x32xf32>
    %178 = tpu.matmul %177, %162, %cst_82 {dimension_numbers = #tpu.dot_dimension_numbers<[2], [1], [1], [2], [0, 0, 0, 1, 1, 2], [0], [0]>} : vector<2x6x24xf32>, vector<2x24x32xf32>, vector<2x6x32xf32> -> vector<2x6x32xf32>
    "tpu.trace_stop"() : () -> ()
    %179 = vector.shape_cast %178 : vector<2x6x32xf32> to vector<12x32xf32>
    %c1_83 = arith.constant 1 : index
    %c0_84 = arith.constant 0 : index
    %c0_85 = arith.constant 0 : index
    %180 = vector.load %arg10[%c1_83, %c0_84, %c0_85] : memref<2x32x32xf32, #tpu.memory_space<vmem>>, vector<1x32x32xf32>
    %181 = vector.shape_cast %180 : vector<1x32x32xf32> to vector<32x32xf32>
    %cst_86 = arith.constant dense<0.000000e+00> : vector<12x32xf32>
    %182 = tpu.matmul %179, %181, %cst_86 {dimension_numbers = #tpu.dot_dimension_numbers<[1], [0], [0], [1], [0, 0, 1, 1], [], []>} : vector<12x32xf32>, vector<32x32xf32>, vector<12x32xf32> -> vector<12x32xf32>
    %c1_87 = arith.constant 1 : index
    %c0_88 = arith.constant 0 : index
    %c0_89 = arith.constant 0 : index
    %183 = vector.load %arg11[%c1_87, %c0_88, %c0_89] : memref<2x1x32xf32, #tpu.memory_space<vmem>>, vector<1x1x32xf32>
    %184 = vector.shape_cast %183 : vector<1x1x32xf32> to vector<1x32xf32>
    %185 = vector.broadcast %184 : vector<1x32xf32> to vector<12x32xf32>
    %186 = arith.addf %182, %185 : vector<12x32xf32>
    %187 = arith.addf %186, %137 : vector<12x32xf32>
    %c1_90 = arith.constant 1 : index
    %c0_91 = arith.constant 0 : index
    %c0_92 = arith.constant 0 : index
    %188 = vector.load %arg12[%c1_90, %c0_91, %c0_92] : memref<2x1x32xf32, #tpu.memory_space<vmem>>, vector<1x1x32xf32>
    %189 = vector.shape_cast %188 : vector<1x1x32xf32> to vector<1x32xf32>
    %c1_93 = arith.constant 1 : index
    %c0_94 = arith.constant 0 : index
    %c0_95 = arith.constant 0 : index
    %190 = vector.load %arg13[%c1_93, %c0_94, %c0_95] : memref<2x1x32xf32, #tpu.memory_space<vmem>>, vector<1x1x32xf32>
    %191 = vector.shape_cast %190 : vector<1x1x32xf32> to vector<1x32xf32>
    %cst_96 = arith.constant dense<0.000000e+00> : vector<12xf32>
    %192 = vector.multi_reduction <add>, %187, %cst_96 [1] : vector<12x32xf32> to vector<12xf32>
    %193 = vector.shape_cast %192 : vector<12xf32> to vector<12x1xf32>
    %cst_97 = arith.constant 3.200000e+01 : f32
    %194 = vector.broadcast %cst_97 : f32 to vector<12x1xf32>
    %195 = arith.divf %193, %194 : vector<12x1xf32>
    %196 = vector.broadcast %195 : vector<12x1xf32> to vector<12x32xf32>
    %197 = arith.subf %187, %196 : vector<12x32xf32>
    %198 = arith.mulf %197, %197 : vector<12x32xf32>
    %cst_98 = arith.constant dense<0.000000e+00> : vector<12xf32>
    %199 = vector.multi_reduction <add>, %198, %cst_98 [1] : vector<12x32xf32> to vector<12xf32>
    %200 = vector.shape_cast %199 : vector<12xf32> to vector<12x1xf32>
    %cst_99 = arith.constant 3.200000e+01 : f32
    %201 = vector.broadcast %cst_99 : f32 to vector<12x1xf32>
    %202 = arith.divf %200, %201 : vector<12x1xf32>
    %203 = vector.broadcast %195 : vector<12x1xf32> to vector<12x32xf32>
    %204 = arith.subf %187, %203 : vector<12x32xf32>
    %cst_100 = arith.constant 9.99999974E-6 : f32
    %205 = vector.broadcast %cst_100 : f32 to vector<12x1xf32>
    %206 = arith.addf %202, %205 : vector<12x1xf32>
    %207 = math.rsqrt %206 : vector<12x1xf32>
    %208 = vector.broadcast %207 : vector<12x1xf32> to vector<12x32xf32>
    %209 = arith.mulf %204, %208 : vector<12x32xf32>
    %210 = vector.broadcast %189 : vector<1x32xf32> to vector<12x32xf32>
    %211 = arith.mulf %209, %210 : vector<12x32xf32>
    %212 = vector.broadcast %191 : vector<1x32xf32> to vector<12x32xf32>
    %213 = arith.addf %211, %212 : vector<12x32xf32>
    %c1_101 = arith.constant 1 : index
    %c0_102 = arith.constant 0 : index
    %c0_103 = arith.constant 0 : index
    %214 = vector.load %arg16[%c1_101, %c0_102, %c0_103] : memref<2x32x128xf32, #tpu.memory_space<vmem>>, vector<1x32x128xf32>
    %215 = vector.shape_cast %214 : vector<1x32x128xf32> to vector<32x128xf32>
    %cst_104 = arith.constant dense<0.000000e+00> : vector<12x128xf32>
    %216 = tpu.matmul %213, %215, %cst_104 {dimension_numbers = #tpu.dot_dimension_numbers<[1], [0], [0], [1], [0, 0, 1, 1], [], []>} : vector<12x32xf32>, vector<32x128xf32>, vector<12x128xf32> -> vector<12x128xf32>
    %c1_105 = arith.constant 1 : index
    %c0_106 = arith.constant 0 : index
    %c0_107 = arith.constant 0 : index
    %217 = vector.load %arg17[%c1_105, %c0_106, %c0_107] : memref<2x1x128xf32, #tpu.memory_space<vmem>>, vector<1x1x128xf32>
    %218 = vector.shape_cast %217 : vector<1x1x128xf32> to vector<1x128xf32>
    %219 = vector.broadcast %218 : vector<1x128xf32> to vector<12x128xf32>
    %220 = arith.addf %216, %219 : vector<12x128xf32>
    %cst_108 = arith.constant 0.000000e+00 : f32
    %221 = vector.broadcast %cst_108 : f32 to vector<12x128xf32>
    %222 = arith.maximumf %220, %221 : vector<12x128xf32>
    %c1_109 = arith.constant 1 : index
    %c0_110 = arith.constant 0 : index
    %c0_111 = arith.constant 0 : index
    %223 = vector.load %arg18[%c1_109, %c0_110, %c0_111] : memref<2x128x32xf32, #tpu.memory_space<vmem>>, vector<1x128x32xf32>
    %224 = vector.shape_cast %223 : vector<1x128x32xf32> to vector<128x32xf32>
    %cst_112 = arith.constant dense<0.000000e+00> : vector<12x32xf32>
    %225 = tpu.matmul %222, %224, %cst_112 {dimension_numbers = #tpu.dot_dimension_numbers<[1], [0], [0], [1], [0, 0, 1, 1], [], []>} : vector<12x128xf32>, vector<128x32xf32>, vector<12x32xf32> -> vector<12x32xf32>
    %c1_113 = arith.constant 1 : index
    %c0_114 = arith.constant 0 : index
    %c0_115 = arith.constant 0 : index
    %226 = vector.load %arg19[%c1_113, %c0_114, %c0_115] : memref<2x1x32xf32, #tpu.memory_space<vmem>>, vector<1x1x32xf32>
    %227 = vector.shape_cast %226 : vector<1x1x32xf32> to vector<1x32xf32>
    %228 = vector.broadcast %227 : vector<1x32xf32> to vector<12x32xf32>
    %229 = arith.addf %225, %228 : vector<12x32xf32>
    %230 = arith.addf %229, %213 : vector<12x32xf32>
    %c1_116 = arith.constant 1 : index
    %c0_117 = arith.constant 0 : index
    %c0_118 = arith.constant 0 : index
    %231 = vector.load %arg14[%c1_116, %c0_117, %c0_118] : memref<2x1x32xf32, #tpu.memory_space<vmem>>, vector<1x1x32xf32>
    %232 = vector.shape_cast %231 : vector<1x1x32xf32> to vector<1x32xf32>
    %c1_119 = arith.constant 1 : index
    %c0_120 = arith.constant 0 : index
    %c0_121 = arith.constant 0 : index
    %233 = vector.load %arg15[%c1_119, %c0_120, %c0_121] : memref<2x1x32xf32, #tpu.memory_space<vmem>>, vector<1x1x32xf32>
    %234 = vector.shape_cast %233 : vector<1x1x32xf32> to vector<1x32xf32>
    %cst_122 = arith.constant dense<0.000000e+00> : vector<12xf32>
    %235 = vector.multi_reduction <add>, %230, %cst_122 [1] : vector<12x32xf32> to vector<12xf32>
    %236 = vector.shape_cast %235 : vector<12xf32> to vector<12x1xf32>
    %cst_123 = arith.constant 3.200000e+01 : f32
    %237 = vector.broadcast %cst_123 : f32 to vector<12x1xf32>
    %238 = arith.divf %236, %237 : vector<12x1xf32>
    %239 = vector.broadcast %238 : vector<12x1xf32> to vector<12x32xf32>
    %240 = arith.subf %230, %239 : vector<12x32xf32>
    %241 = arith.mulf %240, %240 : vector<12x32xf32>
    %cst_124 = arith.constant dense<0.000000e+00> : vector<12xf32>
    %242 = vector.multi_reduction <add>, %241, %cst_124 [1] : vector<12x32xf32> to vector<12xf32>
    %243 = vector.shape_cast %242 : vector<12xf32> to vector<12x1xf32>
    %cst_125 = arith.constant 3.200000e+01 : f32
    %244 = vector.broadcast %cst_125 : f32 to vector<12x1xf32>
    %245 = arith.divf %243, %244 : vector<12x1xf32>
    %246 = vector.broadcast %238 : vector<12x1xf32> to vector<12x32xf32>
    %247 = arith.subf %230, %246 : vector<12x32xf32>
    %cst_126 = arith.constant 9.99999974E-6 : f32
    %248 = vector.broadcast %cst_126 : f32 to vector<12x1xf32>
    %249 = arith.addf %245, %248 : vector<12x1xf32>
    %250 = math.rsqrt %249 : vector<12x1xf32>
    %251 = vector.broadcast %250 : vector<12x1xf32> to vector<12x32xf32>
    %252 = arith.mulf %247, %251 : vector<12x32xf32>
    %253 = vector.broadcast %232 : vector<1x32xf32> to vector<12x32xf32>
    %254 = arith.mulf %252, %253 : vector<12x32xf32>
    %255 = vector.broadcast %234 : vector<1x32xf32> to vector<12x32xf32>
    %256 = arith.addf %254, %255 : vector<12x32xf32>
    %c0_127 = arith.constant 0 : index
    %c0_128 = arith.constant 0 : index
    %257 = vector.load %arg20[%c0_127, %c0_128] : memref<32x32xf32, #tpu.memory_space<vmem>>, vector<32x32xf32>
    %cst_129 = arith.constant dense<0.000000e+00> : vector<12x32xf32>
    %258 = tpu.matmul %256, %257, %cst_129 {dimension_numbers = #tpu.dot_dimension_numbers<[1], [0], [0], [1], [0, 0, 1, 1], [], []>} : vector<12x32xf32>, vector<32x32xf32>, vector<12x32xf32> -> vector<12x32xf32>
    %c0_130 = arith.constant 0 : index
    %c0_131 = arith.constant 0 : index
    %259 = vector.load %arg21[%c0_130, %c0_131] : memref<1x32xf32, #tpu.memory_space<vmem>>, vector<1x32xf32>
    %260 = vector.broadcast %259 : vector<1x32xf32> to vector<12x32xf32>
    %261 = arith.addf %258, %260 : vector<12x32xf32>
    %cst_132 = arith.constant 0.000000e+00 : f32
    %262 = vector.broadcast %cst_132 : f32 to vector<12x32xf32>
    %263 = arith.maximumf %261, %262 : vector<12x32xf32>
    %c0_133 = arith.constant 0 : index
    %c0_134 = arith.constant 0 : index
    %c0_135 = arith.constant 0 : index
    %264 = vector.load %arg3[%c0_133, %c0_134, %c0_135] : memref<2x6x32xf32, #tpu.memory_space<vmem>>, vector<2x6x32xf32>
    %265 = vector.shape_cast %264 : vector<2x6x32xf32> to vector<12x32xf32>
    %c0_136 = arith.constant 0 : index
    %c0_137 = arith.constant 0 : index
    %266 = vector.load %arg22[%c0_136, %c0_137] : memref<32x96xf32, #tpu.memory_space<vmem>>, vector<32x96xf32>
    %cst_138 = arith.constant dense<0.000000e+00> : vector<12x96xf32>
    %267 = tpu.matmul %263, %266, %cst_138 {dimension_numbers = #tpu.dot_dimension_numbers<[1], [0], [0], [1], [0, 0, 1, 1], [], []>} : vector<12x32xf32>, vector<32x96xf32>, vector<12x96xf32> -> vector<12x96xf32>
    %c0_139 = arith.constant 0 : index
    %c0_140 = arith.constant 0 : index
    %268 = vector.load %arg23[%c0_139, %c0_140] : memref<1x96xf32, #tpu.memory_space<vmem>>, vector<1x96xf32>
    %269 = vector.broadcast %268 : vector<1x96xf32> to vector<12x96xf32>
    %270 = arith.addf %267, %269 : vector<12x96xf32>
    %c0_141 = arith.constant 0 : index
    %c0_142 = arith.constant 0 : index
    %271 = vector.load %arg24[%c0_141, %c0_142] : memref<32x96xf32, #tpu.memory_space<vmem>>, vector<32x96xf32>
    %cst_143 = arith.constant dense<0.000000e+00> : vector<12x96xf32>
    %272 = tpu.matmul %265, %271, %cst_143 {dimension_numbers = #tpu.dot_dimension_numbers<[1], [0], [0], [1], [0, 0, 1, 1], [], []>} : vector<12x32xf32>, vector<32x96xf32>, vector<12x96xf32> -> vector<12x96xf32>
    %c0_144 = arith.constant 0 : index
    %c0_145 = arith.constant 0 : index
    %273 = vector.load %arg25[%c0_144, %c0_145] : memref<1x96xf32, #tpu.memory_space<vmem>>, vector<1x96xf32>
    %274 = vector.broadcast %273 : vector<1x96xf32> to vector<12x96xf32>
    %275 = arith.addf %272, %274 : vector<12x96xf32>
    %276 = vector.extract_strided_slice %270 {offsets = [0, 0], sizes = [12, 32], strides = [1, 1]} : vector<12x96xf32> to vector<12x32xf32>
    %277 = vector.extract_strided_slice %275 {offsets = [0, 0], sizes = [12, 32], strides = [1, 1]} : vector<12x96xf32> to vector<12x32xf32>
    %278 = arith.addf %276, %277 : vector<12x32xf32>
    %279 = arith.negf %278 : vector<12x32xf32>
    %280 = math.exp %279 : vector<12x32xf32>
    %cst_146 = arith.constant 1.000000e+00 : f32
    %281 = vector.broadcast %cst_146 : f32 to vector<12x32xf32>
    %282 = arith.addf %281, %280 : vector<12x32xf32>
    %283 = arith.divf %281, %282 : vector<12x32xf32>
    %284 = vector.extract_strided_slice %270 {offsets = [0, 32], sizes = [12, 32], strides = [1, 1]} : vector<12x96xf32> to vector<12x32xf32>
    %285 = vector.extract_strided_slice %275 {offsets = [0, 32], sizes = [12, 32], strides = [1, 1]} : vector<12x96xf32> to vector<12x32xf32>
    %286 = arith.addf %284, %285 : vector<12x32xf32>
    %287 = arith.negf %286 : vector<12x32xf32>
    %288 = math.exp %287 : vector<12x32xf32>
    %cst_147 = arith.constant 1.000000e+00 : f32
    %289 = vector.broadcast %cst_147 : f32 to vector<12x32xf32>
    %290 = arith.addf %289, %288 : vector<12x32xf32>
    %291 = arith.divf %289, %290 : vector<12x32xf32>
    %292 = vector.extract_strided_slice %270 {offsets = [0, 64], sizes = [12, 32], strides = [1, 1]} : vector<12x96xf32> to vector<12x32xf32>
    %293 = vector.extract_strided_slice %275 {offsets = [0, 64], sizes = [12, 32], strides = [1, 1]} : vector<12x96xf32> to vector<12x32xf32>
    %294 = arith.mulf %283, %293 : vector<12x32xf32>
    %295 = arith.addf %292, %294 : vector<12x32xf32>
    %296 = math.tanh %295 : vector<12x32xf32>
    %cst_148 = arith.constant 1.000000e+00 : f32
    %297 = vector.broadcast %cst_148 : f32 to vector<12x32xf32>
    %298 = arith.subf %297, %291 : vector<12x32xf32>
    %299 = arith.mulf %298, %296 : vector<12x32xf32>
    %300 = arith.mulf %291, %265 : vector<12x32xf32>
    %301 = arith.addf %299, %300 : vector<12x32xf32>
    %302 = vector.shape_cast %301 : vector<12x32xf32> to vector<2x6x32xf32>
    %303 = vector.extract_strided_slice %302 {offsets = [0, 0, 0], sizes = [2, 1, 32], strides = [1, 1, 1]} : vector<2x6x32xf32> to vector<2x1x32xf32>
    %304 = vector.shape_cast %303 : vector<2x1x32xf32> to vector<2x32xf32>
    %305 = vector.extract_strided_slice %302 {offsets = [0, 1, 0], sizes = [2, 1, 32], strides = [1, 1, 1]} : vector<2x6x32xf32> to vector<2x1x32xf32>
    %306 = vector.shape_cast %305 : vector<2x1x32xf32> to vector<2x32xf32>
    %307 = vector.extract_strided_slice %302 {offsets = [0, 2, 0], sizes = [2, 1, 32], strides = [1, 1, 1]} : vector<2x6x32xf32> to vector<2x1x32xf32>
    %308 = vector.shape_cast %307 : vector<2x1x32xf32> to vector<2x32xf32>
    %309 = vector.extract_strided_slice %302 {offsets = [0, 3, 0], sizes = [2, 1, 32], strides = [1, 1, 1]} : vector<2x6x32xf32> to vector<2x1x32xf32>
    %310 = vector.shape_cast %309 : vector<2x1x32xf32> to vector<2x32xf32>
    %311 = vector.extract_strided_slice %302 {offsets = [0, 4, 0], sizes = [2, 1, 32], strides = [1, 1, 1]} : vector<2x6x32xf32> to vector<2x1x32xf32>
    %312 = vector.shape_cast %311 : vector<2x1x32xf32> to vector<2x32xf32>
    %313 = vector.extract_strided_slice %302 {offsets = [0, 5, 0], sizes = [2, 1, 32], strides = [1, 1, 1]} : vector<2x6x32xf32> to vector<2x1x32xf32>
    %314 = vector.shape_cast %313 : vector<2x1x32xf32> to vector<2x32xf32>
    %315 = tpu.concatenate %304, %306, %308, %310, %312, %314 in 1 : vector<2x32xf32>, vector<2x32xf32>, vector<2x32xf32>, vector<2x32xf32>, vector<2x32xf32>, vector<2x32xf32> -> vector<2x192xf32>
    %c0_149 = arith.constant 0 : index
    %c0_150 = arith.constant 0 : index
    %316 = vector.load %arg29[%c0_149, %c0_150] : memref<2x192xf32, #tpu.memory_space<vmem>>, vector<2x192xf32>
    tpu.vector_store %arg29[%c0_149, %c0_150], %315 {strides = array<i32>} : memref<2x192xf32, #tpu.memory_space<vmem>>, vector<2x192xf32>,
    %c0_151 = arith.constant 0 : index
    %c0_152 = arith.constant 0 : index
    %317 = vector.load %arg26[%c0_151, %c0_152] : memref<32x6xf32, #tpu.memory_space<vmem>>, vector<32x6xf32>
    %cst_153 = arith.constant dense<0.000000e+00> : vector<12x6xf32>
    %318 = tpu.matmul %301, %317, %cst_153 {dimension_numbers = #tpu.dot_dimension_numbers<[1], [0], [0], [1], [0, 0, 1, 1], [], []>} : vector<12x32xf32>, vector<32x6xf32>, vector<12x6xf32> -> vector<12x6xf32>
    %c0_154 = arith.constant 0 : index
    %c0_155 = arith.constant 0 : index
    %319 = vector.load %arg27[%c0_154, %c0_155] : memref<1x6xf32, #tpu.memory_space<vmem>>, vector<1x6xf32>
    %320 = vector.broadcast %319 : vector<1x6xf32> to vector<12x6xf32>
    %321 = arith.addf %318, %320 : vector<12x6xf32>
    %322 = vector.shape_cast %321 : vector<12x6xf32> to vector<2x6x6xf32>
    %323 = vector.extract_strided_slice %322 {offsets = [0, 0, 0], sizes = [2, 1, 6], strides = [1, 1, 1]} : vector<2x6x6xf32> to vector<2x1x6xf32>
    %324 = vector.shape_cast %323 : vector<2x1x6xf32> to vector<2x6xf32>
    %cst_156 = arith.constant 0.000000e+00 : f32
    %325 = vector.broadcast %cst_156 : f32 to vector<2x128xf32>
    %c0_157 = arith.constant 0 : index
    %c0_158 = arith.constant 0 : index
    %326 = vector.load %arg28[%c0_157, %c0_158] : memref<2x128xf32, #tpu.memory_space<vmem>>, vector<2x128xf32>
    tpu.vector_store %arg28[%c0_157, %c0_158], %325 {strides = array<i32>} : memref<2x128xf32, #tpu.memory_space<vmem>>, vector<2x128xf32>,
    %c0_159 = arith.constant 0 : index
    %c0_160 = arith.constant 0 : index
    %327 = vector.load %arg28[%c0_159, %c0_160] : memref<2x128xf32, #tpu.memory_space<vmem>>, vector<2x6xf32>
    tpu.vector_store %arg28[%c0_159, %c0_160], %324 {strides = array<i32>} : memref<2x128xf32, #tpu.memory_space<vmem>>, vector<2x6xf32>,
    %328 = vector.extract_strided_slice %322 {offsets = [0, 1, 0], sizes = [2, 3, 6], strides = [1, 1, 1]} : vector<2x6x6xf32> to vector<2x3x6xf32>
    %cst_161 = arith.constant dense<0.000000e+00> : vector<2x3xf32>
    %329 = vector.multi_reduction <add>, %328, %cst_161 [2] : vector<2x3x6xf32> to vector<2x3xf32>
    %cst_162 = arith.constant 6.000000e+00 : f32
    %330 = vector.broadcast %cst_162 : f32 to vector<2x3xf32>
    %331 = arith.divf %329, %330 : vector<2x3xf32>
    %c0_163 = arith.constant 0 : index
    %c6 = arith.constant 6 : index
    %332 = vector.load %arg28[%c0_163, %c6] : memref<2x128xf32, #tpu.memory_space<vmem>>, vector<2x3xf32>
    tpu.vector_store %arg28[%c0_163, %c6], %331 {strides = array<i32>} : memref<2x128xf32, #tpu.memory_space<vmem>>, vector<2x3xf32>,
    %333 = vector.extract_strided_slice %322 {offsets = [0, 4, 0], sizes = [2, 2, 6], strides = [1, 1, 1]} : vector<2x6x6xf32> to vector<2x2x6xf32>
    %cst_164 = arith.constant dense<0.000000e+00> : vector<2x2xf32>
    %334 = vector.multi_reduction <add>, %333, %cst_164 [2] : vector<2x2x6xf32> to vector<2x2xf32>
    %cst_165 = arith.constant 6.000000e+00 : f32
    %335 = vector.broadcast %cst_165 : f32 to vector<2x2xf32>
    %336 = arith.divf %334, %335 : vector<2x2xf32>
    %c0_166 = arith.constant 0 : index
    %c9 = arith.constant 9 : index
    %337 = vector.load %arg28[%c0_166, %c9] : memref<2x128xf32, #tpu.memory_space<vmem>>, vector<2x2xf32>
    tpu.vector_store %arg28[%c0_166, %c9], %336 {strides = array<i32>} : memref<2x128xf32, #tpu.memory_space<vmem>>, vector<2x2xf32>,
    return
  }
  func.func @transform_0(%arg0: i32) -> (i32, i32, i32) {
    %c0_i32 = arith.constant 0 : i32
    %c0_i32_0 = arith.constant 0 : i32
    %c0_i32_1 = arith.constant 0 : i32
    return %arg0, %c0_i32, %c0_i32_0 : i32, i32, i32
  }
  func.func @transform_1(%arg0: i32) -> (i32, i32) {
    %c0_i32 = arith.constant 0 : i32
    %c0_i32_0 = arith.constant 0 : i32
    return %arg0, %c0_i32 : i32, i32
  }
  func.func @transform_2(%arg0: i32) -> (i32, i32, i32) {
    %c0_i32 = arith.constant 0 : i32
    %c0_i32_0 = arith.constant 0 : i32
    %c0_i32_1 = arith.constant 0 : i32
    return %arg0, %c0_i32, %c0_i32_0 : i32, i32, i32
  }
  func.func @transform_3(%arg0: i32) -> (i32, i32) {
    %c0_i32 = arith.constant 0 : i32
    %c0_i32_0 = arith.constant 0 : i32
    %c0_i32_1 = arith.constant 0 : i32
    return %c0_i32, %c0_i32_0 : i32, i32
  }
  func.func @transform_4(%arg0: i32) -> (i32, i32) {
    %c0_i32 = arith.constant 0 : i32
    %c0_i32_0 = arith.constant 0 : i32
    %c0_i32_1 = arith.constant 0 : i32
    return %c0_i32, %c0_i32_0 : i32, i32
  }
  func.func @transform_5(%arg0: i32) -> (i32, i32) {
    %c0_i32 = arith.constant 0 : i32
    %c0_i32_0 = arith.constant 0 : i32
    %c0_i32_1 = arith.constant 0 : i32
    return %c0_i32, %c0_i32_0 : i32, i32
  }
  func.func @transform_6(%arg0: i32) -> (i32, i32) {
    %c0_i32 = arith.constant 0 : i32
    %c0_i32_0 = arith.constant 0 : i32
    %c0_i32_1 = arith.constant 0 : i32
    return %c0_i32, %c0_i32_0 : i32, i32
  }
  func.func @transform_7(%arg0: i32) -> (i32, i32, i32) {
    %c0_i32 = arith.constant 0 : i32
    %c0_i32_0 = arith.constant 0 : i32
    %c0_i32_1 = arith.constant 0 : i32
    %c0_i32_2 = arith.constant 0 : i32
    return %c0_i32, %c0_i32_0, %c0_i32_1 : i32, i32, i32
  }
  func.func @transform_8(%arg0: i32) -> (i32, i32, i32) {
    %c0_i32 = arith.constant 0 : i32
    %c0_i32_0 = arith.constant 0 : i32
    %c0_i32_1 = arith.constant 0 : i32
    %c0_i32_2 = arith.constant 0 : i32
    return %c0_i32, %c0_i32_0, %c0_i32_1 : i32, i32, i32
  }
  func.func @transform_9(%arg0: i32) -> (i32, i32, i32) {
    %c0_i32 = arith.constant 0 : i32
    %c0_i32_0 = arith.constant 0 : i32
    %c0_i32_1 = arith.constant 0 : i32
    %c0_i32_2 = arith.constant 0 : i32
    return %c0_i32, %c0_i32_0, %c0_i32_1 : i32, i32, i32
  }
  func.func @transform_10(%arg0: i32) -> (i32, i32, i32) {
    %c0_i32 = arith.constant 0 : i32
    %c0_i32_0 = arith.constant 0 : i32
    %c0_i32_1 = arith.constant 0 : i32
    %c0_i32_2 = arith.constant 0 : i32
    return %c0_i32, %c0_i32_0, %c0_i32_1 : i32, i32, i32
  }
  func.func @transform_11(%arg0: i32) -> (i32, i32, i32) {
    %c0_i32 = arith.constant 0 : i32
    %c0_i32_0 = arith.constant 0 : i32
    %c0_i32_1 = arith.constant 0 : i32
    %c0_i32_2 = arith.constant 0 : i32
    return %c0_i32, %c0_i32_0, %c0_i32_1 : i32, i32, i32
  }
  func.func @transform_12(%arg0: i32) -> (i32, i32, i32) {
    %c0_i32 = arith.constant 0 : i32
    %c0_i32_0 = arith.constant 0 : i32
    %c0_i32_1 = arith.constant 0 : i32
    %c0_i32_2 = arith.constant 0 : i32
    return %c0_i32, %c0_i32_0, %c0_i32_1 : i32, i32, i32
  }
  func.func @transform_13(%arg0: i32) -> (i32, i32, i32) {
    %c0_i32 = arith.constant 0 : i32
    %c0_i32_0 = arith.constant 0 : i32
    %c0_i32_1 = arith.constant 0 : i32
    %c0_i32_2 = arith.constant 0 : i32
    return %c0_i32, %c0_i32_0, %c0_i32_1 : i32, i32, i32
  }
  func.func @transform_14(%arg0: i32) -> (i32, i32, i32) {
    %c0_i32 = arith.constant 0 : i32
    %c0_i32_0 = arith.constant 0 : i32
    %c0_i32_1 = arith.constant 0 : i32
    %c0_i32_2 = arith.constant 0 : i32
    return %c0_i32, %c0_i32_0, %c0_i32_1 : i32, i32, i32
  }
  func.func @transform_15(%arg0: i32) -> (i32, i32, i32) {
    %c0_i32 = arith.constant 0 : i32
    %c0_i32_0 = arith.constant 0 : i32
    %c0_i32_1 = arith.constant 0 : i32
    %c0_i32_2 = arith.constant 0 : i32
    return %c0_i32, %c0_i32_0, %c0_i32_1 : i32, i32, i32
  }
  func.func @transform_16(%arg0: i32) -> (i32, i32, i32) {
    %c0_i32 = arith.constant 0 : i32
    %c0_i32_0 = arith.constant 0 : i32
    %c0_i32_1 = arith.constant 0 : i32
    %c0_i32_2 = arith.constant 0 : i32
    return %c0_i32, %c0_i32_0, %c0_i32_1 : i32, i32, i32
  }
  func.func @transform_17(%arg0: i32) -> (i32, i32, i32) {
    %c0_i32 = arith.constant 0 : i32
    %c0_i32_0 = arith.constant 0 : i32
    %c0_i32_1 = arith.constant 0 : i32
    %c0_i32_2 = arith.constant 0 : i32
    return %c0_i32, %c0_i32_0, %c0_i32_1 : i32, i32, i32
  }
  func.func @transform_18(%arg0: i32) -> (i32, i32, i32) {
    %c0_i32 = arith.constant 0 : i32
    %c0_i32_0 = arith.constant 0 : i32
    %c0_i32_1 = arith.constant 0 : i32
    %c0_i32_2 = arith.constant 0 : i32
    return %c0_i32, %c0_i32_0, %c0_i32_1 : i32, i32, i32
  }
  func.func @transform_19(%arg0: i32) -> (i32, i32) {
    %c0_i32 = arith.constant 0 : i32
    %c0_i32_0 = arith.constant 0 : i32
    %c0_i32_1 = arith.constant 0 : i32
    return %c0_i32, %c0_i32_0 : i32, i32
  }
  func.func @transform_20(%arg0: i32) -> (i32, i32) {
    %c0_i32 = arith.constant 0 : i32
    %c0_i32_0 = arith.constant 0 : i32
    %c0_i32_1 = arith.constant 0 : i32
    return %c0_i32, %c0_i32_0 : i32, i32
  }
  func.func @transform_21(%arg0: i32) -> (i32, i32) {
    %c0_i32 = arith.constant 0 : i32
    %c0_i32_0 = arith.constant 0 : i32
    %c0_i32_1 = arith.constant 0 : i32
    return %c0_i32, %c0_i32_0 : i32, i32
  }
  func.func @transform_22(%arg0: i32) -> (i32, i32) {
    %c0_i32 = arith.constant 0 : i32
    %c0_i32_0 = arith.constant 0 : i32
    %c0_i32_1 = arith.constant 0 : i32
    return %c0_i32, %c0_i32_0 : i32, i32
  }
  func.func @transform_23(%arg0: i32) -> (i32, i32) {
    %c0_i32 = arith.constant 0 : i32
    %c0_i32_0 = arith.constant 0 : i32
    %c0_i32_1 = arith.constant 0 : i32
    return %c0_i32, %c0_i32_0 : i32, i32
  }
  func.func @transform_24(%arg0: i32) -> (i32, i32) {
    %c0_i32 = arith.constant 0 : i32
    %c0_i32_0 = arith.constant 0 : i32
    %c0_i32_1 = arith.constant 0 : i32
    return %c0_i32, %c0_i32_0 : i32, i32
  }
  func.func @transform_25(%arg0: i32) -> (i32, i32) {
    %c0_i32 = arith.constant 0 : i32
    %c0_i32_0 = arith.constant 0 : i32
    %c0_i32_1 = arith.constant 0 : i32
    return %c0_i32, %c0_i32_0 : i32, i32
  }
  func.func @transform_26(%arg0: i32) -> (i32, i32) {
    %c0_i32 = arith.constant 0 : i32
    %c0_i32_0 = arith.constant 0 : i32
    %c0_i32_1 = arith.constant 0 : i32
    return %c0_i32, %c0_i32_0 : i32, i32
  }
  func.func @transform_27(%arg0: i32) -> (i32, i32) {
    %c0_i32 = arith.constant 0 : i32
    %c0_i32_0 = arith.constant 0 : i32
    return %arg0, %c0_i32 : i32, i32
  }
  func.func @transform_28(%arg0: i32) -> (i32, i32) {
    %c0_i32 = arith.constant 0 : i32
    %c0_i32_0 = arith.constant 0 : i32
    return %arg0, %c0_i32 : i32, i32
  }
}

</mosaic_0001>

<llo_original>
// kernel: tpu_custom_call.1
$region0: #{tpu_custom_call.1}
  #allocation0 [shape = 'u32[]', space=smem, size = 0x4, offset = 0x4, fixed_abs, tag = 'smem constant byte address 0x4 - core index']
  #allocation1 [shape = 'u32[144,128]{1,0:T(1,128)}', space=vmem, size = 0x12000, scoped, tag = 'internal scratch']
  %s0 = inlined_call_operand.vmem [shape: f32[2,6,10], index: 0, kind: input, shape index: {}]
  %s1 = inlined_call_operand.vmem [shape: f32[2,6], index: 1, kind: input, shape index: {}]
  %s2 = inlined_call_operand.vmem [shape: f32[2,6,32], index: 2, kind: input, shape index: {}]
  %s3 = inlined_call_operand.vmem [shape: f32[4,32], index: 3, kind: input, shape index: {}]
  %s4 = inlined_call_operand.vmem [shape: f32[24,24], index: 4, kind: input, shape index: {}]
  %s5 = inlined_call_operand.vmem [shape: f32[10,32], index: 5, kind: input, shape index: {}]
  %s6 = inlined_call_operand.vmem [shape: f32[1,32], index: 6, kind: input, shape index: {}]
  %s7 = inlined_call_operand.vmem [shape: f32[2,32,96], index: 7, kind: input, shape index: {}]
  %s8 = inlined_call_operand.vmem [shape: f32[2,1,96], index: 8, kind: input, shape index: {}]
  %s9 = inlined_call_operand.vmem [shape: f32[2,32,32], index: 9, kind: input, shape index: {}]
  %s10 = inlined_call_operand.vmem [shape: f32[2,1,32], index: 10, kind: input, shape index: {}]
  %s11 = inlined_call_operand.vmem [shape: f32[2,1,32], index: 11, kind: input, shape index: {}]
  %s12 = inlined_call_operand.vmem [shape: f32[2,1,32], index: 12, kind: input, shape index: {}]
  %s13 = inlined_call_operand.vmem [shape: f32[2,1,32], index: 13, kind: input, shape index: {}]
  %s14 = inlined_call_operand.vmem [shape: f32[2,1,32], index: 14, kind: input, shape index: {}]
  %s15 = inlined_call_operand.vmem [shape: f32[2,32,128], index: 15, kind: input, shape index: {}]
  %s16 = inlined_call_operand.vmem [shape: f32[2,1,128], index: 16, kind: input, shape index: {}]
  %s17 = inlined_call_operand.vmem [shape: f32[2,128,32], index: 17, kind: input, shape index: {}]
  %s18 = inlined_call_operand.vmem [shape: f32[2,1,32], index: 18, kind: input, shape index: {}]
  %s19 = inlined_call_operand.vmem [shape: f32[32,32], index: 19, kind: input, shape index: {}]
  %s20 = inlined_call_operand.vmem [shape: f32[1,32], index: 20, kind: input, shape index: {}]
  %s21 = inlined_call_operand.vmem [shape: f32[32,96], index: 21, kind: input, shape index: {}]
  %s22 = inlined_call_operand.vmem [shape: f32[1,96], index: 22, kind: input, shape index: {}]
  %s23 = inlined_call_operand.vmem [shape: f32[32,96], index: 23, kind: input, shape index: {}]
  %s24 = inlined_call_operand.vmem [shape: f32[1,96], index: 24, kind: input, shape index: {}]
  %s25 = inlined_call_operand.vmem [shape: f32[32,6], index: 25, kind: input, shape index: {}]
  %s26 = inlined_call_operand.vmem [shape: f32[1,6], index: 26, kind: input, shape index: {}]
  %s27 = inlined_call_operand.hbm [shape: f32[2,128], index: 27, kind: output, shape index: {0}]
  %s28 = inlined_call_operand.hbm [shape: f32[2,192], index: 28, kind: output, shape index: {1}]
  %29 = xla_tuple %s27, %s28
  %s30 = sld [smem:[#allocation0]]
  $region126: #{tpu_custom_call.1} parent=0
    _
  %s32 = ssub.s32 1, %s30
  %s33 = scalar_select 0, %s32, %s30
  $region1: #{tpu_custom_call.1} parent=0
    #allocation2 [shape = 'u8[1024]{0}', space=vmem, size = 0x400, scoped, tag = 'output window, operand 0, single buffered']
    #allocation3 [shape = 's32[1]{0}', space=sflag, size = 0x4, scoped, tag = 'scoped memory for tpu_custom_call.1']
    #allocation4 [shape = 'u8[2048]{0}', space=vmem, size = 0x800, scoped, tag = 'output window, operand 1, single buffered']
    #allocation5 [shape = 's32[1]{0}', space=sflag, size = 0x4, scoped, tag = 'scoped memory for tpu_custom_call.1']
    %34 = vsyncpa [#allocation3], 0
    %35 = vsyncpa [#allocation5], 0
    // Predicated region
    $region2: #{tpu_custom_call.1} parent=1 // pred_check
      _
    $region3: #{tpu_custom_call.1} parent=1 // pred_check_branch
      %37 = sbr.rel (0) target = $region5
    $region4: #{tpu_custom_call.1} parent=1 // pred_region
      _
    $region5: #{tpu_custom_call.1} parent=1 // pred_fallthru
      _
    // Predicated region
    $region6: #{tpu_custom_call.1} parent=1 // pred_check
      _
    $region7: #{tpu_custom_call.1} parent=1 // pred_check_branch
      %39 = sbr.rel (0) target = $region9
    $region8: #{tpu_custom_call.1} parent=1 // pred_region
      _
    $region9: #{tpu_custom_call.1} parent=1 // pred_fallthru
      _
    // Predicated region
    $region10: #{tpu_custom_call.1} parent=1 // pred_check
      _
    $region11: #{tpu_custom_call.1} parent=1 // pred_check_branch
      %41 = sbr.rel (0) target = $region13
    $region12: #{tpu_custom_call.1} parent=1 // pred_region
      _
    $region13: #{tpu_custom_call.1} parent=1 // pred_fallthru
      _
    // Predicated region
    $region14: #{tpu_custom_call.1} parent=1 // pred_check
      _
    $region15: #{tpu_custom_call.1} parent=1 // pred_check_branch
      %43 = sbr.rel (0) target = $region17
    $region16: #{tpu_custom_call.1} parent=1 // pred_region
      _
    $region17: #{tpu_custom_call.1} parent=1 // pred_fallthru
      _
    // Predicated region
    $region18: #{tpu_custom_call.1} parent=1 // pred_check
      _
    $region19: #{tpu_custom_call.1} parent=1 // pred_check_branch
      %45 = sbr.rel (0) target = $region21
    $region20: #{tpu_custom_call.1} parent=1 // pred_region
      _
    $region21: #{tpu_custom_call.1} parent=1 // pred_fallthru
      _
    // Predicated region
    $region22: #{tpu_custom_call.1} parent=1 // pred_check
      _
    $region23: #{tpu_custom_call.1} parent=1 // pred_check_branch
      %47 = sbr.rel (0) target = $region25
    $region24: #{tpu_custom_call.1} parent=1 // pred_region
      _
    $region25: #{tpu_custom_call.1} parent=1 // pred_fallthru
      _
    // Predicated region
    $region26: #{tpu_custom_call.1} parent=1 // pred_check
      _
    $region27: #{tpu_custom_call.1} parent=1 // pred_check_branch
      %49 = sbr.rel (0) target = $region29
    $region28: #{tpu_custom_call.1} parent=1 // pred_region
      _
    $region29: #{tpu_custom_call.1} parent=1 // pred_fallthru
      _
    // Predicated region
    $region30: #{tpu_custom_call.1} parent=1 // pred_check
      _
    $region31: #{tpu_custom_call.1} parent=1 // pred_check_branch
      %51 = sbr.rel (0) target = $region33
    $region32: #{tpu_custom_call.1} parent=1 // pred_region
      _
    $region33: #{tpu_custom_call.1} parent=1 // pred_fallthru
      _
    // Predicated region
    $region34: #{tpu_custom_call.1} parent=1 // pred_check
      _
    $region35: #{tpu_custom_call.1} parent=1 // pred_check_branch
      %53 = sbr.rel (0) target = $region37
    $region36: #{tpu_custom_call.1} parent=1 // pred_region
      _
    $region37: #{tpu_custom_call.1} parent=1 // pred_fallthru
      _
    // Predicated region
    $region38: #{tpu_custom_call.1} parent=1 // pred_check
      _
    $region39: #{tpu_custom_call.1} parent=1 // pred_check_branch
      %55 = sbr.rel (0) target = $region41
    $region40: #{tpu_custom_call.1} parent=1 // pred_region
      _
    $region41: #{tpu_custom_call.1} parent=1 // pred_fallthru
      _
    // Predicated region
    $region42: #{tpu_custom_call.1} parent=1 // pred_check
      _
    $region43: #{tpu_custom_call.1} parent=1 // pred_check_branch
      %57 = sbr.rel (0) target = $region45
    $region44: #{tpu_custom_call.1} parent=1 // pred_region
      _
    $region45: #{tpu_custom_call.1} parent=1 // pred_fallthru
      _
    // Predicated region
    $region46: #{tpu_custom_call.1} parent=1 // pred_check
      _
    $region47: #{tpu_custom_call.1} parent=1 // pred_check_branch
      %59 = sbr.rel (0) target = $region49
    $region48: #{tpu_custom_call.1} parent=1 // pred_region
      _
    $region49: #{tpu_custom_call.1} parent=1 // pred_fallthru
      _
    // Predicated region
    $region50: #{tpu_custom_call.1} parent=1 // pred_check
      _
    $region51: #{tpu_custom_call.1} parent=1 // pred_check_branch
      %61 = sbr.rel (0) target = $region53
    $region52: #{tpu_custom_call.1} parent=1 // pred_region
      _
    $region53: #{tpu_custom_call.1} parent=1 // pred_fallthru
      _
    // Predicated region
    $region54: #{tpu_custom_call.1} parent=1 // pred_check
      _
    $region55: #{tpu_custom_call.1} parent=1 // pred_check_branch
      %63 = sbr.rel (0) target = $region57
    $region56: #{tpu_custom_call.1} parent=1 // pred_region
      _
    $region57: #{tpu_custom_call.1} parent=1 // pred_fallthru
      _
    // Predicated region
    $region58: #{tpu_custom_call.1} parent=1 // pred_check
      _
    $region59: #{tpu_custom_call.1} parent=1 // pred_check_branch
      %65 = sbr.rel (0) target = $region61
    $region60: #{tpu_custom_call.1} parent=1 // pred_region
      _
    $region61: #{tpu_custom_call.1} parent=1 // pred_fallthru
      _
    // Predicated region
    $region62: #{tpu_custom_call.1} parent=1 // pred_check
      _
    $region63: #{tpu_custom_call.1} parent=1 // pred_check_branch
      %67 = sbr.rel (0) target = $region65
    $region64: #{tpu_custom_call.1} parent=1 // pred_region
      _
    $region65: #{tpu_custom_call.1} parent=1 // pred_fallthru
      _
    // Predicated region
    $region66: #{tpu_custom_call.1} parent=1 // pred_check
      _
    $region67: #{tpu_custom_call.1} parent=1 // pred_check_branch
      %69 = sbr.rel (0) target = $region69
    $region68: #{tpu_custom_call.1} parent=1 // pred_region
      _
    $region69: #{tpu_custom_call.1} parent=1 // pred_fallthru
      _
    // Predicated region
    $region70: #{tpu_custom_call.1} parent=1 // pred_check
      _
    $region71: #{tpu_custom_call.1} parent=1 // pred_check_branch
      %71 = sbr.rel (0) target = $region73
    $region72: #{tpu_custom_call.1} parent=1 // pred_region
      _
    $region73: #{tpu_custom_call.1} parent=1 // pred_fallthru
      _
    // Predicated region
    $region74: #{tpu_custom_call.1} parent=1 // pred_check
      _
    $region75: #{tpu_custom_call.1} parent=1 // pred_check_branch
      %73 = sbr.rel (0) target = $region77
    $region76: #{tpu_custom_call.1} parent=1 // pred_region
      _
    $region77: #{tpu_custom_call.1} parent=1 // pred_fallthru
      _
    // Predicated region
    $region78: #{tpu_custom_call.1} parent=1 // pred_check
      _
    $region79: #{tpu_custom_call.1} parent=1 // pred_check_branch
      %75 = sbr.rel (0) target = $region81
    $region80: #{tpu_custom_call.1} parent=1 // pred_region
      _
    $region81: #{tpu_custom_call.1} parent=1 // pred_fallthru
      _
    // Predicated region
    $region82: #{tpu_custom_call.1} parent=1 // pred_check
      _
    $region83: #{tpu_custom_call.1} parent=1 // pred_check_branch
      %77 = sbr.rel (0) target = $region85
    $region84: #{tpu_custom_call.1} parent=1 // pred_region
      _
    $region85: #{tpu_custom_call.1} parent=1 // pred_fallthru
      _
    // Predicated region
    $region86: #{tpu_custom_call.1} parent=1 // pred_check
      _
    $region87: #{tpu_custom_call.1} parent=1 // pred_check_branch
      %79 = sbr.rel (0) target = $region89
    $region88: #{tpu_custom_call.1} parent=1 // pred_region
      _
    $region89: #{tpu_custom_call.1} parent=1 // pred_fallthru
      _
    // Predicated region
    $region90: #{tpu_custom_call.1} parent=1 // pred_check
      _
    $region91: #{tpu_custom_call.1} parent=1 // pred_check_branch
      %81 = sbr.rel (0) target = $region93
    $region92: #{tpu_custom_call.1} parent=1 // pred_region
      _
    $region93: #{tpu_custom_call.1} parent=1 // pred_fallthru
      _
    // Predicated region
    $region94: #{tpu_custom_call.1} parent=1 // pred_check
      _
    $region95: #{tpu_custom_call.1} parent=1 // pred_check_branch
      %83 = sbr.rel (0) target = $region97
    $region96: #{tpu_custom_call.1} parent=1 // pred_region
      _
    $region97: #{tpu_custom_call.1} parent=1 // pred_fallthru
      _
    // Predicated region
    $region98: #{tpu_custom_call.1} parent=1 // pred_check
      _
    $region99: #{tpu_custom_call.1} parent=1 // pred_check_branch
      %85 = sbr.rel (0) target = $region101
    $region100: #{tpu_custom_call.1} parent=1 // pred_region
      _
    $region101: #{tpu_custom_call.1} parent=1 // pred_fallthru
      _
    // Predicated region
    $region102: #{tpu_custom_call.1} parent=1 // pred_check
      _
    $region103: #{tpu_custom_call.1} parent=1 // pred_check_branch
      %87 = sbr.rel (0) target = $region105
    $region104: #{tpu_custom_call.1} parent=1 // pred_region
      _
    $region105: #{tpu_custom_call.1} parent=1 // pred_fallthru
      _
    // Predicated region
    $region106: #{tpu_custom_call.1} parent=1 // pred_check
      _
    $region107: #{tpu_custom_call.1} parent=1 // pred_check_branch
      %89 = sbr.rel (0) target = $region109
    $region108: #{tpu_custom_call.1} parent=1 // pred_region
      _
    $region109: #{tpu_custom_call.1} parent=1 // pred_fallthru
      _
    %v90 = vld [vmem:[%s0] sm:$0x3f]
    %v91 = vld [vmem:[%s0 + $0x8] sm:$0x3f]
    %v94 = vcombine.high %v90, %v90
    %v96 = vunpack.c.l.s4 1983009808
    %v97 = vunpack.c.0.s8 %v96
    %v98 = vlaneseq
    %v99 = vshrl.u32 %v98, 7
    %v100 = vsub.s32 %v97, %v99
    %v101 = vrot.slane %v90, %v100
    %v103 = vunpack.c.l.s4 1983009808
    %v104 = vunpack.c.0.s8 %v103
    %v105 = vlaneseq
    %v106 = vshrl.u32 %v105, 7
    %v107 = vsub.s32 %v104, %v106
    %v108 = vrot.slane %v94, %v107
    %v109 = vcombine.high %v101, %v101
    %v110 = vcombine.high %v91, %v91
    %v112 = vunpack.c.l.s4 1983009808
    %v113 = vunpack.c.0.s8 %v112
    %v114 = vlaneseq
    %v115 = vshrl.u32 %v114, 7
    %v116 = vsub.s32 %v113, %v115
    %v117 = vrot.slane %v91, %v116
    %v119 = vunpack.c.l.s4 1983009808
    %v120 = vunpack.c.0.s8 %v119
    %v121 = vlaneseq
    %v122 = vshrl.u32 %v121, 7
    %v123 = vsub.s32 %v120, %v122
    %v124 = vrot.slane %v110, %v123
    %v125 = vcombine.high %v117, %v117
    %v126 = vld [vmem:[%s5] sm:$0xff]
    %v127 = vld [vmem:[%s5 + $0x8] sm:$0x3]
    %v128 = vld [vmem:[%s6] sm:$0x1]
    %v130 = vlaneseq
    %v131 = vshrl.u32 %v130, 7
    %v132 = vsub.s32 0, %v131
    %v133 = vrot.slane %v128, %v132
    %v135 = vcombine.low %v101, %v109
    %v136 = vcombine.low %v108, %v117
    %v138 = vunpack.c.l.s4 1983009808
    %v139 = vunpack.c.0.s8 %v138
    %v140 = vlaneseq
    %v141 = vshrl.u32 %v140, 7
    %v142 = vsub.s32 %v139, %v141
    %v143 = vrot.slane %v135, %v142
    %v145 = vunpack.c.l.s4 1983009808
    %v146 = vunpack.c.0.s8 %v145
    %v147 = vlaneseq
    %v148 = vshrl.u32 %v147, 7
    %v149 = vsub.s32 %v146, %v148
    %v150 = vrot.slane %v136, %v149
    %v151 = vcombine.low %v143, %v150
    %v152 = vcombine.low %v125, %v124
    %v154 = vunpack.c.l.s4 1983009808
    %v155 = vunpack.c.0.s8 %v154
    %v156 = vlaneseq
    %v157 = vshrl.u32 %v156, 7
    %v158 = vsub.s32 %v155, %v157
    %v159 = vrot.slane %v152, %v158
    %vm160 = vcmask 80896
    %v161 = vsel %vm160, %v151, 0
    %v163 = vsel %vm160, %v159, 0
    %vm165 = vcmask 1041408
    %v167 = vsel %vm165, %v127, 0
    %169 = vmatprep.subr.mxu0 0.0
    %170 = vmatpush1.msra.mxu0 0.0
    %171 = vmatprep.subr.mxu0 0.0
    %172 = vmatpush1.msra.mxu0 0.0
    %173 = vmatprep.subr.mxu0 0.0
    %174 = vmatpush1.msra.mxu0 0.0
    %175 = vmatprep.subr.mxu0 0.0
    %176 = vmatpush1.msra.mxu0 0.0
    %177 = vmatprep.subr.mxu0 0.0
    %178 = vmatpush1.msra.mxu0 0.0
    %179 = vmatprep.subr.mxu0 0.0
    %180 = vmatpush1.msra.mxu0 0.0
    %181 = vmatprep.subr.mxu0 0.0
    %182 = vmatpush1.msra.mxu0 0.0
    %183 = vmatprep.subr.mxu0 0.0
    %184 = vmatpush1.msra.mxu0 0.0
    %185 = vmatprep.subr.mxu0 0.0
    %186 = vmatpush1.msra.mxu0 0.0
    %187 = vmatprep.subr.mxu0 0.0
    %188 = vmatpush1.msra.mxu0 0.0
    %189 = vmatprep.subr.mxu0 0.0
    %190 = vmatpush1.msra.mxu0 0.0
    %191 = vmatprep.subr.mxu0 0.0
    %192 = vmatpush1.msra.mxu0 0.0
    %193 = vmatprep.subr.mxu0 0.0
    %194 = vmatpush1.msra.mxu0 0.0
    %195 = vmatprep.subr.mxu0 0.0
    %196 = vmatpush1.msra.mxu0 0.0
    %197 = vmatprep.subr.mxu0 0.0
    %198 = vmatpush1.msra.mxu0 %v167
    %199 = vmatprep.subr.mxu0 0.0
    %200 = vmatpush1.msra.mxu0 %v126
    %201 = vmatprep.subr.mxu0 0.0
    %202 = vmatpush2.msra.mxu0 0.0
    %203 = vmatprep.subr.mxu0 0.0
    %204 = vmatpush2.msra.mxu0 0.0
    %205 = vmatprep.subr.mxu0 0.0
    %206 = vmatpush2.msra.mxu0 0.0
    %207 = vmatprep.subr.mxu0 0.0
    %208 = vmatpush2.msra.mxu0 0.0
    %209 = vmatprep.subr.mxu0 0.0
    %210 = vmatpush2.msra.mxu0 0.0
    %211 = vmatprep.subr.mxu0 0.0
    %212 = vmatpush2.msra.mxu0 0.0
    %213 = vmatprep.subr.mxu0 0.0
    %214 = vmatpush2.msra.mxu0 0.0
    %215 = vmatprep.subr.mxu0 0.0
    %216 = vmatpush2.msra.mxu0 0.0
    %217 = vmatprep.subr.mxu0 0.0
    %218 = vmatpush2.msra.mxu0 0.0
    %219 = vmatprep.subr.mxu0 0.0
    %220 = vmatpush2.msra.mxu0 0.0
    %221 = vmatprep.subr.mxu0 0.0
    %222 = vmatpush2.msra.mxu0 0.0
    %223 = vmatprep.subr.mxu0 0.0
    %224 = vmatpush2.msra.mxu0 0.0
    %225 = vmatprep.subr.mxu0 0.0
    %226 = vmatpush2.msra.mxu0 0.0
    %227 = vmatprep.subr.mxu0 0.0
    %228 = vmatpush2.msra.mxu0 0.0
    %229 = vmatprep.subr.mxu0 0.0
    %230 = vmatpush2.msra.mxu0 0.0
    %231 = vmatprep.subr.mxu0 0.0
    %232 = vmatpush2.msra.mxu0 0.0
    %233 = vmatprep.mubr.f32.mxu0 0.0
    %234 = vmatmul.mubr.f32.gmra.mxu0 %v161
    %v235 = vpop.f32.mrf.mxu0
    %v236 = vadd.f32 %v133, %v235
    %v237 = vpop.f32.mrf.mxu0
    %238 = vmatprep.mubr.f32.mxu0 0.0
    %239 = vmatmul.mubr.f32.gmra.mxu0 %v163
    %v240 = vpop.f32.mrf.mxu0
    %v241 = vadd.f32 %v133, %v240
    %v242 = vpop.f32.mrf.mxu0
    %243 = vdwg.mxu0
    %v244 = vmax.f32 %v236, 0.0
    %v245 = vmax.f32 %v241, 0.0
    %v246 = vld [vmem:[%s1] sm:$0x3]
    %vm247 = vcmp.gt.f32.partialorder %v246, 0.0
    %v248 = vsel %vm247, 0.0, -1e+30
    %250 = vrot.lane.b32.xlu0 %v248, 6
    %v251 = vpop.permute.xlu0 %250
    %253 = vrot.lane.b32.xlu0 %v248, 12
    %v254 = vpop.permute.xlu0 %253
    %256 = vrot.lane.b32.xlu0 %v248, 18
    %v257 = vpop.permute.xlu0 %256
    %vm259 = vcmask 48128
    %v260 = vsel %vm259, %v248, %v251
    %vm261 = vcmask 97280
    %v262 = vsel %vm261, %v260, %v254
    %vm263 = vcmask 146432
    %v264 = vsel %vm263, %v262, %v257
    %v267 = vunpack.c.l.s4 1966171168
    %v268 = vunpack.c.0.s8 %v267
    %v269 = vlaneseq
    %v270 = vshrl.u32 %v269, 7
    %v271 = vsub.s32 %v268, %v270
    %v272 = vrot.slane %v264, %v271
    %v273 = vcombine.high %v272, %v272
    %v275 = vunpack.c.l.s4 1966171168
    %v276 = vunpack.c.0.s8 %v275
    %v277 = vlaneseq
    %v278 = vshrl.u32 %v277, 7
    %v279 = vsub.s32 %v276, %v278
    %v280 = vrot.slane %v272, %v279
    %v282 = vunpack.c.l.s4 1966171168
    %v283 = vunpack.c.0.s8 %v282
    %v284 = vlaneseq
    %v285 = vshrl.u32 %v284, 7
    %v286 = vsub.s32 %v283, %v285
    %v287 = vrot.slane %v273, %v286
    %v288 = vld [vmem:[%s3] sm:$0xf]
    %v289 = vld [vmem:[%s4] sm:$0xff]
    %v290 = vld [vmem:[%s4 + $0x8] sm:$0xff]
    %v291 = vld [vmem:[%s4 + $0x10] sm:$0xff]
    %v292 = vld [vmem:[%s7] sm:$0xff]
    %v293 = vld [vmem:[%s7 + $0x8] sm:$0xff]
    %v294 = vld [vmem:[%s7 + $0x10] sm:$0xff]
    %v295 = vld [vmem:[%s7 + $0x18] sm:$0xff]
    %v296 = vld [vmem:[%s8] sm:$0x1]
    %v298 = vlaneseq
    %v299 = vshrl.u32 %v298, 7
    %v300 = vsub.s32 0, %v299
    %v301 = vrot.slane %v296, %v300
    %vm303 = vcmask 261120
    %v305 = vsel %vm303, %v244, 0
    %v308 = vsel %vm303, %v245, 0
    %310 = vmatprep.subr.mxu0 0.0
    %311 = vmatpush1.msra.mxu0 0.0
    %312 = vmatprep.subr.mxu0 0.0
    %313 = vmatpush1.msra.mxu0 0.0
    %314 = vmatprep.subr.mxu0 0.0
    %315 = vmatpush1.msra.mxu0 0.0
    %316 = vmatprep.subr.mxu0 0.0
    %317 = vmatpush1.msra.mxu0 0.0
    %318 = vmatprep.subr.mxu0 0.0
    %319 = vmatpush1.msra.mxu0 0.0
    %320 = vmatprep.subr.mxu0 0.0
    %321 = vmatpush1.msra.mxu0 0.0
    %322 = vmatprep.subr.mxu0 0.0
    %323 = vmatpush1.msra.mxu0 0.0
    %324 = vmatprep.subr.mxu0 0.0
    %325 = vmatpush1.msra.mxu0 0.0
    %326 = vmatprep.subr.mxu0 0.0
    %327 = vmatpush1.msra.mxu0 0.0
    %328 = vmatprep.subr.mxu0 0.0
    %329 = vmatpush1.msra.mxu0 0.0
    %330 = vmatprep.subr.mxu0 0.0
    %331 = vmatpush1.msra.mxu0 0.0
    %332 = vmatprep.subr.mxu0 0.0
    %333 = vmatpush1.msra.mxu0 0.0
    %334 = vmatprep.subr.mxu0 0.0
    %335 = vmatpush1.msra.mxu0 %v295
    %336 = vmatprep.subr.mxu0 0.0
    %337 = vmatpush1.msra.mxu0 %v294
    %338 = vmatprep.subr.mxu0 0.0
    %339 = vmatpush1.msra.mxu0 %v293
    %340 = vmatprep.subr.mxu0 0.0
    %341 = vmatpush1.msra.mxu0 %v292
    %342 = vmatprep.subr.mxu0 0.0
    %343 = vmatpush2.msra.mxu0 0.0
    %344 = vmatprep.subr.mxu0 0.0
    %345 = vmatpush2.msra.mxu0 0.0
    %346 = vmatprep.subr.mxu0 0.0
    %347 = vmatpush2.msra.mxu0 0.0
    %348 = vmatprep.subr.mxu0 0.0
    %349 = vmatpush2.msra.mxu0 0.0
    %350 = vmatprep.subr.mxu0 0.0
    %351 = vmatpush2.msra.mxu0 0.0
    %352 = vmatprep.subr.mxu0 0.0
    %353 = vmatpush2.msra.mxu0 0.0
    %354 = vmatprep.subr.mxu0 0.0
    %355 = vmatpush2.msra.mxu0 0.0
    %356 = vmatprep.subr.mxu0 0.0
    %357 = vmatpush2.msra.mxu0 0.0
    %358 = vmatprep.subr.mxu0 0.0
    %359 = vmatpush2.msra.mxu0 0.0
    %360 = vmatprep.subr.mxu0 0.0
    %361 = vmatpush2.msra.mxu0 0.0
    %362 = vmatprep.subr.mxu0 0.0
    %363 = vmatpush2.msra.mxu0 0.0
    %364 = vmatprep.subr.mxu0 0.0
    %365 = vmatpush2.msra.mxu0 0.0
    %366 = vmatprep.subr.mxu0 0.0
    %367 = vmatpush2.msra.mxu0 0.0
    %368 = vmatprep.subr.mxu0 0.0
    %369 = vmatpush2.msra.mxu0 0.0
    %370 = vmatprep.subr.mxu0 0.0
    %371 = vmatpush2.msra.mxu0 0.0
    %372 = vmatprep.subr.mxu0 0.0
    %373 = vmatpush2.msra.mxu0 0.0
    %374 = vmatprep.mubr.f32.mxu0 0.0
    %375 = vmatmul.mubr.f32.gmra.mxu0 %v305
    %v376 = vpop.f32.mrf.mxu0
    %v377 = vadd.f32 %v301, %v376
    %v378 = vpop.f32.mrf.mxu0
    %379 = vmatprep.mubr.f32.mxu0 0.0
    %380 = vmatmul.mubr.f32.gmra.mxu0 %v308
    %v381 = vpop.f32.mrf.mxu0
    %v382 = vadd.f32 %v301, %v381
    %v383 = vpop.f32.mrf.mxu0
    %384 = vdwg.mxu0
    %v387 = vcombine.high %v377, %v377
    %v389 = vunpack.c.l.s4 1983009808
    %v390 = vunpack.c.0.s8 %v389
    %v391 = vlaneseq
    %v392 = vshrl.u32 %v391, 7
    %v393 = vsub.s32 %v390, %v392
    %v394 = vrot.slane %v377, %v393
    %v396 = vunpack.c.l.s4 1983009808
    %v397 = vunpack.c.0.s8 %v396
    %v398 = vlaneseq
    %v399 = vshrl.u32 %v398, 7
    %v400 = vsub.s32 %v397, %v399
    %v401 = vrot.slane %v387, %v400
    %v402 = vcombine.high %v394, %v394
    %v403 = vcombine.high %v401, %v401
    %v405 = vunpack.c.l.s4 1983009808
    %v406 = vunpack.c.0.s8 %v405
    %v407 = vlaneseq
    %v408 = vshrl.u32 %v407, 7
    %v409 = vsub.s32 %v406, %v408
    %v410 = vrot.slane %v382, %v409
    %v411 = vcombine.high %v410, %v410
    %v420 = vunpack.c.l.s4 1966171168
    %v421 = vunpack.c.0.s8 %v420
    %v422 = vlaneseq
    %v423 = vshrl.u32 %v422, 7
    %v424 = vsub.s32 %v421, %v423
    %v425 = vrot.slane %v288, %v424
    %v426 = vcombine.high %v425, %v425
    %v428 = vunpack.c.l.s4 1966171168
    %v429 = vunpack.c.0.s8 %v428
    %v430 = vlaneseq
    %v431 = vshrl.u32 %v430, 7
    %v432 = vsub.s32 %v429, %v431
    %v433 = vrot.slane %v425, %v432
    %v435 = vunpack.c.l.s4 1966171168
    %v436 = vunpack.c.0.s8 %v435
    %v437 = vlaneseq
    %v438 = vshrl.u32 %v437, 7
    %v439 = vsub.s32 %v436, %v438
    %v440 = vrot.slane %v426, %v439
    %v441 = vcombine.high %v433, %v433
    %v442 = vcombine.high %v440, %v440
    %v443 = vlaneseq
    %v444 = vshrl.u32 %v443, 7
    %v445 = vsub.s32 0, %v444
    %v446 = vrot.slane %v433, %v445
    %v447 = vlaneseq
    %v448 = vshrl.u32 %v447, 7
    %v449 = vsub.s32 0, %v448
    %v450 = vrot.slane %v440, %v449
    %v451 = vlaneseq
    %v452 = vshrl.u32 %v451, 7
    %v453 = vsub.s32 0, %v452
    %v454 = vrot.slane %v441, %v453
    %v455 = vlaneseq
    %v456 = vshrl.u32 %v455, 7
    %v457 = vsub.s32 0, %v456
    %v458 = vrot.slane %v442, %v457
    %v459 = vcombine.high %v446, %v446
    %v461 = vunpack.c.l.s4 1983009808
    %v462 = vunpack.c.0.s8 %v461
    %v463 = vlaneseq
    %v464 = vshrl.u32 %v463, 7
    %v465 = vsub.s32 %v462, %v464
    %v466 = vrot.slane %v446, %v465
    %v468 = vunpack.c.l.s4 1983009808
    %v469 = vunpack.c.0.s8 %v468
    %v470 = vlaneseq
    %v471 = vshrl.u32 %v470, 7
    %v472 = vsub.s32 %v469, %v471
    %v473 = vrot.slane %v459, %v472
    %v474 = vcombine.high %v466, %v466
    %v475 = vcombine.high %v450, %v450
    %v477 = vunpack.c.l.s4 1983009808
    %v478 = vunpack.c.0.s8 %v477
    %v479 = vlaneseq
    %v480 = vshrl.u32 %v479, 7
    %v481 = vsub.s32 %v478, %v480
    %v482 = vrot.slane %v450, %v481
    %v484 = vunpack.c.l.s4 1983009808
    %v485 = vunpack.c.0.s8 %v484
    %v486 = vlaneseq
    %v487 = vshrl.u32 %v486, 7
    %v488 = vsub.s32 %v485, %v487
    %v489 = vrot.slane %v475, %v488
    %v490 = vcombine.high %v482, %v482
    %v491 = vcombine.high %v454, %v454
    %v493 = vunpack.c.l.s4 1983009808
    %v494 = vunpack.c.0.s8 %v493
    %v495 = vlaneseq
    %v496 = vshrl.u32 %v495, 7
    %v497 = vsub.s32 %v494, %v496
    %v498 = vrot.slane %v454, %v497
    %v500 = vunpack.c.l.s4 1983009808
    %v501 = vunpack.c.0.s8 %v500
    %v502 = vlaneseq
    %v503 = vshrl.u32 %v502, 7
    %v504 = vsub.s32 %v501, %v503
    %v505 = vrot.slane %v491, %v504
    %v506 = vcombine.high %v498, %v498
    %v507 = vcombine.high %v458, %v458
    %v509 = vunpack.c.l.s4 1983009808
    %v510 = vunpack.c.0.s8 %v509
    %v511 = vlaneseq
    %v512 = vshrl.u32 %v511, 7
    %v513 = vsub.s32 %v510, %v512
    %v514 = vrot.slane %v458, %v513
    %v516 = vunpack.c.l.s4 1983009808
    %v517 = vunpack.c.0.s8 %v516
    %v518 = vlaneseq
    %v519 = vshrl.u32 %v518, 7
    %v520 = vsub.s32 %v517, %v519
    %v521 = vrot.slane %v507, %v520
    %v522 = vcombine.high %v514, %v514
    %523 = vrot.lane.b32.xlu0 %v466, 32
    %v524 = vpop.permute.xlu0 %523
    %525 = vrot.lane.b32.xlu0 %v474, 32
    %v526 = vpop.permute.xlu0 %525
    %527 = vrot.lane.b32.xlu0 %v473, 32
    %v528 = vpop.permute.xlu0 %527
    %529 = vrot.lane.b32.xlu0 %v482, 32
    %v530 = vpop.permute.xlu0 %529
    %531 = vrot.lane.b32.xlu0 %v490, 32
    %v532 = vpop.permute.xlu0 %531
    %533 = vrot.lane.b32.xlu0 %v489, 32
    %v534 = vpop.permute.xlu0 %533
    %535 = vrot.lane.b32.xlu0 %v498, 32
    %v536 = vpop.permute.xlu0 %535
    %537 = vrot.lane.b32.xlu0 %v506, 32
    %v538 = vpop.permute.xlu0 %537
    %539 = vrot.lane.b32.xlu0 %v505, 32
    %v540 = vpop.permute.xlu0 %539
    %541 = vrot.lane.b32.xlu0 %v514, 32
    %v542 = vpop.permute.xlu0 %541
    %543 = vrot.lane.b32.xlu0 %v522, 32
    %v544 = vpop.permute.xlu0 %543
    %545 = vrot.lane.b32.xlu0 %v521, 32
    %v546 = vpop.permute.xlu0 %545
    %v559 = vmul.f32 %v394, %v524
    %v560 = vmul.f32 %v402, %v526
    %v561 = vmul.f32 %v401, %v528
    %v562 = vmul.f32 %v394, %v530
    %v563 = vmul.f32 %v402, %v532
    %v564 = vmul.f32 %v401, %v534
    %v565 = vmul.f32 %v394, %v536
    %v566 = vmul.f32 %v402, %v538
    %v567 = vmul.f32 %v401, %v540
    %v568 = vmul.f32 %v394, %v542
    %v569 = vmul.f32 %v402, %v544
    %v570 = vmul.f32 %v401, %v546
    %v571 = vmul.f32 %v403, %v524
    %v572 = vmul.f32 %v410, %v526
    %v573 = vmul.f32 %v411, %v528
    %v574 = vmul.f32 %v403, %v530
    %v575 = vmul.f32 %v410, %v532
    %v576 = vmul.f32 %v411, %v534
    %v577 = vmul.f32 %v403, %v536
    %v578 = vmul.f32 %v410, %v538
    %v579 = vmul.f32 %v411, %v540
    %v580 = vmul.f32 %v403, %v542
    %v581 = vmul.f32 %v410, %v544
    %v582 = vmul.f32 %v411, %v546
    %583 = vrot.lane.b32.xlu0 %v466, 64
    %v584 = vpop.permute.xlu0 %583
    %585 = vrot.lane.b32.xlu0 %v474, 64
    %v586 = vpop.permute.xlu0 %585
    %587 = vrot.lane.b32.xlu0 %v473, 64
    %v588 = vpop.permute.xlu0 %587
    %589 = vrot.lane.b32.xlu0 %v482, 64
    %v590 = vpop.permute.xlu0 %589
    %591 = vrot.lane.b32.xlu0 %v490, 64
    %v592 = vpop.permute.xlu0 %591
    %593 = vrot.lane.b32.xlu0 %v489, 64
    %v594 = vpop.permute.xlu0 %593
    %595 = vrot.lane.b32.xlu0 %v498, 64
    %v596 = vpop.permute.xlu0 %595
    %597 = vrot.lane.b32.xlu0 %v506, 64
    %v598 = vpop.permute.xlu0 %597
    %599 = vrot.lane.b32.xlu0 %v505, 64
    %v600 = vpop.permute.xlu0 %599
    %601 = vrot.lane.b32.xlu0 %v514, 64
    %v602 = vpop.permute.xlu0 %601
    %603 = vrot.lane.b32.xlu0 %v522, 64
    %v604 = vpop.permute.xlu0 %603
    %605 = vrot.lane.b32.xlu0 %v521, 64
    %v606 = vpop.permute.xlu0 %605
    %v619 = vmul.f32 %v394, %v584
    %v620 = vmul.f32 %v402, %v586
    %v621 = vmul.f32 %v401, %v588
    %v622 = vmul.f32 %v394, %v590
    %v623 = vmul.f32 %v402, %v592
    %v624 = vmul.f32 %v401, %v594
    %v625 = vmul.f32 %v394, %v596
    %v626 = vmul.f32 %v402, %v598
    %v627 = vmul.f32 %v401, %v600
    %v628 = vmul.f32 %v394, %v602
    %v629 = vmul.f32 %v402, %v604
    %v630 = vmul.f32 %v401, %v606
    %v631 = vmul.f32 %v403, %v584
    %v632 = vmul.f32 %v410, %v586
    %v633 = vmul.f32 %v411, %v588
    %v634 = vmul.f32 %v403, %v590
    %v635 = vmul.f32 %v410, %v592
    %v636 = vmul.f32 %v411, %v594
    %v637 = vmul.f32 %v403, %v596
    %v638 = vmul.f32 %v410, %v598
    %v639 = vmul.f32 %v411, %v600
    %v640 = vmul.f32 %v403, %v602
    %v641 = vmul.f32 %v410, %v604
    %v642 = vmul.f32 %v411, %v606
    %v643 = vlaneseq
    %v644 = vshrl.u32 %v643, 7
    %v645 = vsub.s32 0, %v644
    %v646 = vrot.slane %v280, %v645
    %v647 = vlaneseq
    %v648 = vshrl.u32 %v647, 7
    %v649 = vsub.s32 0, %v648
    %v650 = vrot.slane %v287, %v649
    %v653 = vcombine.low %v394, %v402
    %v655 = vunpack.c.l.s4 1983009808
    %v656 = vunpack.c.0.s8 %v655
    %v657 = vlaneseq
    %v658 = vshrl.u32 %v657, 7
    %v659 = vsub.s32 %v656, %v658
    %v660 = vrot.slane %v653, %v659
    %v662 = vunpack.c.l.s4 1983009808
    %v663 = vunpack.c.0.s8 %v662
    %v664 = vlaneseq
    %v665 = vshrl.u32 %v664, 7
    %v666 = vsub.s32 %v663, %v665
    %v667 = vrot.slane %v401, %v666
    %v668 = vcombine.low %v660, %v667
    %v681 = vcombine.low %v559, %v560
    %v682 = vcombine.low %v561, %v562
    %v684 = vunpack.c.l.s4 1983009808
    %v685 = vunpack.c.0.s8 %v684
    %v686 = vlaneseq
    %v687 = vshrl.u32 %v686, 7
    %v688 = vsub.s32 %v685, %v687
    %v689 = vrot.slane %v681, %v688
    %v691 = vunpack.c.l.s4 1983009808
    %v692 = vunpack.c.0.s8 %v691
    %v693 = vlaneseq
    %v694 = vshrl.u32 %v693, 7
    %v695 = vsub.s32 %v692, %v694
    %v696 = vrot.slane %v682, %v695
    %v697 = vcombine.low %v689, %v696
    %v698 = vcombine.low %v563, %v564
    %v699 = vcombine.low %v565, %v566
    %v701 = vunpack.c.l.s4 1983009808
    %v702 = vunpack.c.0.s8 %v701
    %v703 = vlaneseq
    %v704 = vshrl.u32 %v703, 7
    %v705 = vsub.s32 %v702, %v704
    %v706 = vrot.slane %v698, %v705
    %v708 = vunpack.c.l.s4 1983009808
    %v709 = vunpack.c.0.s8 %v708
    %v710 = vlaneseq
    %v711 = vshrl.u32 %v710, 7
    %v712 = vsub.s32 %v709, %v711
    %v713 = vrot.slane %v699, %v712
    %v714 = vcombine.low %v706, %v713
    %v715 = vcombine.low %v567, %v568
    %v716 = vcombine.low %v569, %v570
    %v718 = vunpack.c.l.s4 1983009808
    %v719 = vunpack.c.0.s8 %v718
    %v720 = vlaneseq
    %v721 = vshrl.u32 %v720, 7
    %v722 = vsub.s32 %v719, %v721
    %v723 = vrot.slane %v715, %v722
    %v725 = vunpack.c.l.s4 1983009808
    %v726 = vunpack.c.0.s8 %v725
    %v727 = vlaneseq
    %v728 = vshrl.u32 %v727, 7
    %v729 = vsub.s32 %v726, %v728
    %v730 = vrot.slane %v716, %v729
    %v731 = vcombine.low %v723, %v730
    %732 = vrot.lane.b32.xlu0 %v697, 96
    %v733 = vpop.permute.xlu0 %732
    %734 = vrot.lane.b32.xlu0 %v714, 96
    %v735 = vpop.permute.xlu0 %734
    %736 = vrot.lane.b32.xlu0 %v731, 96
    %v737 = vpop.permute.xlu0 %736
    %v738 = vsel %vm303, %v668, 0
    %v740 = vsel %vm303, %v733, 0
    %v742 = vsel %vm303, %v735, 0
    %v744 = vsel %vm303, %v737, 0
    %746 = vmatprep.subr.mxu0 0.0
    %747 = vmatpush1.xpose.msra.mxu0 0.0
    %748 = vmatprep.subr.mxu0 0.0
    %749 = vmatpush1.xpose.msra.mxu0 0.0
    %750 = vmatprep.subr.mxu0 0.0
    %751 = vmatpush1.xpose.msra.mxu0 0.0
    %752 = vmatprep.subr.mxu0 0.0
    %753 = vmatpush1.xpose.msra.mxu0 0.0
    %754 = vmatprep.subr.mxu0 0.0
    %755 = vmatpush1.xpose.msra.mxu0 0.0
    %756 = vmatprep.subr.mxu0 0.0
    %757 = vmatpush1.xpose.msra.mxu0 0.0
    %758 = vmatprep.subr.mxu0 0.0
    %759 = vmatpush1.xpose.msra.mxu0 0.0
    %760 = vmatprep.subr.mxu0 0.0
    %761 = vmatpush1.xpose.msra.mxu0 0.0
    %762 = vmatprep.subr.mxu0 0.0
    %763 = vmatpush1.xpose.msra.mxu0 0.0
    %764 = vmatprep.subr.mxu0 0.0
    %765 = vmatpush1.xpose.msra.mxu0 0.0
    %766 = vmatprep.subr.mxu0 0.0
    %767 = vmatpush1.xpose.msra.mxu0 0.0
    %768 = vmatprep.subr.mxu0 0.0
    %769 = vmatpush1.xpose.msra.mxu0 0.0
    %770 = vmatprep.subr.mxu0 0.0
    %771 = vmatpush1.xpose.msra.mxu0 0.0
    %772 = vmatprep.subr.mxu0 0.0
    %773 = vmatpush1.xpose.msra.mxu0 %v744
    %774 = vmatprep.subr.mxu0 0.0
    %775 = vmatpush1.xpose.msra.mxu0 %v742
    %776 = vmatprep.subr.mxu0 0.0
    %777 = vmatpush1.xpose.msra.mxu0 %v740
    %778 = vmatprep.subr.mxu0 0.0
    %779 = vmatpush2.xpose.msra.mxu0 0.0
    %780 = vmatprep.subr.mxu0 0.0
    %781 = vmatpush2.xpose.msra.mxu0 0.0
    %782 = vmatprep.subr.mxu0 0.0
    %783 = vmatpush2.xpose.msra.mxu0 0.0
    %784 = vmatprep.subr.mxu0 0.0
    %785 = vmatpush2.xpose.msra.mxu0 0.0
    %786 = vmatprep.subr.mxu0 0.0
    %787 = vmatpush2.xpose.msra.mxu0 0.0
    %788 = vmatprep.subr.mxu0 0.0
    %789 = vmatpush2.xpose.msra.mxu0 0.0
    %790 = vmatprep.subr.mxu0 0.0
    %791 = vmatpush2.xpose.msra.mxu0 0.0
    %792 = vmatprep.subr.mxu0 0.0
    %793 = vmatpush2.xpose.msra.mxu0 0.0
    %794 = vmatprep.subr.mxu0 0.0
    %795 = vmatpush2.xpose.msra.mxu0 0.0
    %796 = vmatprep.subr.mxu0 0.0
    %797 = vmatpush2.xpose.msra.mxu0 0.0
    %798 = vmatprep.subr.mxu0 0.0
    %799 = vmatpush2.xpose.msra.mxu0 0.0
    %800 = vmatprep.subr.mxu0 0.0
    %801 = vmatpush2.xpose.msra.mxu0 0.0
    %802 = vmatprep.subr.mxu0 0.0
    %803 = vmatpush2.xpose.msra.mxu0 0.0
    %804 = vmatprep.subr.mxu0 0.0
    %805 = vmatpush2.xpose.msra.mxu0 0.0
    %806 = vmatprep.subr.mxu0 0.0
    %807 = vmatpush2.xpose.msra.mxu0 0.0
    %808 = vmatprep.subr.mxu0 0.0
    %809 = vmatpush2.xpose.msra.mxu0 0.0
    %810 = vmatprep.mubr.f32.mxu0 0.0
    %811 = vmatmul.mubr.f32.gmra.mxu0 %v738
    %v812 = vpop.f32.mrf.mxu0
    %v813 = vadd.f32 %v646, %v812
    %v814 = vpop.f32.mrf.mxu0
    %815 = vdwg.mxu0
    %v816 = vcombine.low %v403, %v410
    %v818 = vunpack.c.l.s4 1983009808
    %v819 = vunpack.c.0.s8 %v818
    %v820 = vlaneseq
    %v821 = vshrl.u32 %v820, 7
    %v822 = vsub.s32 %v819, %v821
    %v823 = vrot.slane %v816, %v822
    %v825 = vunpack.c.l.s4 1983009808
    %v826 = vunpack.c.0.s8 %v825
    %v827 = vlaneseq
    %v828 = vshrl.u32 %v827, 7
    %v829 = vsub.s32 %v826, %v828
    %v830 = vrot.slane %v411, %v829
    %v831 = vcombine.low %v823, %v830
    %v844 = vcombine.low %v571, %v572
    %v845 = vcombine.low %v573, %v574
    %v847 = vunpack.c.l.s4 1983009808
    %v848 = vunpack.c.0.s8 %v847
    %v849 = vlaneseq
    %v850 = vshrl.u32 %v849, 7
    %v851 = vsub.s32 %v848, %v850
    %v852 = vrot.slane %v844, %v851
    %v854 = vunpack.c.l.s4 1983009808
    %v855 = vunpack.c.0.s8 %v854
    %v856 = vlaneseq
    %v857 = vshrl.u32 %v856, 7
    %v858 = vsub.s32 %v855, %v857
    %v859 = vrot.slane %v845, %v858
    %v860 = vcombine.low %v852, %v859
    %v861 = vcombine.low %v575, %v576
    %v862 = vcombine.low %v577, %v578
    %v864 = vunpack.c.l.s4 1983009808
    %v865 = vunpack.c.0.s8 %v864
    %v866 = vlaneseq
    %v867 = vshrl.u32 %v866, 7
    %v868 = vsub.s32 %v865, %v867
    %v869 = vrot.slane %v861, %v868
    %v871 = vunpack.c.l.s4 1983009808
    %v872 = vunpack.c.0.s8 %v871
    %v873 = vlaneseq
    %v874 = vshrl.u32 %v873, 7
    %v875 = vsub.s32 %v872, %v874
    %v876 = vrot.slane %v862, %v875
    %v877 = vcombine.low %v869, %v876
    %v878 = vcombine.low %v579, %v580
    %v879 = vcombine.low %v581, %v582
    %v881 = vunpack.c.l.s4 1983009808
    %v882 = vunpack.c.0.s8 %v881
    %v883 = vlaneseq
    %v884 = vshrl.u32 %v883, 7
    %v885 = vsub.s32 %v882, %v884
    %v886 = vrot.slane %v878, %v885
    %v888 = vunpack.c.l.s4 1983009808
    %v889 = vunpack.c.0.s8 %v888
    %v890 = vlaneseq
    %v891 = vshrl.u32 %v890, 7
    %v892 = vsub.s32 %v889, %v891
    %v893 = vrot.slane %v879, %v892
    %v894 = vcombine.low %v886, %v893
    %895 = vrot.lane.b32.xlu0 %v860, 96
    %v896 = vpop.permute.xlu0 %895
    %897 = vrot.lane.b32.xlu0 %v877, 96
    %v898 = vpop.permute.xlu0 %897
    %899 = vrot.lane.b32.xlu0 %v894, 96
    %v900 = vpop.permute.xlu0 %899
    %v901 = vsel %vm303, %v831, 0
    %v903 = vsel %vm303, %v896, 0
    %v905 = vsel %vm303, %v898, 0
    %v907 = vsel %vm303, %v900, 0
    %909 = vmatprep.subr.mxu0 0.0
    %910 = vmatpush1.xpose.msra.mxu0 0.0
    %911 = vmatprep.subr.mxu0 0.0
    %912 = vmatpush1.xpose.msra.mxu0 0.0
    %913 = vmatprep.subr.mxu0 0.0
    %914 = vmatpush1.xpose.msra.mxu0 0.0
    %915 = vmatprep.subr.mxu0 0.0
    %916 = vmatpush1.xpose.msra.mxu0 0.0
    %917 = vmatprep.subr.mxu0 0.0
    %918 = vmatpush1.xpose.msra.mxu0 0.0
    %919 = vmatprep.subr.mxu0 0.0
    %920 = vmatpush1.xpose.msra.mxu0 0.0
    %921 = vmatprep.subr.mxu0 0.0
    %922 = vmatpush1.xpose.msra.mxu0 0.0
    %923 = vmatprep.subr.mxu0 0.0
    %924 = vmatpush1.xpose.msra.mxu0 0.0
    %925 = vmatprep.subr.mxu0 0.0
    %926 = vmatpush1.xpose.msra.mxu0 0.0
    %927 = vmatprep.subr.mxu0 0.0
    %928 = vmatpush1.xpose.msra.mxu0 0.0
    %929 = vmatprep.subr.mxu0 0.0
    %930 = vmatpush1.xpose.msra.mxu0 0.0
    %931 = vmatprep.subr.mxu0 0.0
    %932 = vmatpush1.xpose.msra.mxu0 0.0
    %933 = vmatprep.subr.mxu0 0.0
    %934 = vmatpush1.xpose.msra.mxu0 0.0
    %935 = vmatprep.subr.mxu0 0.0
    %936 = vmatpush1.xpose.msra.mxu0 %v907
    %937 = vmatprep.subr.mxu0 0.0
    %938 = vmatpush1.xpose.msra.mxu0 %v905
    %939 = vmatprep.subr.mxu0 0.0
    %940 = vmatpush1.xpose.msra.mxu0 %v903
    %941 = vmatprep.subr.mxu0 0.0
    %942 = vmatpush2.xpose.msra.mxu0 0.0
    %943 = vmatprep.subr.mxu0 0.0
    %944 = vmatpush2.xpose.msra.mxu0 0.0
    %945 = vmatprep.subr.mxu0 0.0
    %946 = vmatpush2.xpose.msra.mxu0 0.0
    %947 = vmatprep.subr.mxu0 0.0
    %948 = vmatpush2.xpose.msra.mxu0 0.0
    %949 = vmatprep.subr.mxu0 0.0
    %950 = vmatpush2.xpose.msra.mxu0 0.0
    %951 = vmatprep.subr.mxu0 0.0
    %952 = vmatpush2.xpose.msra.mxu0 0.0
    %953 = vmatprep.subr.mxu0 0.0
    %954 = vmatpush2.xpose.msra.mxu0 0.0
    %955 = vmatprep.subr.mxu0 0.0
    %956 = vmatpush2.xpose.msra.mxu0 0.0
    %957 = vmatprep.subr.mxu0 0.0
    %958 = vmatpush2.xpose.msra.mxu0 0.0
    %959 = vmatprep.subr.mxu0 0.0
    %960 = vmatpush2.xpose.msra.mxu0 0.0
    %961 = vmatprep.subr.mxu0 0.0
    %962 = vmatpush2.xpose.msra.mxu0 0.0
    %963 = vmatprep.subr.mxu0 0.0
    %964 = vmatpush2.xpose.msra.mxu0 0.0
    %965 = vmatprep.subr.mxu0 0.0
    %966 = vmatpush2.xpose.msra.mxu0 0.0
    %967 = vmatprep.subr.mxu0 0.0
    %968 = vmatpush2.xpose.msra.mxu0 0.0
    %969 = vmatprep.subr.mxu0 0.0
    %970 = vmatpush2.xpose.msra.mxu0 0.0
    %971 = vmatprep.subr.mxu0 0.0
    %972 = vmatpush2.xpose.msra.mxu0 0.0
    %973 = vmatprep.mubr.f32.mxu0 0.0
    %974 = vmatmul.mubr.f32.gmra.mxu0 %v901
    %v975 = vpop.f32.mrf.mxu0
    %v976 = vadd.f32 %v650, %v975
    %v977 = vpop.f32.mrf.mxu0
    %978 = vdwg.mxu0
    %vm979 = vcmask 193536
    %v980 = vsel %vm979, %v813, -inf
    %981 = vmax.xlane.f32.xlu0 %v980
    %v982 = vpop.xlane.xlu0 %981
    %v983 = vsel %vm979, %v976, -inf
    %984 = vmax.xlane.f32.xlu0 %v983
    %v985 = vpop.xlane.xlu0 %984
    %v986 = vsub.f32 %v813, %v982
    %v987 = vsub.f32 %v976, %v985
    %v988 = vmul.f32 %v986, 1.442695
    %v989 = vpow.pop %v988
    %v990 = vmul.f32 %v987, 1.442695
    %v991 = vpow.pop %v990
    %v994 = vcombine.high %v989, %v989
    %v996 = vunpack.c.l.s4 1983009808
    %v997 = vunpack.c.0.s8 %v996
    %v998 = vlaneseq
    %v999 = vshrl.u32 %v998, 7
    %v1000 = vsub.s32 %v997, %v999
    %v1001 = vrot.slane %v989, %v1000
    %v1003 = vunpack.c.l.s4 1983009808
    %v1004 = vunpack.c.0.s8 %v1003
    %v1005 = vlaneseq
    %v1006 = vshrl.u32 %v1005, 7
    %v1007 = vsub.s32 %v1004, %v1006
    %v1008 = vrot.slane %v994, %v1007
    %v1009 = vcombine.high %v1001, %v1001
    %v1010 = vcombine.high %v991, %v991
    %v1012 = vunpack.c.l.s4 1983009808
    %v1013 = vunpack.c.0.s8 %v1012
    %v1014 = vlaneseq
    %v1015 = vshrl.u32 %v1014, 7
    %v1016 = vsub.s32 %v1013, %v1015
    %v1017 = vrot.slane %v991, %v1016
    %v1019 = vunpack.c.l.s4 1983009808
    %v1020 = vunpack.c.0.s8 %v1019
    %v1021 = vlaneseq
    %v1022 = vshrl.u32 %v1021, 7
    %v1023 = vsub.s32 %v1020, %v1022
    %v1024 = vrot.slane %v1010, %v1023
    %v1025 = vcombine.high %v1017, %v1017
    %v1032 = vcombine.low %v1001, %v1009
    %v1033 = vcombine.low %v1008, %v1017
    %v1035 = vunpack.c.l.s4 1983009808
    %v1036 = vunpack.c.0.s8 %v1035
    %v1037 = vlaneseq
    %v1038 = vshrl.u32 %v1037, 7
    %v1039 = vsub.s32 %v1036, %v1038
    %v1040 = vrot.slane %v1032, %v1039
    %v1042 = vunpack.c.l.s4 1983009808
    %v1043 = vunpack.c.0.s8 %v1042
    %v1044 = vlaneseq
    %v1045 = vshrl.u32 %v1044, 7
    %v1046 = vsub.s32 %v1043, %v1045
    %v1047 = vrot.slane %v1033, %v1046
    %v1048 = vcombine.low %v1040, %v1047
    %v1049 = vcombine.low %v1025, %v1024
    %v1051 = vunpack.c.l.s4 1983009808
    %v1052 = vunpack.c.0.s8 %v1051
    %v1053 = vlaneseq
    %v1054 = vshrl.u32 %v1053, 7
    %v1055 = vsub.s32 %v1052, %v1054
    %v1056 = vrot.slane %v1049, %v1055
    %vm1057 = vcmask 195584
    %v1058 = vsel %vm1057, %v1048, 0
    %v1060 = vsel %vm1057, %v1056, 0
    %1062 = vmatprep.subr.mxu0 0.0
    %1063 = vmatpush1.msra.mxu0 0.0
    %1064 = vmatprep.subr.mxu0 0.0
    %1065 = vmatpush1.msra.mxu0 0.0
    %1066 = vmatprep.subr.mxu0 0.0
    %1067 = vmatpush1.msra.mxu0 0.0
    %1068 = vmatprep.subr.mxu0 0.0
    %1069 = vmatpush1.msra.mxu0 0.0
    %1070 = vmatprep.subr.mxu0 0.0
    %1071 = vmatpush1.msra.mxu0 0.0
    %1072 = vmatprep.subr.mxu0 0.0
    %1073 = vmatpush1.msra.mxu0 0.0
    %1074 = vmatprep.subr.mxu0 0.0
    %1075 = vmatpush1.msra.mxu0 0.0
    %1076 = vmatprep.subr.mxu0 0.0
    %1077 = vmatpush1.msra.mxu0 0.0
    %1078 = vmatprep.subr.mxu0 0.0
    %1079 = vmatpush1.msra.mxu0 0.0
    %1080 = vmatprep.subr.mxu0 0.0
    %1081 = vmatpush1.msra.mxu0 0.0
    %1082 = vmatprep.subr.mxu0 0.0
    %1083 = vmatpush1.msra.mxu0 0.0
    %1084 = vmatprep.subr.mxu0 0.0
    %1085 = vmatpush1.msra.mxu0 0.0
    %1086 = vmatprep.subr.mxu0 0.0
    %1087 = vmatpush1.msra.mxu0 0.0
    %1088 = vmatprep.subr.mxu0 0.0
    %1089 = vmatpush1.msra.mxu0 %v291
    %1090 = vmatprep.subr.mxu0 0.0
    %1091 = vmatpush1.msra.mxu0 %v290
    %1092 = vmatprep.subr.mxu0 0.0
    %1093 = vmatpush1.msra.mxu0 %v289
    %1094 = vmatprep.subr.mxu0 0.0
    %1095 = vmatpush2.msra.mxu0 0.0
    %1096 = vmatprep.subr.mxu0 0.0
    %1097 = vmatpush2.msra.mxu0 0.0
    %1098 = vmatprep.subr.mxu0 0.0
    %1099 = vmatpush2.msra.mxu0 0.0
    %1100 = vmatprep.subr.mxu0 0.0
    %1101 = vmatpush2.msra.mxu0 0.0
    %1102 = vmatprep.subr.mxu0 0.0
    %1103 = vmatpush2.msra.mxu0 0.0
    %1104 = vmatprep.subr.mxu0 0.0
    %1105 = vmatpush2.msra.mxu0 0.0
    %1106 = vmatprep.subr.mxu0 0.0
    %1107 = vmatpush2.msra.mxu0 0.0
    %1108 = vmatprep.subr.mxu0 0.0
    %1109 = vmatpush2.msra.mxu0 0.0
    %1110 = vmatprep.subr.mxu0 0.0
    %1111 = vmatpush2.msra.mxu0 0.0
    %1112 = vmatprep.subr.mxu0 0.0
    %1113 = vmatpush2.msra.mxu0 0.0
    %1114 = vmatprep.subr.mxu0 0.0
    %1115 = vmatpush2.msra.mxu0 0.0
    %1116 = vmatprep.subr.mxu0 0.0
    %1117 = vmatpush2.msra.mxu0 0.0
    %1118 = vmatprep.subr.mxu0 0.0
    %1119 = vmatpush2.msra.mxu0 0.0
    %1120 = vmatprep.subr.mxu0 0.0
    %1121 = vmatpush2.msra.mxu0 0.0
    %1122 = vmatprep.subr.mxu0 0.0
    %1123 = vmatpush2.msra.mxu0 0.0
    %1124 = vmatprep.subr.mxu0 0.0
    %1125 = vmatpush2.msra.mxu0 0.0
    %1126 = vmatprep.mubr.f32.mxu0 0.0
    %1127 = vmatmul.mubr.f32.gmra.mxu0 %v1058
    %v1128 = vpop.f32.mrf.mxu0
    %v1129 = vadd.f32 0.0, %v1128
    %v1130 = vpop.f32.mrf.mxu0
    %1131 = vmatprep.mubr.f32.mxu0 0.0
    %1132 = vmatmul.mubr.f32.gmra.mxu0 %v1060
    %v1133 = vpop.f32.mrf.mxu0
    %v1134 = vadd.f32 0.0, %v1133
    %v1135 = vpop.f32.mrf.mxu0
    %1136 = vdwg.mxu0
    %v1137 = vmax.f32 %v1129, 1e-30
    %v1138 = vmax.f32 %v1134, 1e-30
    %v1139 = vrcp.pop %v1137
    %v1140 = vrcp.pop %v1138
    %v1143 = vcombine.high %v1139, %v1139
    %v1145 = vunpack.c.l.s4 1983009808
    %v1146 = vunpack.c.0.s8 %v1145
    %v1147 = vlaneseq
    %v1148 = vshrl.u32 %v1147, 7
    %v1149 = vsub.s32 %v1146, %v1148
    %v1150 = vrot.slane %v1139, %v1149
    %v1152 = vunpack.c.l.s4 1983009808
    %v1153 = vunpack.c.0.s8 %v1152
    %v1154 = vlaneseq
    %v1155 = vshrl.u32 %v1154, 7
    %v1156 = vsub.s32 %v1153, %v1155
    %v1157 = vrot.slane %v1143, %v1156
    %v1158 = vcombine.high %v1150, %v1150
    %v1159 = vcombine.high %v1157, %v1157
    %v1161 = vunpack.c.l.s4 1983009808
    %v1162 = vunpack.c.0.s8 %v1161
    %v1163 = vlaneseq
    %v1164 = vshrl.u32 %v1163, 7
    %v1165 = vsub.s32 %v1162, %v1164
    %v1166 = vrot.slane %v1140, %v1165
    %v1167 = vcombine.high %v1166, %v1166
    %v1174 = vmul.f32 %v1001, %v1150
    %v1175 = vmul.f32 %v1009, %v1158
    %v1176 = vmul.f32 %v1008, %v1157
    %v1177 = vmul.f32 %v1017, %v1159
    %v1178 = vmul.f32 %v1025, %v1166
    %v1179 = vmul.f32 %v1024, %v1167
    %v1183 = vcombine.low %v1174, %v1175
    %v1185 = vunpack.c.l.s4 1983009808
    %v1186 = vunpack.c.0.s8 %v1185
    %v1187 = vlaneseq
    %v1188 = vshrl.u32 %v1187, 7
    %v1189 = vsub.s32 %v1186, %v1188
    %v1190 = vrot.slane %v1183, %v1189
    %v1192 = vunpack.c.l.s4 1983009808
    %v1193 = vunpack.c.0.s8 %v1192
    %v1194 = vlaneseq
    %v1195 = vshrl.u32 %v1194, 7
    %v1196 = vsub.s32 %v1193, %v1195
    %v1197 = vrot.slane %v1176, %v1196
    %v1198 = vcombine.low %v1190, %v1197
    %v1211 = vcombine.low %v619, %v620
    %v1212 = vcombine.low %v621, %v622
    %v1214 = vunpack.c.l.s4 1983009808
    %v1215 = vunpack.c.0.s8 %v1214
    %v1216 = vlaneseq
    %v1217 = vshrl.u32 %v1216, 7
    %v1218 = vsub.s32 %v1215, %v1217
    %v1219 = vrot.slane %v1211, %v1218
    %v1221 = vunpack.c.l.s4 1983009808
    %v1222 = vunpack.c.0.s8 %v1221
    %v1223 = vlaneseq
    %v1224 = vshrl.u32 %v1223, 7
    %v1225 = vsub.s32 %v1222, %v1224
    %v1226 = vrot.slane %v1212, %v1225
    %v1227 = vcombine.low %v1219, %v1226
    %v1228 = vcombine.low %v623, %v624
    %v1229 = vcombine.low %v625, %v626
    %v1231 = vunpack.c.l.s4 1983009808
    %v1232 = vunpack.c.0.s8 %v1231
    %v1233 = vlaneseq
    %v1234 = vshrl.u32 %v1233, 7
    %v1235 = vsub.s32 %v1232, %v1234
    %v1236 = vrot.slane %v1228, %v1235
    %v1238 = vunpack.c.l.s4 1983009808
    %v1239 = vunpack.c.0.s8 %v1238
    %v1240 = vlaneseq
    %v1241 = vshrl.u32 %v1240, 7
    %v1242 = vsub.s32 %v1239, %v1241
    %v1243 = vrot.slane %v1229, %v1242
    %v1244 = vcombine.low %v1236, %v1243
    %v1245 = vcombine.low %v627, %v628
    %v1246 = vcombine.low %v629, %v630
    %v1248 = vunpack.c.l.s4 1983009808
    %v1249 = vunpack.c.0.s8 %v1248
    %v1250 = vlaneseq
    %v1251 = vshrl.u32 %v1250, 7
    %v1252 = vsub.s32 %v1249, %v1251
    %v1253 = vrot.slane %v1245, %v1252
    %v1255 = vunpack.c.l.s4 1983009808
    %v1256 = vunpack.c.0.s8 %v1255
    %v1257 = vlaneseq
    %v1258 = vshrl.u32 %v1257, 7
    %v1259 = vsub.s32 %v1256, %v1258
    %v1260 = vrot.slane %v1246, %v1259
    %v1261 = vcombine.low %v1253, %v1260
    %1262 = vrot.lane.b32.xlu0 %v1227, 64
    %v1263 = vpop.permute.xlu0 %1262
    %1264 = vrot.lane.b32.xlu0 %v1244, 64
    %v1265 = vpop.permute.xlu0 %1264
    %1266 = vrot.lane.b32.xlu0 %v1261, 64
    %v1267 = vpop.permute.xlu0 %1266
    %v1271 = vsel %vm1057, %v1198, 0
    %1273 = vmatprep.subr.mxu0 0.0
    %1274 = vmatpush1.msra.mxu0 0.0
    %1275 = vmatprep.subr.mxu0 0.0
    %1276 = vmatpush1.msra.mxu0 0.0
    %1277 = vmatprep.subr.mxu0 0.0
    %1278 = vmatpush1.msra.mxu0 0.0
    %1279 = vmatprep.subr.mxu0 0.0
    %1280 = vmatpush1.msra.mxu0 0.0
    %1281 = vmatprep.subr.mxu0 0.0
    %1282 = vmatpush1.msra.mxu0 0.0
    %1283 = vmatprep.subr.mxu0 0.0
    %1284 = vmatpush1.msra.mxu0 0.0
    %1285 = vmatprep.subr.mxu0 0.0
    %1286 = vmatpush1.msra.mxu0 0.0
    %1287 = vmatprep.subr.mxu0 0.0
    %1288 = vmatpush1.msra.mxu0 0.0
    %1289 = vmatprep.subr.mxu0 0.0
    %1290 = vmatpush1.msra.mxu0 0.0
    %1291 = vmatprep.subr.mxu0 0.0
    %1292 = vmatpush1.msra.mxu0 0.0
    %1293 = vmatprep.subr.mxu0 0.0
    %1294 = vmatpush1.msra.mxu0 0.0
    %1295 = vmatprep.subr.mxu0 0.0
    %1296 = vmatpush1.msra.mxu0 0.0
    %1297 = vmatprep.subr.mxu0 0.0
    %1298 = vmatpush1.msra.mxu0 0.0
    %1299 = vmatprep.subr.mxu0 0.0
    %1300 = vmatpush1.msra.mxu0 %v1267
    %1301 = vmatprep.subr.mxu0 0.0
    %1302 = vmatpush1.msra.mxu0 %v1265
    %1303 = vmatprep.subr.mxu0 0.0
    %1304 = vmatpush1.msra.mxu0 %v1263
    %1305 = vmatprep.subr.mxu0 0.0
    %1306 = vmatpush2.msra.mxu0 0.0
    %1307 = vmatprep.subr.mxu0 0.0
    %1308 = vmatpush2.msra.mxu0 0.0
    %1309 = vmatprep.subr.mxu0 0.0
    %1310 = vmatpush2.msra.mxu0 0.0
    %1311 = vmatprep.subr.mxu0 0.0
    %1312 = vmatpush2.msra.mxu0 0.0
    %1313 = vmatprep.subr.mxu0 0.0
    %1314 = vmatpush2.msra.mxu0 0.0
    %1315 = vmatprep.subr.mxu0 0.0
    %1316 = vmatpush2.msra.mxu0 0.0
    %1317 = vmatprep.subr.mxu0 0.0
    %1318 = vmatpush2.msra.mxu0 0.0
    %1319 = vmatprep.subr.mxu0 0.0
    %1320 = vmatpush2.msra.mxu0 0.0
    %1321 = vmatprep.subr.mxu0 0.0
    %1322 = vmatpush2.msra.mxu0 0.0
    %1323 = vmatprep.subr.mxu0 0.0
    %1324 = vmatpush2.msra.mxu0 0.0
    %1325 = vmatprep.subr.mxu0 0.0
    %1326 = vmatpush2.msra.mxu0 0.0
    %1327 = vmatprep.subr.mxu0 0.0
    %1328 = vmatpush2.msra.mxu0 0.0
    %1329 = vmatprep.subr.mxu0 0.0
    %1330 = vmatpush2.msra.mxu0 0.0
    %1331 = vmatprep.subr.mxu0 0.0
    %1332 = vmatpush2.msra.mxu0 0.0
    %1333 = vmatprep.subr.mxu0 0.0
    %1334 = vmatpush2.msra.mxu0 0.0
    %1335 = vmatprep.subr.mxu0 0.0
    %1336 = vmatpush2.msra.mxu0 0.0
    %1337 = vmatprep.mubr.f32.mxu0 0.0
    %1338 = vmatmul.mubr.f32.gmra.mxu0 %v1271
    %v1339 = vpop.f32.mrf.mxu0
    %v1340 = vadd.f32 0.0, %v1339
    %v1341 = vpop.f32.mrf.mxu0
    %1342 = vdwg.mxu0
    %v1346 = vcombine.low %v1177, %v1178
    %v1348 = vunpack.c.l.s4 1983009808
    %v1349 = vunpack.c.0.s8 %v1348
    %v1350 = vlaneseq
    %v1351 = vshrl.u32 %v1350, 7
    %v1352 = vsub.s32 %v1349, %v1351
    %v1353 = vrot.slane %v1346, %v1352
    %v1355 = vunpack.c.l.s4 1983009808
    %v1356 = vunpack.c.0.s8 %v1355
    %v1357 = vlaneseq
    %v1358 = vshrl.u32 %v1357, 7
    %v1359 = vsub.s32 %v1356, %v1358
    %v1360 = vrot.slane %v1179, %v1359
    %v1361 = vcombine.low %v1353, %v1360
    %v1374 = vcombine.low %v631, %v632
    %v1375 = vcombine.low %v633, %v634
    %v1377 = vunpack.c.l.s4 1983009808
    %v1378 = vunpack.c.0.s8 %v1377
    %v1379 = vlaneseq
    %v1380 = vshrl.u32 %v1379, 7
    %v1381 = vsub.s32 %v1378, %v1380
    %v1382 = vrot.slane %v1374, %v1381
    %v1384 = vunpack.c.l.s4 1983009808
    %v1385 = vunpack.c.0.s8 %v1384
    %v1386 = vlaneseq
    %v1387 = vshrl.u32 %v1386, 7
    %v1388 = vsub.s32 %v1385, %v1387
    %v1389 = vrot.slane %v1375, %v1388
    %v1390 = vcombine.low %v1382, %v1389
    %v1391 = vcombine.low %v635, %v636
    %v1392 = vcombine.low %v637, %v638
    %v1394 = vunpack.c.l.s4 1983009808
    %v1395 = vunpack.c.0.s8 %v1394
    %v1396 = vlaneseq
    %v1397 = vshrl.u32 %v1396, 7
    %v1398 = vsub.s32 %v1395, %v1397
    %v1399 = vrot.slane %v1391, %v1398
    %v1401 = vunpack.c.l.s4 1983009808
    %v1402 = vunpack.c.0.s8 %v1401
    %v1403 = vlaneseq
    %v1404 = vshrl.u32 %v1403, 7
    %v1405 = vsub.s32 %v1402, %v1404
    %v1406 = vrot.slane %v1392, %v1405
    %v1407 = vcombine.low %v1399, %v1406
    %v1408 = vcombine.low %v639, %v640
    %v1409 = vcombine.low %v641, %v642
    %v1411 = vunpack.c.l.s4 1983009808
    %v1412 = vunpack.c.0.s8 %v1411
    %v1413 = vlaneseq
    %v1414 = vshrl.u32 %v1413, 7
    %v1415 = vsub.s32 %v1412, %v1414
    %v1416 = vrot.slane %v1408, %v1415
    %v1418 = vunpack.c.l.s4 1983009808
    %v1419 = vunpack.c.0.s8 %v1418
    %v1420 = vlaneseq
    %v1421 = vshrl.u32 %v1420, 7
    %v1422 = vsub.s32 %v1419, %v1421
    %v1423 = vrot.slane %v1409, %v1422
    %v1424 = vcombine.low %v1416, %v1423
    %1425 = vrot.lane.b32.xlu0 %v1390, 64
    %v1426 = vpop.permute.xlu0 %1425
    %1427 = vrot.lane.b32.xlu0 %v1407, 64
    %v1428 = vpop.permute.xlu0 %1427
    %1429 = vrot.lane.b32.xlu0 %v1424, 64
    %v1430 = vpop.permute.xlu0 %1429
    %v1434 = vsel %vm1057, %v1361, 0
    %1436 = vmatprep.subr.mxu0 0.0
    %1437 = vmatpush1.msra.mxu0 0.0
    %1438 = vmatprep.subr.mxu0 0.0
    %1439 = vmatpush1.msra.mxu0 0.0
    %1440 = vmatprep.subr.mxu0 0.0
    %1441 = vmatpush1.msra.mxu0 0.0
    %1442 = vmatprep.subr.mxu0 0.0
    %1443 = vmatpush1.msra.mxu0 0.0
    %1444 = vmatprep.subr.mxu0 0.0
    %1445 = vmatpush1.msra.mxu0 0.0
    %1446 = vmatprep.subr.mxu0 0.0
    %1447 = vmatpush1.msra.mxu0 0.0
    %1448 = vmatprep.subr.mxu0 0.0
    %1449 = vmatpush1.msra.mxu0 0.0
    %1450 = vmatprep.subr.mxu0 0.0
    %1451 = vmatpush1.msra.mxu0 0.0
    %1452 = vmatprep.subr.mxu0 0.0
    %1453 = vmatpush1.msra.mxu0 0.0
    %1454 = vmatprep.subr.mxu0 0.0
    %1455 = vmatpush1.msra.mxu0 0.0
    %1456 = vmatprep.subr.mxu0 0.0
    %1457 = vmatpush1.msra.mxu0 0.0
    %1458 = vmatprep.subr.mxu0 0.0
    %1459 = vmatpush1.msra.mxu0 0.0
    %1460 = vmatprep.subr.mxu0 0.0
    %1461 = vmatpush1.msra.mxu0 0.0
    %1462 = vmatprep.subr.mxu0 0.0
    %1463 = vmatpush1.msra.mxu0 %v1430
    %1464 = vmatprep.subr.mxu0 0.0
    %1465 = vmatpush1.msra.mxu0 %v1428
    %1466 = vmatprep.subr.mxu0 0.0
    %1467 = vmatpush1.msra.mxu0 %v1426
    %1468 = vmatprep.subr.mxu0 0.0
    %1469 = vmatpush2.msra.mxu0 0.0
    %1470 = vmatprep.subr.mxu0 0.0
    %1471 = vmatpush2.msra.mxu0 0.0
    %1472 = vmatprep.subr.mxu0 0.0
    %1473 = vmatpush2.msra.mxu0 0.0
    %1474 = vmatprep.subr.mxu0 0.0
    %1475 = vmatpush2.msra.mxu0 0.0
    %1476 = vmatprep.subr.mxu0 0.0
    %1477 = vmatpush2.msra.mxu0 0.0
    %1478 = vmatprep.subr.mxu0 0.0
    %1479 = vmatpush2.msra.mxu0 0.0
    %1480 = vmatprep.subr.mxu0 0.0
    %1481 = vmatpush2.msra.mxu0 0.0
    %1482 = vmatprep.subr.mxu0 0.0
    %1483 = vmatpush2.msra.mxu0 0.0
    %1484 = vmatprep.subr.mxu0 0.0
    %1485 = vmatpush2.msra.mxu0 0.0
    %1486 = vmatprep.subr.mxu0 0.0
    %1487 = vmatpush2.msra.mxu0 0.0
    %1488 = vmatprep.subr.mxu0 0.0
    %1489 = vmatpush2.msra.mxu0 0.0
    %1490 = vmatprep.subr.mxu0 0.0
    %1491 = vmatpush2.msra.mxu0 0.0
    %1492 = vmatprep.subr.mxu0 0.0
    %1493 = vmatpush2.msra.mxu0 0.0
    %1494 = vmatprep.subr.mxu0 0.0
    %1495 = vmatpush2.msra.mxu0 0.0
    %1496 = vmatprep.subr.mxu0 0.0
    %1497 = vmatpush2.msra.mxu0 0.0
    %1498 = vmatprep.subr.mxu0 0.0
    %1499 = vmatpush2.msra.mxu0 0.0
    %1500 = vmatprep.mubr.f32.mxu0 0.0
    %1501 = vmatmul.mubr.f32.gmra.mxu0 %v1434
    %v1502 = vpop.f32.mrf.mxu0
    %v1503 = vadd.f32 0.0, %v1502
    %v1504 = vpop.f32.mrf.mxu0
    %1505 = vdwg.mxu0
    %v1508 = vcombine.high %v1340, %v1340
    %v1510 = vunpack.c.l.s4 1983009808
    %v1511 = vunpack.c.0.s8 %v1510
    %v1512 = vlaneseq
    %v1513 = vshrl.u32 %v1512, 7
    %v1514 = vsub.s32 %v1511, %v1513
    %v1515 = vrot.slane %v1340, %v1514
    %v1517 = vunpack.c.l.s4 1983009808
    %v1518 = vunpack.c.0.s8 %v1517
    %v1519 = vlaneseq
    %v1520 = vshrl.u32 %v1519, 7
    %v1521 = vsub.s32 %v1518, %v1520
    %v1522 = vrot.slane %v1508, %v1521
    %v1523 = vcombine.high %v1515, %v1515
    %v1524 = vcombine.high %v1503, %v1503
    %v1526 = vunpack.c.l.s4 1983009808
    %v1527 = vunpack.c.0.s8 %v1526
    %v1528 = vlaneseq
    %v1529 = vshrl.u32 %v1528, 7
    %v1530 = vsub.s32 %v1527, %v1529
    %v1531 = vrot.slane %v1503, %v1530
    %v1533 = vunpack.c.l.s4 1983009808
    %v1534 = vunpack.c.0.s8 %v1533
    %v1535 = vlaneseq
    %v1536 = vshrl.u32 %v1535, 7
    %v1537 = vsub.s32 %v1534, %v1536
    %v1538 = vrot.slane %v1524, %v1537
    %v1539 = vcombine.high %v1531, %v1531
    %v1540 = vld [vmem:[%s9] sm:$0xff]
    %v1541 = vld [vmem:[%s9 + $0x8] sm:$0xff]
    %v1542 = vld [vmem:[%s9 + $0x10] sm:$0xff]
    %v1543 = vld [vmem:[%s9 + $0x18] sm:$0xff]
    %v1544 = vld [vmem:[%s10] sm:$0x1]
    %v1546 = vlaneseq
    %v1547 = vshrl.u32 %v1546, 7
    %v1548 = vsub.s32 0, %v1547
    %v1549 = vrot.slane %v1544, %v1548
    %v1551 = vcombine.low %v1515, %v1523
    %v1552 = vcombine.low %v1522, %v1531
    %v1554 = vunpack.c.l.s4 1983009808
    %v1555 = vunpack.c.0.s8 %v1554
    %v1556 = vlaneseq
    %v1557 = vshrl.u32 %v1556, 7
    %v1558 = vsub.s32 %v1555, %v1557
    %v1559 = vrot.slane %v1551, %v1558
    %v1561 = vunpack.c.l.s4 1983009808
    %v1562 = vunpack.c.0.s8 %v1561
    %v1563 = vlaneseq
    %v1564 = vshrl.u32 %v1563, 7
    %v1565 = vsub.s32 %v1562, %v1564
    %v1566 = vrot.slane %v1552, %v1565
    %v1567 = vcombine.low %v1559, %v1566
    %v1568 = vcombine.low %v1539, %v1538
    %v1570 = vunpack.c.l.s4 1983009808
    %v1571 = vunpack.c.0.s8 %v1570
    %v1572 = vlaneseq
    %v1573 = vshrl.u32 %v1572, 7
    %v1574 = vsub.s32 %v1571, %v1573
    %v1575 = vrot.slane %v1568, %v1574
    %v1576 = vsel %vm303, %v1567, 0
    %v1578 = vsel %vm303, %v1575, 0
    %1580 = vmatprep.subr.mxu0 0.0
    %1581 = vmatpush1.msra.mxu0 0.0
    %1582 = vmatprep.subr.mxu0 0.0
    %1583 = vmatpush1.msra.mxu0 0.0
    %1584 = vmatprep.subr.mxu0 0.0
    %1585 = vmatpush1.msra.mxu0 0.0
    %1586 = vmatprep.subr.mxu0 0.0
    %1587 = vmatpush1.msra.mxu0 0.0
    %1588 = vmatprep.subr.mxu0 0.0
    %1589 = vmatpush1.msra.mxu0 0.0
    %1590 = vmatprep.subr.mxu0 0.0
    %1591 = vmatpush1.msra.mxu0 0.0
    %1592 = vmatprep.subr.mxu0 0.0
    %1593 = vmatpush1.msra.mxu0 0.0
    %1594 = vmatprep.subr.mxu0 0.0
    %1595 = vmatpush1.msra.mxu0 0.0
    %1596 = vmatprep.subr.mxu0 0.0
    %1597 = vmatpush1.msra.mxu0 0.0
    %1598 = vmatprep.subr.mxu0 0.0
    %1599 = vmatpush1.msra.mxu0 0.0
    %1600 = vmatprep.subr.mxu0 0.0
    %1601 = vmatpush1.msra.mxu0 0.0
    %1602 = vmatprep.subr.mxu0 0.0
    %1603 = vmatpush1.msra.mxu0 0.0
    %1604 = vmatprep.subr.mxu0 0.0
    %1605 = vmatpush1.msra.mxu0 %v1543
    %1606 = vmatprep.subr.mxu0 0.0
    %1607 = vmatpush1.msra.mxu0 %v1542
    %1608 = vmatprep.subr.mxu0 0.0
    %1609 = vmatpush1.msra.mxu0 %v1541
    %1610 = vmatprep.subr.mxu0 0.0
    %1611 = vmatpush1.msra.mxu0 %v1540
    %1612 = vmatprep.subr.mxu0 0.0
    %1613 = vmatpush2.msra.mxu0 0.0
    %1614 = vmatprep.subr.mxu0 0.0
    %1615 = vmatpush2.msra.mxu0 0.0
    %1616 = vmatprep.subr.mxu0 0.0
    %1617 = vmatpush2.msra.mxu0 0.0
    %1618 = vmatprep.subr.mxu0 0.0
    %1619 = vmatpush2.msra.mxu0 0.0
    %1620 = vmatprep.subr.mxu0 0.0
    %1621 = vmatpush2.msra.mxu0 0.0
    %1622 = vmatprep.subr.mxu0 0.0
    %1623 = vmatpush2.msra.mxu0 0.0
    %1624 = vmatprep.subr.mxu0 0.0
    %1625 = vmatpush2.msra.mxu0 0.0
    %1626 = vmatprep.subr.mxu0 0.0
    %1627 = vmatpush2.msra.mxu0 0.0
    %1628 = vmatprep.subr.mxu0 0.0
    %1629 = vmatpush2.msra.mxu0 0.0
    %1630 = vmatprep.subr.mxu0 0.0
    %1631 = vmatpush2.msra.mxu0 0.0
    %1632 = vmatprep.subr.mxu0 0.0
    %1633 = vmatpush2.msra.mxu0 0.0
    %1634 = vmatprep.subr.mxu0 0.0
    %1635 = vmatpush2.msra.mxu0 0.0
    %1636 = vmatprep.subr.mxu0 0.0
    %1637 = vmatpush2.msra.mxu0 0.0
    %1638 = vmatprep.subr.mxu0 0.0
    %1639 = vmatpush2.msra.mxu0 0.0
    %1640 = vmatprep.subr.mxu0 0.0
    %1641 = vmatpush2.msra.mxu0 0.0
    %1642 = vmatprep.subr.mxu0 0.0
    %1643 = vmatpush2.msra.mxu0 0.0
    %1644 = vmatprep.mubr.f32.mxu0 0.0
    %1645 = vmatmul.mubr.f32.gmra.mxu0 %v1576
    %v1646 = vpop.f32.mrf.mxu0
    %v1647 = vadd.f32 %v1549, %v1646
    %v1648 = vpop.f32.mrf.mxu0
    %1649 = vmatprep.mubr.f32.mxu0 0.0
    %1650 = vmatmul.mubr.f32.gmra.mxu0 %v1578
    %v1651 = vpop.f32.mrf.mxu0
    %v1652 = vadd.f32 %v1549, %v1651
    %v1653 = vpop.f32.mrf.mxu0
    %1654 = vdwg.mxu0
    %v1655 = vadd.f32 %v1647, %v244
    %v1656 = vadd.f32 %v1652, %v245
    %v1657 = vld [vmem:[%s11] sm:$0x1]
    %v1658 = vld [vmem:[%s12] sm:$0x1]
    %v1659 = vsel %vm303, %v1655, 0.0
    %1660 = vadd.xlane.f32.xlu0 %v1659
    %v1661 = vpop.xlane.xlu0 %1660
    %vm1662 = vcmask 257024
    %v1663 = vsel %vm1662, %v1656, 0.0
    %1664 = vadd.xlane.f32.xlu0 %v1663
    %v1665 = vpop.xlane.xlu0 %1664
    %v1666 = vrcp.pop 32.0
    %v1667 = vmul.f32 %v1661, %v1666
    %v1668 = vmul.f32 %v1665, %v1666
    %v1669 = vsub.f32 %v1655, %v1667
    %v1670 = vsub.f32 %v1656, %v1668
    %v1671 = vmul.f32 %v1669, %v1669
    %v1672 = vmul.f32 %v1670, %v1670
    %v1673 = vsel %vm303, %v1671, 0.0
    %1674 = vadd.xlane.f32.xlu0 %v1673
    %v1675 = vpop.xlane.xlu0 %1674
    %v1676 = vsel %vm1662, %v1672, 0.0
    %1677 = vadd.xlane.f32.xlu0 %v1676
    %v1678 = vpop.xlane.xlu0 %1677
    %v1679 = vmul.f32 %v1675, %v1666
    %v1680 = vmul.f32 %v1678, %v1666
    %v1681 = vadd.f32 %v1679, 1e-05
    %v1682 = vadd.f32 %v1680, 1e-05
    %v1683 = vrsqrt.pop %v1681
    %v1684 = vrsqrt.pop %v1682
    %v1685 = vmul.f32 %v1669, %v1683
    %v1686 = vmul.f32 %v1670, %v1684
    %v1688 = vlaneseq
    %v1689 = vshrl.u32 %v1688, 7
    %v1690 = vsub.s32 0, %v1689
    %v1691 = vrot.slane %v1657, %v1690
    %v1693 = vmul.f32 %v1685, %v1691
    %v1694 = vmul.f32 %v1686, %v1691
    %v1696 = vlaneseq
    %v1697 = vshrl.u32 %v1696, 7
    %v1698 = vsub.s32 0, %v1697
    %v1699 = vrot.slane %v1658, %v1698
    %v1701 = vadd.f32 %v1693, %v1699
    %v1702 = vadd.f32 %v1694, %v1699
    %v1703 = vld [vmem:[%s15] sm:$0xff]
    %v1704 = vld [vmem:[%s15 + $0x8] sm:$0xff]
    %v1705 = vld [vmem:[%s15 + $0x10] sm:$0xff]
    %v1706 = vld [vmem:[%s15 + $0x18] sm:$0xff]
    %v1707 = vld [vmem:[%s16] sm:$0x1]
    %v1709 = vlaneseq
    %v1710 = vshrl.u32 %v1709, 7
    %v1711 = vsub.s32 0, %v1710
    %v1712 = vrot.slane %v1707, %v1711
    %v1715 = vsel %vm303, %v1701, 0
    %v1718 = vsel %vm303, %v1702, 0
    %1720 = vmatprep.subr.mxu0 0.0
    %1721 = vmatpush1.msra.mxu0 0.0
    %1722 = vmatprep.subr.mxu0 0.0
    %1723 = vmatpush1.msra.mxu0 0.0
    %1724 = vmatprep.subr.mxu0 0.0
    %1725 = vmatpush1.msra.mxu0 0.0
    %1726 = vmatprep.subr.mxu0 0.0
    %1727 = vmatpush1.msra.mxu0 0.0
    %1728 = vmatprep.subr.mxu0 0.0
    %1729 = vmatpush1.msra.mxu0 0.0
    %1730 = vmatprep.subr.mxu0 0.0
    %1731 = vmatpush1.msra.mxu0 0.0
    %1732 = vmatprep.subr.mxu0 0.0
    %1733 = vmatpush1.msra.mxu0 0.0
    %1734 = vmatprep.subr.mxu0 0.0
    %1735 = vmatpush1.msra.mxu0 0.0
    %1736 = vmatprep.subr.mxu0 0.0
    %1737 = vmatpush1.msra.mxu0 0.0
    %1738 = vmatprep.subr.mxu0 0.0
    %1739 = vmatpush1.msra.mxu0 0.0
    %1740 = vmatprep.subr.mxu0 0.0
    %1741 = vmatpush1.msra.mxu0 0.0
    %1742 = vmatprep.subr.mxu0 0.0
    %1743 = vmatpush1.msra.mxu0 0.0
    %1744 = vmatprep.subr.mxu0 0.0
    %1745 = vmatpush1.msra.mxu0 %v1706
    %1746 = vmatprep.subr.mxu0 0.0
    %1747 = vmatpush1.msra.mxu0 %v1705
    %1748 = vmatprep.subr.mxu0 0.0
    %1749 = vmatpush1.msra.mxu0 %v1704
    %1750 = vmatprep.subr.mxu0 0.0
    %1751 = vmatpush1.msra.mxu0 %v1703
    %1752 = vmatprep.subr.mxu0 0.0
    %1753 = vmatpush2.msra.mxu0 0.0
    %1754 = vmatprep.subr.mxu0 0.0
    %1755 = vmatpush2.msra.mxu0 0.0
    %1756 = vmatprep.subr.mxu0 0.0
    %1757 = vmatpush2.msra.mxu0 0.0
    %1758 = vmatprep.subr.mxu0 0.0
    %1759 = vmatpush2.msra.mxu0 0.0
    %1760 = vmatprep.subr.mxu0 0.0
    %1761 = vmatpush2.msra.mxu0 0.0
    %1762 = vmatprep.subr.mxu0 0.0
    %1763 = vmatpush2.msra.mxu0 0.0
    %1764 = vmatprep.subr.mxu0 0.0
    %1765 = vmatpush2.msra.mxu0 0.0
    %1766 = vmatprep.subr.mxu0 0.0
    %1767 = vmatpush2.msra.mxu0 0.0
    %1768 = vmatprep.subr.mxu0 0.0
    %1769 = vmatpush2.msra.mxu0 0.0
    %1770 = vmatprep.subr.mxu0 0.0
    %1771 = vmatpush2.msra.mxu0 0.0
    %1772 = vmatprep.subr.mxu0 0.0
    %1773 = vmatpush2.msra.mxu0 0.0
    %1774 = vmatprep.subr.mxu0 0.0
    %1775 = vmatpush2.msra.mxu0 0.0
    %1776 = vmatprep.subr.mxu0 0.0
    %1777 = vmatpush2.msra.mxu0 0.0
    %1778 = vmatprep.subr.mxu0 0.0
    %1779 = vmatpush2.msra.mxu0 0.0
    %1780 = vmatprep.subr.mxu0 0.0
    %1781 = vmatpush2.msra.mxu0 0.0
    %1782 = vmatprep.subr.mxu0 0.0
    %1783 = vmatpush2.msra.mxu0 0.0
    %1784 = vmatprep.mubr.f32.mxu0 0.0
    %1785 = vmatmul.mubr.f32.gmra.mxu0 %v1715
    %v1786 = vpop.f32.mrf.mxu0
    %v1787 = vadd.f32 %v1712, %v1786
    %v1788 = vpop.f32.mrf.mxu0
    %1789 = vmatprep.mubr.f32.mxu0 0.0
    %1790 = vmatmul.mubr.f32.gmra.mxu0 %v1718
    %v1791 = vpop.f32.mrf.mxu0
    %v1792 = vadd.f32 %v1712, %v1791
    %v1793 = vpop.f32.mrf.mxu0
    %1794 = vdwg.mxu0
    %v1795 = vmax.f32 %v1787, 0.0
    %v1796 = vmax.f32 %v1792, 0.0
    %v1797 = vld [vmem:[%s17] sm:$0xff]
    %v1798 = vld [vmem:[%s17 + $0x8] sm:$0xff]
    %v1799 = vld [vmem:[%s17 + $0x10] sm:$0xff]
    %v1800 = vld [vmem:[%s17 + $0x18] sm:$0xff]
    %v1801 = vld [vmem:[%s17 + $0x20] sm:$0xff]
    %v1802 = vld [vmem:[%s17 + $0x28] sm:$0xff]
    %v1803 = vld [vmem:[%s17 + $0x30] sm:$0xff]
    %v1804 = vld [vmem:[%s17 + $0x38] sm:$0xff]
    %v1805 = vld [vmem:[%s17 + $0x40] sm:$0xff]
    %v1806 = vld [vmem:[%s17 + $0x48] sm:$0xff]
    %v1807 = vld [vmem:[%s17 + $0x50] sm:$0xff]
    %v1808 = vld [vmem:[%s17 + $0x58] sm:$0xff]
    %v1809 = vld [vmem:[%s17 + $0x60] sm:$0xff]
    %v1810 = vld [vmem:[%s17 + $0x68] sm:$0xff]
    %v1811 = vld [vmem:[%s17 + $0x70] sm:$0xff]
    %v1812 = vld [vmem:[%s17 + $0x78] sm:$0xff]
    %v1813 = vld [vmem:[%s18] sm:$0x1]
    %v1815 = vlaneseq
    %v1816 = vshrl.u32 %v1815, 7
    %v1817 = vsub.s32 0, %v1816
    %v1818 = vrot.slane %v1813, %v1817
    %1820 = vmatprep.subr.mxu0 0.0
    %1821 = vmatpush1.msra.mxu0 %v1812
    %1822 = vmatprep.subr.mxu0 0.0
    %1823 = vmatpush1.msra.mxu0 %v1811
    %1824 = vmatprep.subr.mxu0 0.0
    %1825 = vmatpush1.msra.mxu0 %v1810
    %1826 = vmatprep.subr.mxu0 0.0
    %1827 = vmatpush1.msra.mxu0 %v1809
    %1828 = vmatprep.subr.mxu0 0.0
    %1829 = vmatpush1.msra.mxu0 %v1808
    %1830 = vmatprep.subr.mxu0 0.0
    %1831 = vmatpush1.msra.mxu0 %v1807
    %1832 = vmatprep.subr.mxu0 0.0
    %1833 = vmatpush1.msra.mxu0 %v1806
    %1834 = vmatprep.subr.mxu0 0.0
    %1835 = vmatpush1.msra.mxu0 %v1805
    %1836 = vmatprep.subr.mxu0 0.0
    %1837 = vmatpush1.msra.mxu0 %v1804
    %1838 = vmatprep.subr.mxu0 0.0
    %1839 = vmatpush1.msra.mxu0 %v1803
    %1840 = vmatprep.subr.mxu0 0.0
    %1841 = vmatpush1.msra.mxu0 %v1802
    %1842 = vmatprep.subr.mxu0 0.0
    %1843 = vmatpush1.msra.mxu0 %v1801
    %1844 = vmatprep.subr.mxu0 0.0
    %1845 = vmatpush1.msra.mxu0 %v1800
    %1846 = vmatprep.subr.mxu0 0.0
    %1847 = vmatpush1.msra.mxu0 %v1799
    %1848 = vmatprep.subr.mxu0 0.0
    %1849 = vmatpush1.msra.mxu0 %v1798
    %1850 = vmatprep.subr.mxu0 0.0
    %1851 = vmatpush1.msra.mxu0 %v1797
    %1852 = vmatprep.subr.mxu0 0.0
    %1853 = vmatpush2.msra.mxu0 0.0
    %1854 = vmatprep.subr.mxu0 0.0
    %1855 = vmatpush2.msra.mxu0 0.0
    %1856 = vmatprep.subr.mxu0 0.0
    %1857 = vmatpush2.msra.mxu0 0.0
    %1858 = vmatprep.subr.mxu0 0.0
    %1859 = vmatpush2.msra.mxu0 0.0
    %1860 = vmatprep.subr.mxu0 0.0
    %1861 = vmatpush2.msra.mxu0 0.0
    %1862 = vmatprep.subr.mxu0 0.0
    %1863 = vmatpush2.msra.mxu0 0.0
    %1864 = vmatprep.subr.mxu0 0.0
    %1865 = vmatpush2.msra.mxu0 0.0
    %1866 = vmatprep.subr.mxu0 0.0
    %1867 = vmatpush2.msra.mxu0 0.0
    %1868 = vmatprep.subr.mxu0 0.0
    %1869 = vmatpush2.msra.mxu0 0.0
    %1870 = vmatprep.subr.mxu0 0.0
    %1871 = vmatpush2.msra.mxu0 0.0
    %1872 = vmatprep.subr.mxu0 0.0
    %1873 = vmatpush2.msra.mxu0 0.0
    %1874 = vmatprep.subr.mxu0 0.0
    %1875 = vmatpush2.msra.mxu0 0.0
    %1876 = vmatprep.subr.mxu0 0.0
    %1877 = vmatpush2.msra.mxu0 0.0
    %1878 = vmatprep.subr.mxu0 0.0
    %1879 = vmatpush2.msra.mxu0 0.0
    %1880 = vmatprep.subr.mxu0 0.0
    %1881 = vmatpush2.msra.mxu0 0.0
    %1882 = vmatprep.subr.mxu0 0.0
    %1883 = vmatpush2.msra.mxu0 0.0
    %1884 = vmatprep.mubr.f32.mxu0 0.0
    %1885 = vmatmul.mubr.f32.gmra.mxu0 %v1795
    %v1886 = vpop.f32.mrf.mxu0
    %v1887 = vadd.f32 %v1818, %v1886
    %v1888 = vpop.f32.mrf.mxu0
    %1889 = vmatprep.mubr.f32.mxu0 0.0
    %1890 = vmatmul.mubr.f32.gmra.mxu0 %v1796
    %v1891 = vpop.f32.mrf.mxu0
    %v1892 = vadd.f32 %v1818, %v1891
    %v1893 = vpop.f32.mrf.mxu0
    %1894 = vdwg.mxu0
    %v1895 = vadd.f32 %v1887, %v1701
    %v1896 = vadd.f32 %v1892, %v1702
    %v1897 = vld [vmem:[%s13] sm:$0x1]
    %v1898 = vld [vmem:[%s14] sm:$0x1]
    %v1899 = vsel %vm303, %v1895, 0.0
    %1900 = vadd.xlane.f32.xlu0 %v1899
    %v1901 = vpop.xlane.xlu0 %1900
    %v1902 = vsel %vm1662, %v1896, 0.0
    %1903 = vadd.xlane.f32.xlu0 %v1902
    %v1904 = vpop.xlane.xlu0 %1903
    %v1905 = vmul.f32 %v1901, %v1666
    %v1906 = vmul.f32 %v1904, %v1666
    %v1907 = vsub.f32 %v1895, %v1905
    %v1908 = vsub.f32 %v1896, %v1906
    %v1909 = vmul.f32 %v1907, %v1907
    %v1910 = vmul.f32 %v1908, %v1908
    %v1911 = vsel %vm303, %v1909, 0.0
    %1912 = vadd.xlane.f32.xlu0 %v1911
    %v1913 = vpop.xlane.xlu0 %1912
    %v1914 = vsel %vm1662, %v1910, 0.0
    %1915 = vadd.xlane.f32.xlu0 %v1914
    %v1916 = vpop.xlane.xlu0 %1915
    %v1917 = vmul.f32 %v1913, %v1666
    %v1918 = vmul.f32 %v1916, %v1666
    %v1919 = vadd.f32 %v1917, 1e-05
    %v1920 = vadd.f32 %v1918, 1e-05
    %v1921 = vrsqrt.pop %v1919
    %v1922 = vrsqrt.pop %v1920
    %v1923 = vmul.f32 %v1907, %v1921
    %v1924 = vmul.f32 %v1908, %v1922
    %v1926 = vlaneseq
    %v1927 = vshrl.u32 %v1926, 7
    %v1928 = vsub.s32 0, %v1927
    %v1929 = vrot.slane %v1897, %v1928
    %v1931 = vmul.f32 %v1923, %v1929
    %v1932 = vmul.f32 %v1924, %v1929
    %v1934 = vlaneseq
    %v1935 = vshrl.u32 %v1934, 7
    %v1936 = vsub.s32 0, %v1935
    %v1937 = vrot.slane %v1898, %v1936
    %v1939 = vadd.f32 %v1931, %v1937
    %v1940 = vadd.f32 %v1932, %v1937
    %s1941 = scalar_lea.vmem %s7, 32
    %v1942 = vld [vmem:[%s1941] sm:$0xff]
    %v1943 = vld [vmem:[%s1941 + $0x8] sm:$0xff]
    %v1944 = vld [vmem:[%s1941 + $0x10] sm:$0xff]
    %v1945 = vld [vmem:[%s1941 + $0x18] sm:$0xff]
    %s1946 = scalar_lea.vmem %s8, 1
    %v1947 = vld [vmem:[%s1946] sm:$0x1]
    %v1949 = vlaneseq
    %v1950 = vshrl.u32 %v1949, 7
    %v1951 = vsub.s32 0, %v1950
    %v1952 = vrot.slane %v1947, %v1951
    %v1955 = vsel %vm303, %v1939, 0
    %v1958 = vsel %vm303, %v1940, 0
    %1960 = vmatprep.subr.mxu0 0.0
    %1961 = vmatpush1.msra.mxu0 0.0
    %1962 = vmatprep.subr.mxu0 0.0
    %1963 = vmatpush1.msra.mxu0 0.0
    %1964 = vmatprep.subr.mxu0 0.0
    %1965 = vmatpush1.msra.mxu0 0.0
    %1966 = vmatprep.subr.mxu0 0.0
    %1967 = vmatpush1.msra.mxu0 0.0
    %1968 = vmatprep.subr.mxu0 0.0
    %1969 = vmatpush1.msra.mxu0 0.0
    %1970 = vmatprep.subr.mxu0 0.0
    %1971 = vmatpush1.msra.mxu0 0.0
    %1972 = vmatprep.subr.mxu0 0.0
    %1973 = vmatpush1.msra.mxu0 0.0
    %1974 = vmatprep.subr.mxu0 0.0
    %1975 = vmatpush1.msra.mxu0 0.0
    %1976 = vmatprep.subr.mxu0 0.0
    %1977 = vmatpush1.msra.mxu0 0.0
    %1978 = vmatprep.subr.mxu0 0.0
    %1979 = vmatpush1.msra.mxu0 0.0
    %1980 = vmatprep.subr.mxu0 0.0
    %1981 = vmatpush1.msra.mxu0 0.0
    %1982 = vmatprep.subr.mxu0 0.0
    %1983 = vmatpush1.msra.mxu0 0.0
    %1984 = vmatprep.subr.mxu0 0.0
    %1985 = vmatpush1.msra.mxu0 %v1945
    %1986 = vmatprep.subr.mxu0 0.0
    %1987 = vmatpush1.msra.mxu0 %v1944
    %1988 = vmatprep.subr.mxu0 0.0
    %1989 = vmatpush1.msra.mxu0 %v1943
    %1990 = vmatprep.subr.mxu0 0.0
    %1991 = vmatpush1.msra.mxu0 %v1942
    %1992 = vmatprep.subr.mxu0 0.0
    %1993 = vmatpush2.msra.mxu0 0.0
    %1994 = vmatprep.subr.mxu0 0.0
    %1995 = vmatpush2.msra.mxu0 0.0
    %1996 = vmatprep.subr.mxu0 0.0
    %1997 = vmatpush2.msra.mxu0 0.0
    %1998 = vmatprep.subr.mxu0 0.0
    %1999 = vmatpush2.msra.mxu0 0.0
    %2000 = vmatprep.subr.mxu0 0.0
    %2001 = vmatpush2.msra.mxu0 0.0
    %2002 = vmatprep.subr.mxu0 0.0
    %2003 = vmatpush2.msra.mxu0 0.0
    %2004 = vmatprep.subr.mxu0 0.0
    %2005 = vmatpush2.msra.mxu0 0.0
    %2006 = vmatprep.subr.mxu0 0.0
    %2007 = vmatpush2.msra.mxu0 0.0
    %2008 = vmatprep.subr.mxu0 0.0
    %2009 = vmatpush2.msra.mxu0 0.0
    %2010 = vmatprep.subr.mxu0 0.0
    %2011 = vmatpush2.msra.mxu0 0.0
    %2012 = vmatprep.subr.mxu0 0.0
    %2013 = vmatpush2.msra.mxu0 0.0
    %2014 = vmatprep.subr.mxu0 0.0
    %2015 = vmatpush2.msra.mxu0 0.0
    %2016 = vmatprep.subr.mxu0 0.0
    %2017 = vmatpush2.msra.mxu0 0.0
    %2018 = vmatprep.subr.mxu0 0.0
    %2019 = vmatpush2.msra.mxu0 0.0
    %2020 = vmatprep.subr.mxu0 0.0
    %2021 = vmatpush2.msra.mxu0 0.0
    %2022 = vmatprep.subr.mxu0 0.0
    %2023 = vmatpush2.msra.mxu0 0.0
    %2024 = vmatprep.mubr.f32.mxu0 0.0
    %2025 = vmatmul.mubr.f32.gmra.mxu0 %v1955
    %v2026 = vpop.f32.mrf.mxu0
    %v2027 = vadd.f32 %v1952, %v2026
    %v2028 = vpop.f32.mrf.mxu0
    %2029 = vmatprep.mubr.f32.mxu0 0.0
    %2030 = vmatmul.mubr.f32.gmra.mxu0 %v1958
    %v2031 = vpop.f32.mrf.mxu0
    %v2032 = vadd.f32 %v1952, %v2031
    %v2033 = vpop.f32.mrf.mxu0
    %2034 = vdwg.mxu0
    %v2037 = vcombine.high %v2027, %v2027
    %v2039 = vunpack.c.l.s4 1983009808
    %v2040 = vunpack.c.0.s8 %v2039
    %v2041 = vlaneseq
    %v2042 = vshrl.u32 %v2041, 7
    %v2043 = vsub.s32 %v2040, %v2042
    %v2044 = vrot.slane %v2027, %v2043
    %v2046 = vunpack.c.l.s4 1983009808
    %v2047 = vunpack.c.0.s8 %v2046
    %v2048 = vlaneseq
    %v2049 = vshrl.u32 %v2048, 7
    %v2050 = vsub.s32 %v2047, %v2049
    %v2051 = vrot.slane %v2037, %v2050
    %v2052 = vcombine.high %v2044, %v2044
    %v2053 = vcombine.high %v2051, %v2051
    %v2055 = vunpack.c.l.s4 1983009808
    %v2056 = vunpack.c.0.s8 %v2055
    %v2057 = vlaneseq
    %v2058 = vshrl.u32 %v2057, 7
    %v2059 = vsub.s32 %v2056, %v2058
    %v2060 = vrot.slane %v2032, %v2059
    %v2061 = vcombine.high %v2060, %v2060
    %v2068 = vmul.f32 %v2044, %v524
    %v2069 = vmul.f32 %v2052, %v526
    %v2070 = vmul.f32 %v2051, %v528
    %v2071 = vmul.f32 %v2044, %v530
    %v2072 = vmul.f32 %v2052, %v532
    %v2073 = vmul.f32 %v2051, %v534
    %v2074 = vmul.f32 %v2044, %v536
    %v2075 = vmul.f32 %v2052, %v538
    %v2076 = vmul.f32 %v2051, %v540
    %v2077 = vmul.f32 %v2044, %v542
    %v2078 = vmul.f32 %v2052, %v544
    %v2079 = vmul.f32 %v2051, %v546
    %v2080 = vmul.f32 %v2053, %v524
    %v2081 = vmul.f32 %v2060, %v526
    %v2082 = vmul.f32 %v2061, %v528
    %v2083 = vmul.f32 %v2053, %v530
    %v2084 = vmul.f32 %v2060, %v532
    %v2085 = vmul.f32 %v2061, %v534
    %v2086 = vmul.f32 %v2053, %v536
    %v2087 = vmul.f32 %v2060, %v538
    %v2088 = vmul.f32 %v2061, %v540
    %v2089 = vmul.f32 %v2053, %v542
    %v2090 = vmul.f32 %v2060, %v544
    %v2091 = vmul.f32 %v2061, %v546
    %v2092 = vmul.f32 %v2044, %v584
    %v2093 = vmul.f32 %v2052, %v586
    %v2094 = vmul.f32 %v2051, %v588
    %v2095 = vmul.f32 %v2044, %v590
    %v2096 = vmul.f32 %v2052, %v592
    %v2097 = vmul.f32 %v2051, %v594
    %v2098 = vmul.f32 %v2044, %v596
    %v2099 = vmul.f32 %v2052, %v598
    %v2100 = vmul.f32 %v2051, %v600
    %v2101 = vmul.f32 %v2044, %v602
    %v2102 = vmul.f32 %v2052, %v604
    %v2103 = vmul.f32 %v2051, %v606
    %v2104 = vmul.f32 %v2053, %v584
    %v2105 = vmul.f32 %v2060, %v586
    %v2106 = vmul.f32 %v2061, %v588
    %v2107 = vmul.f32 %v2053, %v590
    %v2108 = vmul.f32 %v2060, %v592
    %v2109 = vmul.f32 %v2061, %v594
    %v2110 = vmul.f32 %v2053, %v596
    %v2111 = vmul.f32 %v2060, %v598
    %v2112 = vmul.f32 %v2061, %v600
    %v2113 = vmul.f32 %v2053, %v602
    %v2114 = vmul.f32 %v2060, %v604
    %v2115 = vmul.f32 %v2061, %v606
    %v2116 = vcombine.low %v2044, %v2052
    %v2118 = vunpack.c.l.s4 1983009808
    %v2119 = vunpack.c.0.s8 %v2118
    %v2120 = vlaneseq
    %v2121 = vshrl.u32 %v2120, 7
    %v2122 = vsub.s32 %v2119, %v2121
    %v2123 = vrot.slane %v2116, %v2122
    %v2125 = vunpack.c.l.s4 1983009808
    %v2126 = vunpack.c.0.s8 %v2125
    %v2127 = vlaneseq
    %v2128 = vshrl.u32 %v2127, 7
    %v2129 = vsub.s32 %v2126, %v2128
    %v2130 = vrot.slane %v2051, %v2129
    %v2131 = vcombine.low %v2123, %v2130
    %v2144 = vcombine.low %v2068, %v2069
    %v2145 = vcombine.low %v2070, %v2071
    %v2147 = vunpack.c.l.s4 1983009808
    %v2148 = vunpack.c.0.s8 %v2147
    %v2149 = vlaneseq
    %v2150 = vshrl.u32 %v2149, 7
    %v2151 = vsub.s32 %v2148, %v2150
    %v2152 = vrot.slane %v2144, %v2151
    %v2154 = vunpack.c.l.s4 1983009808
    %v2155 = vunpack.c.0.s8 %v2154
    %v2156 = vlaneseq
    %v2157 = vshrl.u32 %v2156, 7
    %v2158 = vsub.s32 %v2155, %v2157
    %v2159 = vrot.slane %v2145, %v2158
    %v2160 = vcombine.low %v2152, %v2159
    %v2161 = vcombine.low %v2072, %v2073
    %v2162 = vcombine.low %v2074, %v2075
    %v2164 = vunpack.c.l.s4 1983009808
    %v2165 = vunpack.c.0.s8 %v2164
    %v2166 = vlaneseq
    %v2167 = vshrl.u32 %v2166, 7
    %v2168 = vsub.s32 %v2165, %v2167
    %v2169 = vrot.slane %v2161, %v2168
    %v2171 = vunpack.c.l.s4 1983009808
    %v2172 = vunpack.c.0.s8 %v2171
    %v2173 = vlaneseq
    %v2174 = vshrl.u32 %v2173, 7
    %v2175 = vsub.s32 %v2172, %v2174
    %v2176 = vrot.slane %v2162, %v2175
    %v2177 = vcombine.low %v2169, %v2176
    %v2178 = vcombine.low %v2076, %v2077
    %v2179 = vcombine.low %v2078, %v2079
    %v2181 = vunpack.c.l.s4 1983009808
    %v2182 = vunpack.c.0.s8 %v2181
    %v2183 = vlaneseq
    %v2184 = vshrl.u32 %v2183, 7
    %v2185 = vsub.s32 %v2182, %v2184
    %v2186 = vrot.slane %v2178, %v2185
    %v2188 = vunpack.c.l.s4 1983009808
    %v2189 = vunpack.c.0.s8 %v2188
    %v2190 = vlaneseq
    %v2191 = vshrl.u32 %v2190, 7
    %v2192 = vsub.s32 %v2189, %v2191
    %v2193 = vrot.slane %v2179, %v2192
    %v2194 = vcombine.low %v2186, %v2193
    %2195 = vrot.lane.b32.xlu0 %v2160, 96
    %v2196 = vpop.permute.xlu0 %2195
    %2197 = vrot.lane.b32.xlu0 %v2177, 96
    %v2198 = vpop.permute.xlu0 %2197
    %2199 = vrot.lane.b32.xlu0 %v2194, 96
    %v2200 = vpop.permute.xlu0 %2199
    %v2201 = vsel %vm303, %v2131, 0
    %v2203 = vsel %vm303, %v2196, 0
    %v2205 = vsel %vm303, %v2198, 0
    %v2207 = vsel %vm303, %v2200, 0
    %2209 = vmatprep.subr.mxu0 0.0
    %2210 = vmatpush1.xpose.msra.mxu0 0.0
    %2211 = vmatprep.subr.mxu0 0.0
    %2212 = vmatpush1.xpose.msra.mxu0 0.0
    %2213 = vmatprep.subr.mxu0 0.0
    %2214 = vmatpush1.xpose.msra.mxu0 0.0
    %2215 = vmatprep.subr.mxu0 0.0
    %2216 = vmatpush1.xpose.msra.mxu0 0.0
    %2217 = vmatprep.subr.mxu0 0.0
    %2218 = vmatpush1.xpose.msra.mxu0 0.0
    %2219 = vmatprep.subr.mxu0 0.0
    %2220 = vmatpush1.xpose.msra.mxu0 0.0
    %2221 = vmatprep.subr.mxu0 0.0
    %2222 = vmatpush1.xpose.msra.mxu0 0.0
    %2223 = vmatprep.subr.mxu0 0.0
    %2224 = vmatpush1.xpose.msra.mxu0 0.0
    %2225 = vmatprep.subr.mxu0 0.0
    %2226 = vmatpush1.xpose.msra.mxu0 0.0
    %2227 = vmatprep.subr.mxu0 0.0
    %2228 = vmatpush1.xpose.msra.mxu0 0.0
    %2229 = vmatprep.subr.mxu0 0.0
    %2230 = vmatpush1.xpose.msra.mxu0 0.0
    %2231 = vmatprep.subr.mxu0 0.0
    %2232 = vmatpush1.xpose.msra.mxu0 0.0
    %2233 = vmatprep.subr.mxu0 0.0
    %2234 = vmatpush1.xpose.msra.mxu0 0.0
    %2235 = vmatprep.subr.mxu0 0.0
    %2236 = vmatpush1.xpose.msra.mxu0 %v2207
    %2237 = vmatprep.subr.mxu0 0.0
    %2238 = vmatpush1.xpose.msra.mxu0 %v2205
    %2239 = vmatprep.subr.mxu0 0.0
    %2240 = vmatpush1.xpose.msra.mxu0 %v2203
    %2241 = vmatprep.subr.mxu0 0.0
    %2242 = vmatpush2.xpose.msra.mxu0 0.0
    %2243 = vmatprep.subr.mxu0 0.0
    %2244 = vmatpush2.xpose.msra.mxu0 0.0
    %2245 = vmatprep.subr.mxu0 0.0
    %2246 = vmatpush2.xpose.msra.mxu0 0.0
    %2247 = vmatprep.subr.mxu0 0.0
    %2248 = vmatpush2.xpose.msra.mxu0 0.0
    %2249 = vmatprep.subr.mxu0 0.0
    %2250 = vmatpush2.xpose.msra.mxu0 0.0
    %2251 = vmatprep.subr.mxu0 0.0
    %2252 = vmatpush2.xpose.msra.mxu0 0.0
    %2253 = vmatprep.subr.mxu0 0.0
    %2254 = vmatpush2.xpose.msra.mxu0 0.0
    %2255 = vmatprep.subr.mxu0 0.0
    %2256 = vmatpush2.xpose.msra.mxu0 0.0
    %2257 = vmatprep.subr.mxu0 0.0
    %2258 = vmatpush2.xpose.msra.mxu0 0.0
    %2259 = vmatprep.subr.mxu0 0.0
    %2260 = vmatpush2.xpose.msra.mxu0 0.0
    %2261 = vmatprep.subr.mxu0 0.0
    %2262 = vmatpush2.xpose.msra.mxu0 0.0
    %2263 = vmatprep.subr.mxu0 0.0
    %2264 = vmatpush2.xpose.msra.mxu0 0.0
    %2265 = vmatprep.subr.mxu0 0.0
    %2266 = vmatpush2.xpose.msra.mxu0 0.0
    %2267 = vmatprep.subr.mxu0 0.0
    %2268 = vmatpush2.xpose.msra.mxu0 0.0
    %2269 = vmatprep.subr.mxu0 0.0
    %2270 = vmatpush2.xpose.msra.mxu0 0.0
    %2271 = vmatprep.subr.mxu0 0.0
    %2272 = vmatpush2.xpose.msra.mxu0 0.0
    %2273 = vmatprep.mubr.f32.mxu0 0.0
    %2274 = vmatmul.mubr.f32.gmra.mxu0 %v2201
    %v2275 = vpop.f32.mrf.mxu0
    %v2276 = vadd.f32 %v646, %v2275
    %v2277 = vpop.f32.mrf.mxu0
    %2278 = vdwg.mxu0
    %v2279 = vcombine.low %v2053, %v2060
    %v2281 = vunpack.c.l.s4 1983009808
    %v2282 = vunpack.c.0.s8 %v2281
    %v2283 = vlaneseq
    %v2284 = vshrl.u32 %v2283, 7
    %v2285 = vsub.s32 %v2282, %v2284
    %v2286 = vrot.slane %v2279, %v2285
    %v2288 = vunpack.c.l.s4 1983009808
    %v2289 = vunpack.c.0.s8 %v2288
    %v2290 = vlaneseq
    %v2291 = vshrl.u32 %v2290, 7
    %v2292 = vsub.s32 %v2289, %v2291
    %v2293 = vrot.slane %v2061, %v2292
    %v2294 = vcombine.low %v2286, %v2293
    %v2307 = vcombine.low %v2080, %v2081
    %v2308 = vcombine.low %v2082, %v2083
    %v2310 = vunpack.c.l.s4 1983009808
    %v2311 = vunpack.c.0.s8 %v2310
    %v2312 = vlaneseq
    %v2313 = vshrl.u32 %v2312, 7
    %v2314 = vsub.s32 %v2311, %v2313
    %v2315 = vrot.slane %v2307, %v2314
    %v2317 = vunpack.c.l.s4 1983009808
    %v2318 = vunpack.c.0.s8 %v2317
    %v2319 = vlaneseq
    %v2320 = vshrl.u32 %v2319, 7
    %v2321 = vsub.s32 %v2318, %v2320
    %v2322 = vrot.slane %v2308, %v2321
    %v2323 = vcombine.low %v2315, %v2322
    %v2324 = vcombine.low %v2084, %v2085
    %v2325 = vcombine.low %v2086, %v2087
    %v2327 = vunpack.c.l.s4 1983009808
    %v2328 = vunpack.c.0.s8 %v2327
    %v2329 = vlaneseq
    %v2330 = vshrl.u32 %v2329, 7
    %v2331 = vsub.s32 %v2328, %v2330
    %v2332 = vrot.slane %v2324, %v2331
    %v2334 = vunpack.c.l.s4 1983009808
    %v2335 = vunpack.c.0.s8 %v2334
    %v2336 = vlaneseq
    %v2337 = vshrl.u32 %v2336, 7
    %v2338 = vsub.s32 %v2335, %v2337
    %v2339 = vrot.slane %v2325, %v2338
    %v2340 = vcombine.low %v2332, %v2339
    %v2341 = vcombine.low %v2088, %v2089
    %v2342 = vcombine.low %v2090, %v2091
    %v2344 = vunpack.c.l.s4 1983009808
    %v2345 = vunpack.c.0.s8 %v2344
    %v2346 = vlaneseq
    %v2347 = vshrl.u32 %v2346, 7
    %v2348 = vsub.s32 %v2345, %v2347
    %v2349 = vrot.slane %v2341, %v2348
    %v2351 = vunpack.c.l.s4 1983009808
    %v2352 = vunpack.c.0.s8 %v2351
    %v2353 = vlaneseq
    %v2354 = vshrl.u32 %v2353, 7
    %v2355 = vsub.s32 %v2352, %v2354
    %v2356 = vrot.slane %v2342, %v2355
    %v2357 = vcombine.low %v2349, %v2356
    %2358 = vrot.lane.b32.xlu0 %v2323, 96
    %v2359 = vpop.permute.xlu0 %2358
    %2360 = vrot.lane.b32.xlu0 %v2340, 96
    %v2361 = vpop.permute.xlu0 %2360
    %2362 = vrot.lane.b32.xlu0 %v2357, 96
    %v2363 = vpop.permute.xlu0 %2362
    %v2364 = vsel %vm303, %v2294, 0
    %v2366 = vsel %vm303, %v2359, 0
    %v2368 = vsel %vm303, %v2361, 0
    %v2370 = vsel %vm303, %v2363, 0
    %2372 = vmatprep.subr.mxu0 0.0
    %2373 = vmatpush1.xpose.msra.mxu0 0.0
    %2374 = vmatprep.subr.mxu0 0.0
    %2375 = vmatpush1.xpose.msra.mxu0 0.0
    %2376 = vmatprep.subr.mxu0 0.0
    %2377 = vmatpush1.xpose.msra.mxu0 0.0
    %2378 = vmatprep.subr.mxu0 0.0
    %2379 = vmatpush1.xpose.msra.mxu0 0.0
    %2380 = vmatprep.subr.mxu0 0.0
    %2381 = vmatpush1.xpose.msra.mxu0 0.0
    %2382 = vmatprep.subr.mxu0 0.0
    %2383 = vmatpush1.xpose.msra.mxu0 0.0
    %2384 = vmatprep.subr.mxu0 0.0
    %2385 = vmatpush1.xpose.msra.mxu0 0.0
    %2386 = vmatprep.subr.mxu0 0.0
    %2387 = vmatpush1.xpose.msra.mxu0 0.0
    %2388 = vmatprep.subr.mxu0 0.0
    %2389 = vmatpush1.xpose.msra.mxu0 0.0
    %2390 = vmatprep.subr.mxu0 0.0
    %2391 = vmatpush1.xpose.msra.mxu0 0.0
    %2392 = vmatprep.subr.mxu0 0.0
    %2393 = vmatpush1.xpose.msra.mxu0 0.0
    %2394 = vmatprep.subr.mxu0 0.0
    %2395 = vmatpush1.xpose.msra.mxu0 0.0
    %2396 = vmatprep.subr.mxu0 0.0
    %2397 = vmatpush1.xpose.msra.mxu0 0.0
    %2398 = vmatprep.subr.mxu0 0.0
    %2399 = vmatpush1.xpose.msra.mxu0 %v2370
    %2400 = vmatprep.subr.mxu0 0.0
    %2401 = vmatpush1.xpose.msra.mxu0 %v2368
    %2402 = vmatprep.subr.mxu0 0.0
    %2403 = vmatpush1.xpose.msra.mxu0 %v2366
    %2404 = vmatprep.subr.mxu0 0.0
    %2405 = vmatpush2.xpose.msra.mxu0 0.0
    %2406 = vmatprep.subr.mxu0 0.0
    %2407 = vmatpush2.xpose.msra.mxu0 0.0
    %2408 = vmatprep.subr.mxu0 0.0
    %2409 = vmatpush2.xpose.msra.mxu0 0.0
    %2410 = vmatprep.subr.mxu0 0.0
    %2411 = vmatpush2.xpose.msra.mxu0 0.0
    %2412 = vmatprep.subr.mxu0 0.0
    %2413 = vmatpush2.xpose.msra.mxu0 0.0
    %2414 = vmatprep.subr.mxu0 0.0
    %2415 = vmatpush2.xpose.msra.mxu0 0.0
    %2416 = vmatprep.subr.mxu0 0.0
    %2417 = vmatpush2.xpose.msra.mxu0 0.0
    %2418 = vmatprep.subr.mxu0 0.0
    %2419 = vmatpush2.xpose.msra.mxu0 0.0
    %2420 = vmatprep.subr.mxu0 0.0
    %2421 = vmatpush2.xpose.msra.mxu0 0.0
    %2422 = vmatprep.subr.mxu0 0.0
    %2423 = vmatpush2.xpose.msra.mxu0 0.0
    %2424 = vmatprep.subr.mxu0 0.0
    %2425 = vmatpush2.xpose.msra.mxu0 0.0
    %2426 = vmatprep.subr.mxu0 0.0
    %2427 = vmatpush2.xpose.msra.mxu0 0.0
    %2428 = vmatprep.subr.mxu0 0.0
    %2429 = vmatpush2.xpose.msra.mxu0 0.0
    %2430 = vmatprep.subr.mxu0 0.0
    %2431 = vmatpush2.xpose.msra.mxu0 0.0
    %2432 = vmatprep.subr.mxu0 0.0
    %2433 = vmatpush2.xpose.msra.mxu0 0.0
    %2434 = vmatprep.subr.mxu0 0.0
    %2435 = vmatpush2.xpose.msra.mxu0 0.0
    %2436 = vmatprep.mubr.f32.mxu0 0.0
    %2437 = vmatmul.mubr.f32.gmra.mxu0 %v2364
    %v2438 = vpop.f32.mrf.mxu0
    %v2439 = vadd.f32 %v650, %v2438
    %v2440 = vpop.f32.mrf.mxu0
    %2441 = vdwg.mxu0
    %v2442 = vsel %vm979, %v2276, -inf
    %2443 = vmax.xlane.f32.xlu0 %v2442
    %v2444 = vpop.xlane.xlu0 %2443
    %v2445 = vsel %vm979, %v2439, -inf
    %2446 = vmax.xlane.f32.xlu0 %v2445
    %v2447 = vpop.xlane.xlu0 %2446
    %v2448 = vsub.f32 %v2276, %v2444
    %v2449 = vsub.f32 %v2439, %v2447
    %v2450 = vmul.f32 %v2448, 1.442695
    %v2451 = vpow.pop %v2450
    %v2452 = vmul.f32 %v2449, 1.442695
    %v2453 = vpow.pop %v2452
    %v2456 = vcombine.high %v2451, %v2451
    %v2458 = vunpack.c.l.s4 1983009808
    %v2459 = vunpack.c.0.s8 %v2458
    %v2460 = vlaneseq
    %v2461 = vshrl.u32 %v2460, 7
    %v2462 = vsub.s32 %v2459, %v2461
    %v2463 = vrot.slane %v2451, %v2462
    %v2465 = vunpack.c.l.s4 1983009808
    %v2466 = vunpack.c.0.s8 %v2465
    %v2467 = vlaneseq
    %v2468 = vshrl.u32 %v2467, 7
    %v2469 = vsub.s32 %v2466, %v2468
    %v2470 = vrot.slane %v2456, %v2469
    %v2471 = vcombine.high %v2463, %v2463
    %v2472 = vcombine.high %v2453, %v2453
    %v2474 = vunpack.c.l.s4 1983009808
    %v2475 = vunpack.c.0.s8 %v2474
    %v2476 = vlaneseq
    %v2477 = vshrl.u32 %v2476, 7
    %v2478 = vsub.s32 %v2475, %v2477
    %v2479 = vrot.slane %v2453, %v2478
    %v2481 = vunpack.c.l.s4 1983009808
    %v2482 = vunpack.c.0.s8 %v2481
    %v2483 = vlaneseq
    %v2484 = vshrl.u32 %v2483, 7
    %v2485 = vsub.s32 %v2482, %v2484
    %v2486 = vrot.slane %v2472, %v2485
    %v2487 = vcombine.high %v2479, %v2479
    %v2494 = vcombine.low %v2463, %v2471
    %v2495 = vcombine.low %v2470, %v2479
    %v2497 = vunpack.c.l.s4 1983009808
    %v2498 = vunpack.c.0.s8 %v2497
    %v2499 = vlaneseq
    %v2500 = vshrl.u32 %v2499, 7
    %v2501 = vsub.s32 %v2498, %v2500
    %v2502 = vrot.slane %v2494, %v2501
    %v2504 = vunpack.c.l.s4 1983009808
    %v2505 = vunpack.c.0.s8 %v2504
    %v2506 = vlaneseq
    %v2507 = vshrl.u32 %v2506, 7
    %v2508 = vsub.s32 %v2505, %v2507
    %v2509 = vrot.slane %v2495, %v2508
    %v2510 = vcombine.low %v2502, %v2509
    %v2511 = vcombine.low %v2487, %v2486
    %v2513 = vunpack.c.l.s4 1983009808
    %v2514 = vunpack.c.0.s8 %v2513
    %v2515 = vlaneseq
    %v2516 = vshrl.u32 %v2515, 7
    %v2517 = vsub.s32 %v2514, %v2516
    %v2518 = vrot.slane %v2511, %v2517
    %v2519 = vsel %vm1057, %v2510, 0
    %v2521 = vsel %vm1057, %v2518, 0
    %2523 = vmatprep.subr.mxu0 0.0
    %2524 = vmatpush1.msra.mxu0 0.0
    %2525 = vmatprep.subr.mxu0 0.0
    %2526 = vmatpush1.msra.mxu0 0.0
    %2527 = vmatprep.subr.mxu0 0.0
    %2528 = vmatpush1.msra.mxu0 0.0
    %2529 = vmatprep.subr.mxu0 0.0
    %2530 = vmatpush1.msra.mxu0 0.0
    %2531 = vmatprep.subr.mxu0 0.0
    %2532 = vmatpush1.msra.mxu0 0.0
    %2533 = vmatprep.subr.mxu0 0.0
    %2534 = vmatpush1.msra.mxu0 0.0
    %2535 = vmatprep.subr.mxu0 0.0
    %2536 = vmatpush1.msra.mxu0 0.0
    %2537 = vmatprep.subr.mxu0 0.0
    %2538 = vmatpush1.msra.mxu0 0.0
    %2539 = vmatprep.subr.mxu0 0.0
    %2540 = vmatpush1.msra.mxu0 0.0
    %2541 = vmatprep.subr.mxu0 0.0
    %2542 = vmatpush1.msra.mxu0 0.0
    %2543 = vmatprep.subr.mxu0 0.0
    %2544 = vmatpush1.msra.mxu0 0.0
    %2545 = vmatprep.subr.mxu0 0.0
    %2546 = vmatpush1.msra.mxu0 0.0
    %2547 = vmatprep.subr.mxu0 0.0
    %2548 = vmatpush1.msra.mxu0 0.0
    %2549 = vmatprep.subr.mxu0 0.0
    %2550 = vmatpush1.msra.mxu0 %v291
    %2551 = vmatprep.subr.mxu0 0.0
    %2552 = vmatpush1.msra.mxu0 %v290
    %2553 = vmatprep.subr.mxu0 0.0
    %2554 = vmatpush1.msra.mxu0 %v289
    %2555 = vmatprep.subr.mxu0 0.0
    %2556 = vmatpush2.msra.mxu0 0.0
    %2557 = vmatprep.subr.mxu0 0.0
    %2558 = vmatpush2.msra.mxu0 0.0
    %2559 = vmatprep.subr.mxu0 0.0
    %2560 = vmatpush2.msra.mxu0 0.0
    %2561 = vmatprep.subr.mxu0 0.0
    %2562 = vmatpush2.msra.mxu0 0.0
    %2563 = vmatprep.subr.mxu0 0.0
    %2564 = vmatpush2.msra.mxu0 0.0
    %2565 = vmatprep.subr.mxu0 0.0
    %2566 = vmatpush2.msra.mxu0 0.0
    %2567 = vmatprep.subr.mxu0 0.0
    %2568 = vmatpush2.msra.mxu0 0.0
    %2569 = vmatprep.subr.mxu0 0.0
    %2570 = vmatpush2.msra.mxu0 0.0
    %2571 = vmatprep.subr.mxu0 0.0
    %2572 = vmatpush2.msra.mxu0 0.0
    %2573 = vmatprep.subr.mxu0 0.0
    %2574 = vmatpush2.msra.mxu0 0.0
    %2575 = vmatprep.subr.mxu0 0.0
    %2576 = vmatpush2.msra.mxu0 0.0
    %2577 = vmatprep.subr.mxu0 0.0
    %2578 = vmatpush2.msra.mxu0 0.0
    %2579 = vmatprep.subr.mxu0 0.0
    %2580 = vmatpush2.msra.mxu0 0.0
    %2581 = vmatprep.subr.mxu0 0.0
    %2582 = vmatpush2.msra.mxu0 0.0
    %2583 = vmatprep.subr.mxu0 0.0
    %2584 = vmatpush2.msra.mxu0 0.0
    %2585 = vmatprep.subr.mxu0 0.0
    %2586 = vmatpush2.msra.mxu0 0.0
    %2587 = vmatprep.mubr.f32.mxu0 0.0
    %2588 = vmatmul.mubr.f32.gmra.mxu0 %v2519
    %v2589 = vpop.f32.mrf.mxu0
    %v2590 = vadd.f32 0.0, %v2589
    %v2591 = vpop.f32.mrf.mxu0
    %2592 = vmatprep.mubr.f32.mxu0 0.0
    %2593 = vmatmul.mubr.f32.gmra.mxu0 %v2521
    %v2594 = vpop.f32.mrf.mxu0
    %v2595 = vadd.f32 0.0, %v2594
    %v2596 = vpop.f32.mrf.mxu0
    %2597 = vdwg.mxu0
    %v2598 = vmax.f32 %v2590, 1e-30
    %v2599 = vmax.f32 %v2595, 1e-30
    %v2600 = vrcp.pop %v2598
    %v2601 = vrcp.pop %v2599
    %v2604 = vcombine.high %v2600, %v2600
    %v2606 = vunpack.c.l.s4 1983009808
    %v2607 = vunpack.c.0.s8 %v2606
    %v2608 = vlaneseq
    %v2609 = vshrl.u32 %v2608, 7
    %v2610 = vsub.s32 %v2607, %v2609
    %v2611 = vrot.slane %v2600, %v2610
    %v2613 = vunpack.c.l.s4 1983009808
    %v2614 = vunpack.c.0.s8 %v2613
    %v2615 = vlaneseq
    %v2616 = vshrl.u32 %v2615, 7
    %v2617 = vsub.s32 %v2614, %v2616
    %v2618 = vrot.slane %v2604, %v2617
    %v2619 = vcombine.high %v2611, %v2611
    %v2620 = vcombine.high %v2618, %v2618
    %v2622 = vunpack.c.l.s4 1983009808
    %v2623 = vunpack.c.0.s8 %v2622
    %v2624 = vlaneseq
    %v2625 = vshrl.u32 %v2624, 7
    %v2626 = vsub.s32 %v2623, %v2625
    %v2627 = vrot.slane %v2601, %v2626
    %v2628 = vcombine.high %v2627, %v2627
    %v2635 = vmul.f32 %v2463, %v2611
    %v2636 = vmul.f32 %v2471, %v2619
    %v2637 = vmul.f32 %v2470, %v2618
    %v2638 = vmul.f32 %v2479, %v2620
    %v2639 = vmul.f32 %v2487, %v2627
    %v2640 = vmul.f32 %v2486, %v2628
    %v2644 = vcombine.low %v2635, %v2636
    %v2646 = vunpack.c.l.s4 1983009808
    %v2647 = vunpack.c.0.s8 %v2646
    %v2648 = vlaneseq
    %v2649 = vshrl.u32 %v2648, 7
    %v2650 = vsub.s32 %v2647, %v2649
    %v2651 = vrot.slane %v2644, %v2650
    %v2653 = vunpack.c.l.s4 1983009808
    %v2654 = vunpack.c.0.s8 %v2653
    %v2655 = vlaneseq
    %v2656 = vshrl.u32 %v2655, 7
    %v2657 = vsub.s32 %v2654, %v2656
    %v2658 = vrot.slane %v2637, %v2657
    %v2659 = vcombine.low %v2651, %v2658
    %v2672 = vcombine.low %v2092, %v2093
    %v2673 = vcombine.low %v2094, %v2095
    %v2675 = vunpack.c.l.s4 1983009808
    %v2676 = vunpack.c.0.s8 %v2675
    %v2677 = vlaneseq
    %v2678 = vshrl.u32 %v2677, 7
    %v2679 = vsub.s32 %v2676, %v2678
    %v2680 = vrot.slane %v2672, %v2679
    %v2682 = vunpack.c.l.s4 1983009808
    %v2683 = vunpack.c.0.s8 %v2682
    %v2684 = vlaneseq
    %v2685 = vshrl.u32 %v2684, 7
    %v2686 = vsub.s32 %v2683, %v2685
    %v2687 = vrot.slane %v2673, %v2686
    %v2688 = vcombine.low %v2680, %v2687
    %v2689 = vcombine.low %v2096, %v2097
    %v2690 = vcombine.low %v2098, %v2099
    %v2692 = vunpack.c.l.s4 1983009808
    %v2693 = vunpack.c.0.s8 %v2692
    %v2694 = vlaneseq
    %v2695 = vshrl.u32 %v2694, 7
    %v2696 = vsub.s32 %v2693, %v2695
    %v2697 = vrot.slane %v2689, %v2696
    %v2699 = vunpack.c.l.s4 1983009808
    %v2700 = vunpack.c.0.s8 %v2699
    %v2701 = vlaneseq
    %v2702 = vshrl.u32 %v2701, 7
    %v2703 = vsub.s32 %v2700, %v2702
    %v2704 = vrot.slane %v2690, %v2703
    %v2705 = vcombine.low %v2697, %v2704
    %v2706 = vcombine.low %v2100, %v2101
    %v2707 = vcombine.low %v2102, %v2103
    %v2709 = vunpack.c.l.s4 1983009808
    %v2710 = vunpack.c.0.s8 %v2709
    %v2711 = vlaneseq
    %v2712 = vshrl.u32 %v2711, 7
    %v2713 = vsub.s32 %v2710, %v2712
    %v2714 = vrot.slane %v2706, %v2713
    %v2716 = vunpack.c.l.s4 1983009808
    %v2717 = vunpack.c.0.s8 %v2716
    %v2718 = vlaneseq
    %v2719 = vshrl.u32 %v2718, 7
    %v2720 = vsub.s32 %v2717, %v2719
    %v2721 = vrot.slane %v2707, %v2720
    %v2722 = vcombine.low %v2714, %v2721
    %2723 = vrot.lane.b32.xlu0 %v2688, 64
    %v2724 = vpop.permute.xlu0 %2723
    %2725 = vrot.lane.b32.xlu0 %v2705, 64
    %v2726 = vpop.permute.xlu0 %2725
    %2727 = vrot.lane.b32.xlu0 %v2722, 64
    %v2728 = vpop.permute.xlu0 %2727
    %v2732 = vsel %vm1057, %v2659, 0
    %2734 = vmatprep.subr.mxu0 0.0
    %2735 = vmatpush1.msra.mxu0 0.0
    %2736 = vmatprep.subr.mxu0 0.0
    %2737 = vmatpush1.msra.mxu0 0.0
    %2738 = vmatprep.subr.mxu0 0.0
    %2739 = vmatpush1.msra.mxu0 0.0
    %2740 = vmatprep.subr.mxu0 0.0
    %2741 = vmatpush1.msra.mxu0 0.0
    %2742 = vmatprep.subr.mxu0 0.0
    %2743 = vmatpush1.msra.mxu0 0.0
    %2744 = vmatprep.subr.mxu0 0.0
    %2745 = vmatpush1.msra.mxu0 0.0
    %2746 = vmatprep.subr.mxu0 0.0
    %2747 = vmatpush1.msra.mxu0 0.0
    %2748 = vmatprep.subr.mxu0 0.0
    %2749 = vmatpush1.msra.mxu0 0.0
    %2750 = vmatprep.subr.mxu0 0.0
    %2751 = vmatpush1.msra.mxu0 0.0
    %2752 = vmatprep.subr.mxu0 0.0
    %2753 = vmatpush1.msra.mxu0 0.0
    %2754 = vmatprep.subr.mxu0 0.0
    %2755 = vmatpush1.msra.mxu0 0.0
    %2756 = vmatprep.subr.mxu0 0.0
    %2757 = vmatpush1.msra.mxu0 0.0
    %2758 = vmatprep.subr.mxu0 0.0
    %2759 = vmatpush1.msra.mxu0 0.0
    %2760 = vmatprep.subr.mxu0 0.0
    %2761 = vmatpush1.msra.mxu0 %v2728
    %2762 = vmatprep.subr.mxu0 0.0
    %2763 = vmatpush1.msra.mxu0 %v2726
    %2764 = vmatprep.subr.mxu0 0.0
    %2765 = vmatpush1.msra.mxu0 %v2724
    %2766 = vmatprep.subr.mxu0 0.0
    %2767 = vmatpush2.msra.mxu0 0.0
    %2768 = vmatprep.subr.mxu0 0.0
    %2769 = vmatpush2.msra.mxu0 0.0
    %2770 = vmatprep.subr.mxu0 0.0
    %2771 = vmatpush2.msra.mxu0 0.0
    %2772 = vmatprep.subr.mxu0 0.0
    %2773 = vmatpush2.msra.mxu0 0.0
    %2774 = vmatprep.subr.mxu0 0.0
    %2775 = vmatpush2.msra.mxu0 0.0
    %2776 = vmatprep.subr.mxu0 0.0
    %2777 = vmatpush2.msra.mxu0 0.0
    %2778 = vmatprep.subr.mxu0 0.0
    %2779 = vmatpush2.msra.mxu0 0.0
    %2780 = vmatprep.subr.mxu0 0.0
    %2781 = vmatpush2.msra.mxu0 0.0
    %2782 = vmatprep.subr.mxu0 0.0
    %2783 = vmatpush2.msra.mxu0 0.0
    %2784 = vmatprep.subr.mxu0 0.0
    %2785 = vmatpush2.msra.mxu0 0.0
    %2786 = vmatprep.subr.mxu0 0.0
    %2787 = vmatpush2.msra.mxu0 0.0
    %2788 = vmatprep.subr.mxu0 0.0
    %2789 = vmatpush2.msra.mxu0 0.0
    %2790 = vmatprep.subr.mxu0 0.0
    %2791 = vmatpush2.msra.mxu0 0.0
    %2792 = vmatprep.subr.mxu0 0.0
    %2793 = vmatpush2.msra.mxu0 0.0
    %2794 = vmatprep.subr.mxu0 0.0
    %2795 = vmatpush2.msra.mxu0 0.0
    %2796 = vmatprep.subr.mxu0 0.0
    %2797 = vmatpush2.msra.mxu0 0.0
    %2798 = vmatprep.mubr.f32.mxu0 0.0
    %2799 = vmatmul.mubr.f32.gmra.mxu0 %v2732
    %v2800 = vpop.f32.mrf.mxu0
    %v2801 = vadd.f32 0.0, %v2800
    %v2802 = vpop.f32.mrf.mxu0
    %2803 = vdwg.mxu0
    %v2807 = vcombine.low %v2638, %v2639
    %v2809 = vunpack.c.l.s4 1983009808
    %v2810 = vunpack.c.0.s8 %v2809
    %v2811 = vlaneseq
    %v2812 = vshrl.u32 %v2811, 7
    %v2813 = vsub.s32 %v2810, %v2812
    %v2814 = vrot.slane %v2807, %v2813
    %v2816 = vunpack.c.l.s4 1983009808
    %v2817 = vunpack.c.0.s8 %v2816
    %v2818 = vlaneseq
    %v2819 = vshrl.u32 %v2818, 7
    %v2820 = vsub.s32 %v2817, %v2819
    %v2821 = vrot.slane %v2640, %v2820
    %v2822 = vcombine.low %v2814, %v2821
    %v2835 = vcombine.low %v2104, %v2105
    %v2836 = vcombine.low %v2106, %v2107
    %v2838 = vunpack.c.l.s4 1983009808
    %v2839 = vunpack.c.0.s8 %v2838
    %v2840 = vlaneseq
    %v2841 = vshrl.u32 %v2840, 7
    %v2842 = vsub.s32 %v2839, %v2841
    %v2843 = vrot.slane %v2835, %v2842
    %v2845 = vunpack.c.l.s4 1983009808
    %v2846 = vunpack.c.0.s8 %v2845
    %v2847 = vlaneseq
    %v2848 = vshrl.u32 %v2847, 7
    %v2849 = vsub.s32 %v2846, %v2848
    %v2850 = vrot.slane %v2836, %v2849
    %v2851 = vcombine.low %v2843, %v2850
    %v2852 = vcombine.low %v2108, %v2109
    %v2853 = vcombine.low %v2110, %v2111
    %v2855 = vunpack.c.l.s4 1983009808
    %v2856 = vunpack.c.0.s8 %v2855
    %v2857 = vlaneseq
    %v2858 = vshrl.u32 %v2857, 7
    %v2859 = vsub.s32 %v2856, %v2858
    %v2860 = vrot.slane %v2852, %v2859
    %v2862 = vunpack.c.l.s4 1983009808
    %v2863 = vunpack.c.0.s8 %v2862
    %v2864 = vlaneseq
    %v2865 = vshrl.u32 %v2864, 7
    %v2866 = vsub.s32 %v2863, %v2865
    %v2867 = vrot.slane %v2853, %v2866
    %v2868 = vcombine.low %v2860, %v2867
    %v2869 = vcombine.low %v2112, %v2113
    %v2870 = vcombine.low %v2114, %v2115
    %v2872 = vunpack.c.l.s4 1983009808
    %v2873 = vunpack.c.0.s8 %v2872
    %v2874 = vlaneseq
    %v2875 = vshrl.u32 %v2874, 7
    %v2876 = vsub.s32 %v2873, %v2875
    %v2877 = vrot.slane %v2869, %v2876
    %v2879 = vunpack.c.l.s4 1983009808
    %v2880 = vunpack.c.0.s8 %v2879
    %v2881 = vlaneseq
    %v2882 = vshrl.u32 %v2881, 7
    %v2883 = vsub.s32 %v2880, %v2882
    %v2884 = vrot.slane %v2870, %v2883
    %v2885 = vcombine.low %v2877, %v2884
    %2886 = vrot.lane.b32.xlu0 %v2851, 64
    %v2887 = vpop.permute.xlu0 %2886
    %2888 = vrot.lane.b32.xlu0 %v2868, 64
    %v2889 = vpop.permute.xlu0 %2888
    %2890 = vrot.lane.b32.xlu0 %v2885, 64
    %v2891 = vpop.permute.xlu0 %2890
    %v2895 = vsel %vm1057, %v2822, 0
    %2897 = vmatprep.subr.mxu0 0.0
    %2898 = vmatpush1.msra.mxu0 0.0
    %2899 = vmatprep.subr.mxu0 0.0
    %2900 = vmatpush1.msra.mxu0 0.0
    %2901 = vmatprep.subr.mxu0 0.0
    %2902 = vmatpush1.msra.mxu0 0.0
    %2903 = vmatprep.subr.mxu0 0.0
    %2904 = vmatpush1.msra.mxu0 0.0
    %2905 = vmatprep.subr.mxu0 0.0
    %2906 = vmatpush1.msra.mxu0 0.0
    %2907 = vmatprep.subr.mxu0 0.0
    %2908 = vmatpush1.msra.mxu0 0.0
    %2909 = vmatprep.subr.mxu0 0.0
    %2910 = vmatpush1.msra.mxu0 0.0
    %2911 = vmatprep.subr.mxu0 0.0
    %2912 = vmatpush1.msra.mxu0 0.0
    %2913 = vmatprep.subr.mxu0 0.0
    %2914 = vmatpush1.msra.mxu0 0.0
    %2915 = vmatprep.subr.mxu0 0.0
    %2916 = vmatpush1.msra.mxu0 0.0
    %2917 = vmatprep.subr.mxu0 0.0
    %2918 = vmatpush1.msra.mxu0 0.0
    %2919 = vmatprep.subr.mxu0 0.0
    %2920 = vmatpush1.msra.mxu0 0.0
    %2921 = vmatprep.subr.mxu0 0.0
    %2922 = vmatpush1.msra.mxu0 0.0
    %2923 = vmatprep.subr.mxu0 0.0
    %2924 = vmatpush1.msra.mxu0 %v2891
    %2925 = vmatprep.subr.mxu0 0.0
    %2926 = vmatpush1.msra.mxu0 %v2889
    %2927 = vmatprep.subr.mxu0 0.0
    %2928 = vmatpush1.msra.mxu0 %v2887
    %2929 = vmatprep.subr.mxu0 0.0
    %2930 = vmatpush2.msra.mxu0 0.0
    %2931 = vmatprep.subr.mxu0 0.0
    %2932 = vmatpush2.msra.mxu0 0.0
    %2933 = vmatprep.subr.mxu0 0.0
    %2934 = vmatpush2.msra.mxu0 0.0
    %2935 = vmatprep.subr.mxu0 0.0
    %2936 = vmatpush2.msra.mxu0 0.0
    %2937 = vmatprep.subr.mxu0 0.0
    %2938 = vmatpush2.msra.mxu0 0.0
    %2939 = vmatprep.subr.mxu0 0.0
    %2940 = vmatpush2.msra.mxu0 0.0
    %2941 = vmatprep.subr.mxu0 0.0
    %2942 = vmatpush2.msra.mxu0 0.0
    %2943 = vmatprep.subr.mxu0 0.0
    %2944 = vmatpush2.msra.mxu0 0.0
    %2945 = vmatprep.subr.mxu0 0.0
    %2946 = vmatpush2.msra.mxu0 0.0
    %2947 = vmatprep.subr.mxu0 0.0
    %2948 = vmatpush2.msra.mxu0 0.0
    %2949 = vmatprep.subr.mxu0 0.0
    %2950 = vmatpush2.msra.mxu0 0.0
    %2951 = vmatprep.subr.mxu0 0.0
    %2952 = vmatpush2.msra.mxu0 0.0
    %2953 = vmatprep.subr.mxu0 0.0
    %2954 = vmatpush2.msra.mxu0 0.0
    %2955 = vmatprep.subr.mxu0 0.0
    %2956 = vmatpush2.msra.mxu0 0.0
    %2957 = vmatprep.subr.mxu0 0.0
    %2958 = vmatpush2.msra.mxu0 0.0
    %2959 = vmatprep.subr.mxu0 0.0
    %2960 = vmatpush2.msra.mxu0 0.0
    %2961 = vmatprep.mubr.f32.mxu0 0.0
    %2962 = vmatmul.mubr.f32.gmra.mxu0 %v2895
    %v2963 = vpop.f32.mrf.mxu0
    %v2964 = vadd.f32 0.0, %v2963
    %v2965 = vpop.f32.mrf.mxu0
    %2966 = vdwg.mxu0
    %v2969 = vcombine.high %v2801, %v2801
    %v2971 = vunpack.c.l.s4 1983009808
    %v2972 = vunpack.c.0.s8 %v2971
    %v2973 = vlaneseq
    %v2974 = vshrl.u32 %v2973, 7
    %v2975 = vsub.s32 %v2972, %v2974
    %v2976 = vrot.slane %v2801, %v2975
    %v2978 = vunpack.c.l.s4 1983009808
    %v2979 = vunpack.c.0.s8 %v2978
    %v2980 = vlaneseq
    %v2981 = vshrl.u32 %v2980, 7
    %v2982 = vsub.s32 %v2979, %v2981
    %v2983 = vrot.slane %v2969, %v2982
    %v2984 = vcombine.high %v2976, %v2976
    %v2985 = vcombine.high %v2964, %v2964
    %v2987 = vunpack.c.l.s4 1983009808
    %v2988 = vunpack.c.0.s8 %v2987
    %v2989 = vlaneseq
    %v2990 = vshrl.u32 %v2989, 7
    %v2991 = vsub.s32 %v2988, %v2990
    %v2992 = vrot.slane %v2964, %v2991
    %v2994 = vunpack.c.l.s4 1983009808
    %v2995 = vunpack.c.0.s8 %v2994
    %v2996 = vlaneseq
    %v2997 = vshrl.u32 %v2996, 7
    %v2998 = vsub.s32 %v2995, %v2997
    %v2999 = vrot.slane %v2985, %v2998
    %v3000 = vcombine.high %v2992, %v2992
    %s3001 = scalar_lea.vmem %s9, 32
    %v3002 = vld [vmem:[%s3001] sm:$0xff]
    %v3003 = vld [vmem:[%s3001 + $0x8] sm:$0xff]
    %v3004 = vld [vmem:[%s3001 + $0x10] sm:$0xff]
    %v3005 = vld [vmem:[%s3001 + $0x18] sm:$0xff]
    %s3006 = scalar_lea.vmem %s10, 1
    %v3007 = vld [vmem:[%s3006] sm:$0x1]
    %v3009 = vlaneseq
    %v3010 = vshrl.u32 %v3009, 7
    %v3011 = vsub.s32 0, %v3010
    %v3012 = vrot.slane %v3007, %v3011
    %v3014 = vcombine.low %v2976, %v2984
    %v3015 = vcombine.low %v2983, %v2992
    %v3017 = vunpack.c.l.s4 1983009808
    %v3018 = vunpack.c.0.s8 %v3017
    %v3019 = vlaneseq
    %v3020 = vshrl.u32 %v3019, 7
    %v3021 = vsub.s32 %v3018, %v3020
    %v3022 = vrot.slane %v3014, %v3021
    %v3024 = vunpack.c.l.s4 1983009808
    %v3025 = vunpack.c.0.s8 %v3024
    %v3026 = vlaneseq
    %v3027 = vshrl.u32 %v3026, 7
    %v3028 = vsub.s32 %v3025, %v3027
    %v3029 = vrot.slane %v3015, %v3028
    %v3030 = vcombine.low %v3022, %v3029
    %v3031 = vcombine.low %v3000, %v2999
    %v3033 = vunpack.c.l.s4 1983009808
    %v3034 = vunpack.c.0.s8 %v3033
    %v3035 = vlaneseq
    %v3036 = vshrl.u32 %v3035, 7
    %v3037 = vsub.s32 %v3034, %v3036
    %v3038 = vrot.slane %v3031, %v3037
    %v3039 = vsel %vm303, %v3030, 0
    %v3041 = vsel %vm303, %v3038, 0
    %3043 = vmatprep.subr.mxu0 0.0
    %3044 = vmatpush1.msra.mxu0 0.0
    %3045 = vmatprep.subr.mxu0 0.0
    %3046 = vmatpush1.msra.mxu0 0.0
    %3047 = vmatprep.subr.mxu0 0.0
    %3048 = vmatpush1.msra.mxu0 0.0
    %3049 = vmatprep.subr.mxu0 0.0
    %3050 = vmatpush1.msra.mxu0 0.0
    %3051 = vmatprep.subr.mxu0 0.0
    %3052 = vmatpush1.msra.mxu0 0.0
    %3053 = vmatprep.subr.mxu0 0.0
    %3054 = vmatpush1.msra.mxu0 0.0
    %3055 = vmatprep.subr.mxu0 0.0
    %3056 = vmatpush1.msra.mxu0 0.0
    %3057 = vmatprep.subr.mxu0 0.0
    %3058 = vmatpush1.msra.mxu0 0.0
    %3059 = vmatprep.subr.mxu0 0.0
    %3060 = vmatpush1.msra.mxu0 0.0
    %3061 = vmatprep.subr.mxu0 0.0
    %3062 = vmatpush1.msra.mxu0 0.0
    %3063 = vmatprep.subr.mxu0 0.0
    %3064 = vmatpush1.msra.mxu0 0.0
    %3065 = vmatprep.subr.mxu0 0.0
    %3066 = vmatpush1.msra.mxu0 0.0
    %3067 = vmatprep.subr.mxu0 0.0
    %3068 = vmatpush1.msra.mxu0 %v3005
    %3069 = vmatprep.subr.mxu0 0.0
    %3070 = vmatpush1.msra.mxu0 %v3004
    %3071 = vmatprep.subr.mxu0 0.0
    %3072 = vmatpush1.msra.mxu0 %v3003
    %3073 = vmatprep.subr.mxu0 0.0
    %3074 = vmatpush1.msra.mxu0 %v3002
    %3075 = vmatprep.subr.mxu0 0.0
    %3076 = vmatpush2.msra.mxu0 0.0
    %3077 = vmatprep.subr.mxu0 0.0
    %3078 = vmatpush2.msra.mxu0 0.0
    %3079 = vmatprep.subr.mxu0 0.0
    %3080 = vmatpush2.msra.mxu0 0.0
    %3081 = vmatprep.subr.mxu0 0.0
    %3082 = vmatpush2.msra.mxu0 0.0
    %3083 = vmatprep.subr.mxu0 0.0
    %3084 = vmatpush2.msra.mxu0 0.0
    %3085 = vmatprep.subr.mxu0 0.0
    %3086 = vmatpush2.msra.mxu0 0.0
    %3087 = vmatprep.subr.mxu0 0.0
    %3088 = vmatpush2.msra.mxu0 0.0
    %3089 = vmatprep.subr.mxu0 0.0
    %3090 = vmatpush2.msra.mxu0 0.0
    %3091 = vmatprep.subr.mxu0 0.0
    %3092 = vmatpush2.msra.mxu0 0.0
    %3093 = vmatprep.subr.mxu0 0.0
    %3094 = vmatpush2.msra.mxu0 0.0
    %3095 = vmatprep.subr.mxu0 0.0
    %3096 = vmatpush2.msra.mxu0 0.0
    %3097 = vmatprep.subr.mxu0 0.0
    %3098 = vmatpush2.msra.mxu0 0.0
    %3099 = vmatprep.subr.mxu0 0.0
    %3100 = vmatpush2.msra.mxu0 0.0
    %3101 = vmatprep.subr.mxu0 0.0
    %3102 = vmatpush2.msra.mxu0 0.0
    %3103 = vmatprep.subr.mxu0 0.0
    %3104 = vmatpush2.msra.mxu0 0.0
    %3105 = vmatprep.subr.mxu0 0.0
    %3106 = vmatpush2.msra.mxu0 0.0
    %3107 = vmatprep.mubr.f32.mxu0 0.0
    %3108 = vmatmul.mubr.f32.gmra.mxu0 %v3039
    %v3109 = vpop.f32.mrf.mxu0
    %v3110 = vadd.f32 %v3012, %v3109
    %v3111 = vpop.f32.mrf.mxu0
    %3112 = vmatprep.mubr.f32.mxu0 0.0
    %3113 = vmatmul.mubr.f32.gmra.mxu0 %v3041
    %v3114 = vpop.f32.mrf.mxu0
    %v3115 = vadd.f32 %v3012, %v3114
    %v3116 = vpop.f32.mrf.mxu0
    %3117 = vdwg.mxu0
    %v3118 = vadd.f32 %v3110, %v1939
    %v3119 = vadd.f32 %v3115, %v1940
    %s3120 = scalar_lea.vmem %s11, 1
    %v3121 = vld [vmem:[%s3120] sm:$0x1]
    %s3122 = scalar_lea.vmem %s12, 1
    %v3123 = vld [vmem:[%s3122] sm:$0x1]
    %v3124 = vsel %vm303, %v3118, 0.0
    %3125 = vadd.xlane.f32.xlu0 %v3124
    %v3126 = vpop.xlane.xlu0 %3125
    %v3127 = vsel %vm1662, %v3119, 0.0
    %3128 = vadd.xlane.f32.xlu0 %v3127
    %v3129 = vpop.xlane.xlu0 %3128
    %v3130 = vmul.f32 %v3126, %v1666
    %v3131 = vmul.f32 %v3129, %v1666
    %v3132 = vsub.f32 %v3118, %v3130
    %v3133 = vsub.f32 %v3119, %v3131
    %v3134 = vmul.f32 %v3132, %v3132
    %v3135 = vmul.f32 %v3133, %v3133
    %v3136 = vsel %vm303, %v3134, 0.0
    %3137 = vadd.xlane.f32.xlu0 %v3136
    %v3138 = vpop.xlane.xlu0 %3137
    %v3139 = vsel %vm1662, %v3135, 0.0
    %3140 = vadd.xlane.f32.xlu0 %v3139
    %v3141 = vpop.xlane.xlu0 %3140
    %v3142 = vmul.f32 %v3138, %v1666
    %v3143 = vmul.f32 %v3141, %v1666
    %v3144 = vadd.f32 %v3142, 1e-05
    %v3145 = vadd.f32 %v3143, 1e-05
    %v3146 = vrsqrt.pop %v3144
    %v3147 = vrsqrt.pop %v3145
    %v3148 = vmul.f32 %v3132, %v3146
    %v3149 = vmul.f32 %v3133, %v3147
    %v3151 = vlaneseq
    %v3152 = vshrl.u32 %v3151, 7
    %v3153 = vsub.s32 0, %v3152
    %v3154 = vrot.slane %v3121, %v3153
    %v3156 = vmul.f32 %v3148, %v3154
    %v3157 = vmul.f32 %v3149, %v3154
    %v3159 = vlaneseq
    %v3160 = vshrl.u32 %v3159, 7
    %v3161 = vsub.s32 0, %v3160
    %v3162 = vrot.slane %v3123, %v3161
    %v3164 = vadd.f32 %v3156, %v3162
    %v3165 = vadd.f32 %v3157, %v3162
    %s3166 = scalar_lea.vmem %s15, 32
    %v3167 = vld [vmem:[%s3166] sm:$0xff]
    %v3168 = vld [vmem:[%s3166 + $0x8] sm:$0xff]
    %v3169 = vld [vmem:[%s3166 + $0x10] sm:$0xff]
    %v3170 = vld [vmem:[%s3166 + $0x18] sm:$0xff]
    %s3171 = scalar_lea.vmem %s16, 1
    %v3172 = vld [vmem:[%s3171] sm:$0x1]
    %v3174 = vlaneseq
    %v3175 = vshrl.u32 %v3174, 7
    %v3176 = vsub.s32 0, %v3175
    %v3177 = vrot.slane %v3172, %v3176
    %v3180 = vsel %vm303, %v3164, 0
    %v3183 = vsel %vm303, %v3165, 0
    %3185 = vmatprep.subr.mxu0 0.0
    %3186 = vmatpush1.msra.mxu0 0.0
    %3187 = vmatprep.subr.mxu0 0.0
    %3188 = vmatpush1.msra.mxu0 0.0
    %3189 = vmatprep.subr.mxu0 0.0
    %3190 = vmatpush1.msra.mxu0 0.0
    %3191 = vmatprep.subr.mxu0 0.0
    %3192 = vmatpush1.msra.mxu0 0.0
    %3193 = vmatprep.subr.mxu0 0.0
    %3194 = vmatpush1.msra.mxu0 0.0
    %3195 = vmatprep.subr.mxu0 0.0
    %3196 = vmatpush1.msra.mxu0 0.0
    %3197 = vmatprep.subr.mxu0 0.0
    %3198 = vmatpush1.msra.mxu0 0.0
    %3199 = vmatprep.subr.mxu0 0.0
    %3200 = vmatpush1.msra.mxu0 0.0
    %3201 = vmatprep.subr.mxu0 0.0
    %3202 = vmatpush1.msra.mxu0 0.0
    %3203 = vmatprep.subr.mxu0 0.0
    %3204 = vmatpush1.msra.mxu0 0.0
    %3205 = vmatprep.subr.mxu0 0.0
    %3206 = vmatpush1.msra.mxu0 0.0
    %3207 = vmatprep.subr.mxu0 0.0
    %3208 = vmatpush1.msra.mxu0 0.0
    %3209 = vmatprep.subr.mxu0 0.0
    %3210 = vmatpush1.msra.mxu0 %v3170
    %3211 = vmatprep.subr.mxu0 0.0
    %3212 = vmatpush1.msra.mxu0 %v3169
    %3213 = vmatprep.subr.mxu0 0.0
    %3214 = vmatpush1.msra.mxu0 %v3168
    %3215 = vmatprep.subr.mxu0 0.0
    %3216 = vmatpush1.msra.mxu0 %v3167
    %3217 = vmatprep.subr.mxu0 0.0
    %3218 = vmatpush2.msra.mxu0 0.0
    %3219 = vmatprep.subr.mxu0 0.0
    %3220 = vmatpush2.msra.mxu0 0.0
    %3221 = vmatprep.subr.mxu0 0.0
    %3222 = vmatpush2.msra.mxu0 0.0
    %3223 = vmatprep.subr.mxu0 0.0
    %3224 = vmatpush2.msra.mxu0 0.0
    %3225 = vmatprep.subr.mxu0 0.0
    %3226 = vmatpush2.msra.mxu0 0.0
    %3227 = vmatprep.subr.mxu0 0.0
    %3228 = vmatpush2.msra.mxu0 0.0
    %3229 = vmatprep.subr.mxu0 0.0
    %3230 = vmatpush2.msra.mxu0 0.0
    %3231 = vmatprep.subr.mxu0 0.0
    %3232 = vmatpush2.msra.mxu0 0.0
    %3233 = vmatprep.subr.mxu0 0.0
    %3234 = vmatpush2.msra.mxu0 0.0
    %3235 = vmatprep.subr.mxu0 0.0
    %3236 = vmatpush2.msra.mxu0 0.0
    %3237 = vmatprep.subr.mxu0 0.0
    %3238 = vmatpush2.msra.mxu0 0.0
    %3239 = vmatprep.subr.mxu0 0.0
    %3240 = vmatpush2.msra.mxu0 0.0
    %3241 = vmatprep.subr.mxu0 0.0
    %3242 = vmatpush2.msra.mxu0 0.0
    %3243 = vmatprep.subr.mxu0 0.0
    %3244 = vmatpush2.msra.mxu0 0.0
    %3245 = vmatprep.subr.mxu0 0.0
    %3246 = vmatpush2.msra.mxu0 0.0
    %3247 = vmatprep.subr.mxu0 0.0
    %3248 = vmatpush2.msra.mxu0 0.0
    %3249 = vmatprep.mubr.f32.mxu0 0.0
    %3250 = vmatmul.mubr.f32.gmra.mxu0 %v3180
    %v3251 = vpop.f32.mrf.mxu0
    %v3252 = vadd.f32 %v3177, %v3251
    %v3253 = vpop.f32.mrf.mxu0
    %3254 = vmatprep.mubr.f32.mxu0 0.0
    %3255 = vmatmul.mubr.f32.gmra.mxu0 %v3183
    %v3256 = vpop.f32.mrf.mxu0
    %v3257 = vadd.f32 %v3177, %v3256
    %v3258 = vpop.f32.mrf.mxu0
    %3259 = vdwg.mxu0
    %v3260 = vmax.f32 %v3252, 0.0
    %v3261 = vmax.f32 %v3257, 0.0
    %s3262 = scalar_lea.vmem %s17, 128
    %v3263 = vld [vmem:[%s3262] sm:$0xff]
    %v3264 = vld [vmem:[%s3262 + $0x8] sm:$0xff]
    %v3265 = vld [vmem:[%s3262 + $0x10] sm:$0xff]
    %v3266 = vld [vmem:[%s3262 + $0x18] sm:$0xff]
    %v3267 = vld [vmem:[%s3262 + $0x20] sm:$0xff]
    %v3268 = vld [vmem:[%s3262 + $0x28] sm:$0xff]
    %v3269 = vld [vmem:[%s3262 + $0x30] sm:$0xff]
    %v3270 = vld [vmem:[%s3262 + $0x38] sm:$0xff]
    %v3271 = vld [vmem:[%s3262 + $0x40] sm:$0xff]
    %v3272 = vld [vmem:[%s3262 + $0x48] sm:$0xff]
    %v3273 = vld [vmem:[%s3262 + $0x50] sm:$0xff]
    %v3274 = vld [vmem:[%s3262 + $0x58] sm:$0xff]
    %v3275 = vld [vmem:[%s3262 + $0x60] sm:$0xff]
    %v3276 = vld [vmem:[%s3262 + $0x68] sm:$0xff]
    %v3277 = vld [vmem:[%s3262 + $0x70] sm:$0xff]
    %v3278 = vld [vmem:[%s3262 + $0x78] sm:$0xff]
    %s3279 = scalar_lea.vmem %s18, 1
    %v3280 = vld [vmem:[%s3279] sm:$0x1]
    %v3282 = vlaneseq
    %v3283 = vshrl.u32 %v3282, 7
    %v3284 = vsub.s32 0, %v3283
    %v3285 = vrot.slane %v3280, %v3284
    %3287 = vmatprep.subr.mxu0 0.0
    %3288 = vmatpush1.msra.mxu0 %v3278
    %3289 = vmatprep.subr.mxu0 0.0
    %3290 = vmatpush1.msra.mxu0 %v3277
    %3291 = vmatprep.subr.mxu0 0.0
    %3292 = vmatpush1.msra.mxu0 %v3276
    %3293 = vmatprep.subr.mxu0 0.0
    %3294 = vmatpush1.msra.mxu0 %v3275
    %3295 = vmatprep.subr.mxu0 0.0
    %3296 = vmatpush1.msra.mxu0 %v3274
    %3297 = vmatprep.subr.mxu0 0.0
    %3298 = vmatpush1.msra.mxu0 %v3273
    %3299 = vmatprep.subr.mxu0 0.0
    %3300 = vmatpush1.msra.mxu0 %v3272
    %3301 = vmatprep.subr.mxu0 0.0
    %3302 = vmatpush1.msra.mxu0 %v3271
    %3303 = vmatprep.subr.mxu0 0.0
    %3304 = vmatpush1.msra.mxu0 %v3270
    %3305 = vmatprep.subr.mxu0 0.0
    %3306 = vmatpush1.msra.mxu0 %v3269
    %3307 = vmatprep.subr.mxu0 0.0
    %3308 = vmatpush1.msra.mxu0 %v3268
    %3309 = vmatprep.subr.mxu0 0.0
    %3310 = vmatpush1.msra.mxu0 %v3267
    %3311 = vmatprep.subr.mxu0 0.0
    %3312 = vmatpush1.msra.mxu0 %v3266
    %3313 = vmatprep.subr.mxu0 0.0
    %3314 = vmatpush1.msra.mxu0 %v3265
    %3315 = vmatprep.subr.mxu0 0.0
    %3316 = vmatpush1.msra.mxu0 %v3264
    %3317 = vmatprep.subr.mxu0 0.0
    %3318 = vmatpush1.msra.mxu0 %v3263
    %3319 = vmatprep.subr.mxu0 0.0
    %3320 = vmatpush2.msra.mxu0 0.0
    %3321 = vmatprep.subr.mxu0 0.0
    %3322 = vmatpush2.msra.mxu0 0.0
    %3323 = vmatprep.subr.mxu0 0.0
    %3324 = vmatpush2.msra.mxu0 0.0
    %3325 = vmatprep.subr.mxu0 0.0
    %3326 = vmatpush2.msra.mxu0 0.0
    %3327 = vmatprep.subr.mxu0 0.0
    %3328 = vmatpush2.msra.mxu0 0.0
    %3329 = vmatprep.subr.mxu0 0.0
    %3330 = vmatpush2.msra.mxu0 0.0
    %3331 = vmatprep.subr.mxu0 0.0
    %3332 = vmatpush2.msra.mxu0 0.0
    %3333 = vmatprep.subr.mxu0 0.0
    %3334 = vmatpush2.msra.mxu0 0.0
    %3335 = vmatprep.subr.mxu0 0.0
    %3336 = vmatpush2.msra.mxu0 0.0
    %3337 = vmatprep.subr.mxu0 0.0
    %3338 = vmatpush2.msra.mxu0 0.0
    %3339 = vmatprep.subr.mxu0 0.0
    %3340 = vmatpush2.msra.mxu0 0.0
    %3341 = vmatprep.subr.mxu0 0.0
    %3342 = vmatpush2.msra.mxu0 0.0
    %3343 = vmatprep.subr.mxu0 0.0
    %3344 = vmatpush2.msra.mxu0 0.0
    %3345 = vmatprep.subr.mxu0 0.0
    %3346 = vmatpush2.msra.mxu0 0.0
    %3347 = vmatprep.subr.mxu0 0.0
    %3348 = vmatpush2.msra.mxu0 0.0
    %3349 = vmatprep.subr.mxu0 0.0
    %3350 = vmatpush2.msra.mxu0 0.0
    %3351 = vmatprep.mubr.f32.mxu0 0.0
    %3352 = vmatmul.mubr.f32.gmra.mxu0 %v3260
    %v3353 = vpop.f32.mrf.mxu0
    %v3354 = vadd.f32 %v3285, %v3353
    %v3355 = vpop.f32.mrf.mxu0
    %3356 = vmatprep.mubr.f32.mxu0 0.0
    %3357 = vmatmul.mubr.f32.gmra.mxu0 %v3261
    %v3358 = vpop.f32.mrf.mxu0
    %v3359 = vadd.f32 %v3285, %v3358
    %v3360 = vpop.f32.mrf.mxu0
    %3361 = vdwg.mxu0
    %v3362 = vadd.f32 %v3354, %v3164
    %v3363 = vadd.f32 %v3359, %v3165
    %s3364 = scalar_lea.vmem %s13, 1
    %v3365 = vld [vmem:[%s3364] sm:$0x1]
    %s3366 = scalar_lea.vmem %s14, 1
    %v3367 = vld [vmem:[%s3366] sm:$0x1]
    %v3368 = vsel %vm303, %v3362, 0.0
    %3369 = vadd.xlane.f32.xlu0 %v3368
    %v3370 = vpop.xlane.xlu0 %3369
    %v3371 = vsel %vm1662, %v3363, 0.0
    %3372 = vadd.xlane.f32.xlu0 %v3371
    %v3373 = vpop.xlane.xlu0 %3372
    %v3374 = vmul.f32 %v3370, %v1666
    %v3375 = vmul.f32 %v3373, %v1666
    %v3376 = vsub.f32 %v3362, %v3374
    %v3377 = vsub.f32 %v3363, %v3375
    %v3378 = vmul.f32 %v3376, %v3376
    %v3379 = vmul.f32 %v3377, %v3377
    %v3380 = vsel %vm303, %v3378, 0.0
    %3381 = vadd.xlane.f32.xlu0 %v3380
    %v3382 = vpop.xlane.xlu0 %3381
    %v3383 = vsel %vm1662, %v3379, 0.0
    %3384 = vadd.xlane.f32.xlu0 %v3383
    %v3385 = vpop.xlane.xlu0 %3384
    %v3386 = vmul.f32 %v3382, %v1666
    %v3387 = vmul.f32 %v3385, %v1666
    %v3388 = vadd.f32 %v3386, 1e-05
    %v3389 = vadd.f32 %v3387, 1e-05
    %v3390 = vrsqrt.pop %v3388
    %v3391 = vrsqrt.pop %v3389
    %v3392 = vmul.f32 %v3376, %v3390
    %v3393 = vmul.f32 %v3377, %v3391
    %v3395 = vlaneseq
    %v3396 = vshrl.u32 %v3395, 7
    %v3397 = vsub.s32 0, %v3396
    %v3398 = vrot.slane %v3365, %v3397
    %v3400 = vmul.f32 %v3392, %v3398
    %v3401 = vmul.f32 %v3393, %v3398
    %v3403 = vlaneseq
    %v3404 = vshrl.u32 %v3403, 7
    %v3405 = vsub.s32 0, %v3404
    %v3406 = vrot.slane %v3367, %v3405
    %v3408 = vadd.f32 %v3400, %v3406
    %v3409 = vadd.f32 %v3401, %v3406
    %v3410 = vld [vmem:[%s19] sm:$0xff]
    %v3411 = vld [vmem:[%s19 + $0x8] sm:$0xff]
    %v3412 = vld [vmem:[%s19 + $0x10] sm:$0xff]
    %v3413 = vld [vmem:[%s19 + $0x18] sm:$0xff]
    %v3414 = vld [vmem:[%s20] sm:$0x1]
    %v3416 = vlaneseq
    %v3417 = vshrl.u32 %v3416, 7
    %v3418 = vsub.s32 0, %v3417
    %v3419 = vrot.slane %v3414, %v3418
    %v3422 = vsel %vm303, %v3408, 0
    %v3425 = vsel %vm303, %v3409, 0
    %3427 = vmatprep.subr.mxu0 0.0
    %3428 = vmatpush1.msra.mxu0 0.0
    %3429 = vmatprep.subr.mxu0 0.0
    %3430 = vmatpush1.msra.mxu0 0.0
    %3431 = vmatprep.subr.mxu0 0.0
    %3432 = vmatpush1.msra.mxu0 0.0
    %3433 = vmatprep.subr.mxu0 0.0
    %3434 = vmatpush1.msra.mxu0 0.0
    %3435 = vmatprep.subr.mxu0 0.0
    %3436 = vmatpush1.msra.mxu0 0.0
    %3437 = vmatprep.subr.mxu0 0.0
    %3438 = vmatpush1.msra.mxu0 0.0
    %3439 = vmatprep.subr.mxu0 0.0
    %3440 = vmatpush1.msra.mxu0 0.0
    %3441 = vmatprep.subr.mxu0 0.0
    %3442 = vmatpush1.msra.mxu0 0.0
    %3443 = vmatprep.subr.mxu0 0.0
    %3444 = vmatpush1.msra.mxu0 0.0
    %3445 = vmatprep.subr.mxu0 0.0
    %3446 = vmatpush1.msra.mxu0 0.0
    %3447 = vmatprep.subr.mxu0 0.0
    %3448 = vmatpush1.msra.mxu0 0.0
    %3449 = vmatprep.subr.mxu0 0.0
    %3450 = vmatpush1.msra.mxu0 0.0
    %3451 = vmatprep.subr.mxu0 0.0
    %3452 = vmatpush1.msra.mxu0 %v3413
    %3453 = vmatprep.subr.mxu0 0.0
    %3454 = vmatpush1.msra.mxu0 %v3412
    %3455 = vmatprep.subr.mxu0 0.0
    %3456 = vmatpush1.msra.mxu0 %v3411
    %3457 = vmatprep.subr.mxu0 0.0
    %3458 = vmatpush1.msra.mxu0 %v3410
    %3459 = vmatprep.subr.mxu0 0.0
    %3460 = vmatpush2.msra.mxu0 0.0
    %3461 = vmatprep.subr.mxu0 0.0
    %3462 = vmatpush2.msra.mxu0 0.0
    %3463 = vmatprep.subr.mxu0 0.0
    %3464 = vmatpush2.msra.mxu0 0.0
    %3465 = vmatprep.subr.mxu0 0.0
    %3466 = vmatpush2.msra.mxu0 0.0
    %3467 = vmatprep.subr.mxu0 0.0
    %3468 = vmatpush2.msra.mxu0 0.0
    %3469 = vmatprep.subr.mxu0 0.0
    %3470 = vmatpush2.msra.mxu0 0.0
    %3471 = vmatprep.subr.mxu0 0.0
    %3472 = vmatpush2.msra.mxu0 0.0
    %3473 = vmatprep.subr.mxu0 0.0
    %3474 = vmatpush2.msra.mxu0 0.0
    %3475 = vmatprep.subr.mxu0 0.0
    %3476 = vmatpush2.msra.mxu0 0.0
    %3477 = vmatprep.subr.mxu0 0.0
    %3478 = vmatpush2.msra.mxu0 0.0
    %3479 = vmatprep.subr.mxu0 0.0
    %3480 = vmatpush2.msra.mxu0 0.0
    %3481 = vmatprep.subr.mxu0 0.0
    %3482 = vmatpush2.msra.mxu0 0.0
    %3483 = vmatprep.subr.mxu0 0.0
    %3484 = vmatpush2.msra.mxu0 0.0
    %3485 = vmatprep.subr.mxu0 0.0
    %3486 = vmatpush2.msra.mxu0 0.0
    %3487 = vmatprep.subr.mxu0 0.0
    %3488 = vmatpush2.msra.mxu0 0.0
    %3489 = vmatprep.subr.mxu0 0.0
    %3490 = vmatpush2.msra.mxu0 0.0
    %3491 = vmatprep.mubr.f32.mxu0 0.0
    %3492 = vmatmul.mubr.f32.gmra.mxu0 %v3422
    %v3493 = vpop.f32.mrf.mxu0
    %v3494 = vadd.f32 %v3419, %v3493
    %v3495 = vpop.f32.mrf.mxu0
    %3496 = vmatprep.mubr.f32.mxu0 0.0
    %3497 = vmatmul.mubr.f32.gmra.mxu0 %v3425
    %v3498 = vpop.f32.mrf.mxu0
    %v3499 = vadd.f32 %v3419, %v3498
    %v3500 = vpop.f32.mrf.mxu0
    %3501 = vdwg.mxu0
    %v3502 = vmax.f32 %v3494, 0.0
    %v3503 = vmax.f32 %v3499, 0.0
    %v3504 = vld [vmem:[%s2] sm:$0x3f]
    %v3505 = vld [vmem:[%s2 + $0x8] sm:$0x3f]
    %v3508 = vcombine.high %v3504, %v3504
    %v3510 = vunpack.c.l.s4 1983009808
    %v3511 = vunpack.c.0.s8 %v3510
    %v3512 = vlaneseq
    %v3513 = vshrl.u32 %v3512, 7
    %v3514 = vsub.s32 %v3511, %v3513
    %v3515 = vrot.slane %v3504, %v3514
    %v3517 = vunpack.c.l.s4 1983009808
    %v3518 = vunpack.c.0.s8 %v3517
    %v3519 = vlaneseq
    %v3520 = vshrl.u32 %v3519, 7
    %v3521 = vsub.s32 %v3518, %v3520
    %v3522 = vrot.slane %v3508, %v3521
    %v3523 = vcombine.high %v3515, %v3515
    %v3524 = vcombine.high %v3505, %v3505
    %v3526 = vunpack.c.l.s4 1983009808
    %v3527 = vunpack.c.0.s8 %v3526
    %v3528 = vlaneseq
    %v3529 = vshrl.u32 %v3528, 7
    %v3530 = vsub.s32 %v3527, %v3529
    %v3531 = vrot.slane %v3505, %v3530
    %v3533 = vunpack.c.l.s4 1983009808
    %v3534 = vunpack.c.0.s8 %v3533
    %v3535 = vlaneseq
    %v3536 = vshrl.u32 %v3535, 7
    %v3537 = vsub.s32 %v3534, %v3536
    %v3538 = vrot.slane %v3524, %v3537
    %v3539 = vcombine.high %v3531, %v3531
    %v3540 = vld [vmem:[%s21] sm:$0xff]
    %v3541 = vld [vmem:[%s21 + $0x8] sm:$0xff]
    %v3542 = vld [vmem:[%s21 + $0x10] sm:$0xff]
    %v3543 = vld [vmem:[%s21 + $0x18] sm:$0xff]
    %v3544 = vld [vmem:[%s22] sm:$0x1]
    %v3546 = vlaneseq
    %v3547 = vshrl.u32 %v3546, 7
    %v3548 = vsub.s32 0, %v3547
    %v3549 = vrot.slane %v3544, %v3548
    %v3552 = vsel %vm303, %v3502, 0
    %v3555 = vsel %vm303, %v3503, 0
    %3557 = vmatprep.subr.mxu0 0.0
    %3558 = vmatpush1.msra.mxu0 0.0
    %3559 = vmatprep.subr.mxu0 0.0
    %3560 = vmatpush1.msra.mxu0 0.0
    %3561 = vmatprep.subr.mxu0 0.0
    %3562 = vmatpush1.msra.mxu0 0.0
    %3563 = vmatprep.subr.mxu0 0.0
    %3564 = vmatpush1.msra.mxu0 0.0
    %3565 = vmatprep.subr.mxu0 0.0
    %3566 = vmatpush1.msra.mxu0 0.0
    %3567 = vmatprep.subr.mxu0 0.0
    %3568 = vmatpush1.msra.mxu0 0.0
    %3569 = vmatprep.subr.mxu0 0.0
    %3570 = vmatpush1.msra.mxu0 0.0
    %3571 = vmatprep.subr.mxu0 0.0
    %3572 = vmatpush1.msra.mxu0 0.0
    %3573 = vmatprep.subr.mxu0 0.0
    %3574 = vmatpush1.msra.mxu0 0.0
    %3575 = vmatprep.subr.mxu0 0.0
    %3576 = vmatpush1.msra.mxu0 0.0
    %3577 = vmatprep.subr.mxu0 0.0
    %3578 = vmatpush1.msra.mxu0 0.0
    %3579 = vmatprep.subr.mxu0 0.0
    %3580 = vmatpush1.msra.mxu0 0.0
    %3581 = vmatprep.subr.mxu0 0.0
    %3582 = vmatpush1.msra.mxu0 %v3543
    %3583 = vmatprep.subr.mxu0 0.0
    %3584 = vmatpush1.msra.mxu0 %v3542
    %3585 = vmatprep.subr.mxu0 0.0
    %3586 = vmatpush1.msra.mxu0 %v3541
    %3587 = vmatprep.subr.mxu0 0.0
    %3588 = vmatpush1.msra.mxu0 %v3540
    %3589 = vmatprep.subr.mxu0 0.0
    %3590 = vmatpush2.msra.mxu0 0.0
    %3591 = vmatprep.subr.mxu0 0.0
    %3592 = vmatpush2.msra.mxu0 0.0
    %3593 = vmatprep.subr.mxu0 0.0
    %3594 = vmatpush2.msra.mxu0 0.0
    %3595 = vmatprep.subr.mxu0 0.0
    %3596 = vmatpush2.msra.mxu0 0.0
    %3597 = vmatprep.subr.mxu0 0.0
    %3598 = vmatpush2.msra.mxu0 0.0
    %3599 = vmatprep.subr.mxu0 0.0
    %3600 = vmatpush2.msra.mxu0 0.0
    %3601 = vmatprep.subr.mxu0 0.0
    %3602 = vmatpush2.msra.mxu0 0.0
    %3603 = vmatprep.subr.mxu0 0.0
    %3604 = vmatpush2.msra.mxu0 0.0
    %3605 = vmatprep.subr.mxu0 0.0
    %3606 = vmatpush2.msra.mxu0 0.0
    %3607 = vmatprep.subr.mxu0 0.0
    %3608 = vmatpush2.msra.mxu0 0.0
    %3609 = vmatprep.subr.mxu0 0.0
    %3610 = vmatpush2.msra.mxu0 0.0
    %3611 = vmatprep.subr.mxu0 0.0
    %3612 = vmatpush2.msra.mxu0 0.0
    %3613 = vmatprep.subr.mxu0 0.0
    %3614 = vmatpush2.msra.mxu0 0.0
    %3615 = vmatprep.subr.mxu0 0.0
    %3616 = vmatpush2.msra.mxu0 0.0
    %3617 = vmatprep.subr.mxu0 0.0
    %3618 = vmatpush2.msra.mxu0 0.0
    %3619 = vmatprep.subr.mxu0 0.0
    %3620 = vmatpush2.msra.mxu0 0.0
    %3621 = vmatprep.mubr.f32.mxu0 0.0
    %3622 = vmatmul.mubr.f32.gmra.mxu0 %v3552
    %v3623 = vpop.f32.mrf.mxu0
    %v3624 = vadd.f32 %v3549, %v3623
    %v3625 = vpop.f32.mrf.mxu0
    %3626 = vmatprep.mubr.f32.mxu0 0.0
    %3627 = vmatmul.mubr.f32.gmra.mxu0 %v3555
    %v3628 = vpop.f32.mrf.mxu0
    %v3629 = vadd.f32 %v3549, %v3628
    %v3630 = vpop.f32.mrf.mxu0
    %3631 = vdwg.mxu0
    %v3632 = vld [vmem:[%s23] sm:$0xff]
    %v3633 = vld [vmem:[%s23 + $0x8] sm:$0xff]
    %v3634 = vld [vmem:[%s23 + $0x10] sm:$0xff]
    %v3635 = vld [vmem:[%s23 + $0x18] sm:$0xff]
    %v3636 = vld [vmem:[%s24] sm:$0x1]
    %v3638 = vlaneseq
    %v3639 = vshrl.u32 %v3638, 7
    %v3640 = vsub.s32 0, %v3639
    %v3641 = vrot.slane %v3636, %v3640
    %v3643 = vcombine.low %v3515, %v3523
    %v3644 = vcombine.low %v3522, %v3531
    %v3646 = vunpack.c.l.s4 1983009808
    %v3647 = vunpack.c.0.s8 %v3646
    %v3648 = vlaneseq
    %v3649 = vshrl.u32 %v3648, 7
    %v3650 = vsub.s32 %v3647, %v3649
    %v3651 = vrot.slane %v3643, %v3650
    %v3653 = vunpack.c.l.s4 1983009808
    %v3654 = vunpack.c.0.s8 %v3653
    %v3655 = vlaneseq
    %v3656 = vshrl.u32 %v3655, 7
    %v3657 = vsub.s32 %v3654, %v3656
    %v3658 = vrot.slane %v3644, %v3657
    %v3659 = vcombine.low %v3651, %v3658
    %v3660 = vcombine.low %v3539, %v3538
    %v3662 = vunpack.c.l.s4 1983009808
    %v3663 = vunpack.c.0.s8 %v3662
    %v3664 = vlaneseq
    %v3665 = vshrl.u32 %v3664, 7
    %v3666 = vsub.s32 %v3663, %v3665
    %v3667 = vrot.slane %v3660, %v3666
    %v3668 = vsel %vm303, %v3659, 0
    %v3670 = vsel %vm303, %v3667, 0
    %3672 = vmatprep.subr.mxu0 0.0
    %3673 = vmatpush1.msra.mxu0 0.0
    %3674 = vmatprep.subr.mxu0 0.0
    %3675 = vmatpush1.msra.mxu0 0.0
    %3676 = vmatprep.subr.mxu0 0.0
    %3677 = vmatpush1.msra.mxu0 0.0
    %3678 = vmatprep.subr.mxu0 0.0
    %3679 = vmatpush1.msra.mxu0 0.0
    %3680 = vmatprep.subr.mxu0 0.0
    %3681 = vmatpush1.msra.mxu0 0.0
    %3682 = vmatprep.subr.mxu0 0.0
    %3683 = vmatpush1.msra.mxu0 0.0
    %3684 = vmatprep.subr.mxu0 0.0
    %3685 = vmatpush1.msra.mxu0 0.0
    %3686 = vmatprep.subr.mxu0 0.0
    %3687 = vmatpush1.msra.mxu0 0.0
    %3688 = vmatprep.subr.mxu0 0.0
    %3689 = vmatpush1.msra.mxu0 0.0
    %3690 = vmatprep.subr.mxu0 0.0
    %3691 = vmatpush1.msra.mxu0 0.0
    %3692 = vmatprep.subr.mxu0 0.0
    %3693 = vmatpush1.msra.mxu0 0.0
    %3694 = vmatprep.subr.mxu0 0.0
    %3695 = vmatpush1.msra.mxu0 0.0
    %3696 = vmatprep.subr.mxu0 0.0
    %3697 = vmatpush1.msra.mxu0 %v3635
    %3698 = vmatprep.subr.mxu0 0.0
    %3699 = vmatpush1.msra.mxu0 %v3634
    %3700 = vmatprep.subr.mxu0 0.0
    %3701 = vmatpush1.msra.mxu0 %v3633
    %3702 = vmatprep.subr.mxu0 0.0
    %3703 = vmatpush1.msra.mxu0 %v3632
    %3704 = vmatprep.subr.mxu0 0.0
    %3705 = vmatpush2.msra.mxu0 0.0
    %3706 = vmatprep.subr.mxu0 0.0
    %3707 = vmatpush2.msra.mxu0 0.0
    %3708 = vmatprep.subr.mxu0 0.0
    %3709 = vmatpush2.msra.mxu0 0.0
    %3710 = vmatprep.subr.mxu0 0.0
    %3711 = vmatpush2.msra.mxu0 0.0
    %3712 = vmatprep.subr.mxu0 0.0
    %3713 = vmatpush2.msra.mxu0 0.0
    %3714 = vmatprep.subr.mxu0 0.0
    %3715 = vmatpush2.msra.mxu0 0.0
    %3716 = vmatprep.subr.mxu0 0.0
    %3717 = vmatpush2.msra.mxu0 0.0
    %3718 = vmatprep.subr.mxu0 0.0
    %3719 = vmatpush2.msra.mxu0 0.0
    %3720 = vmatprep.subr.mxu0 0.0
    %3721 = vmatpush2.msra.mxu0 0.0
    %3722 = vmatprep.subr.mxu0 0.0
    %3723 = vmatpush2.msra.mxu0 0.0
    %3724 = vmatprep.subr.mxu0 0.0
    %3725 = vmatpush2.msra.mxu0 0.0
    %3726 = vmatprep.subr.mxu0 0.0
    %3727 = vmatpush2.msra.mxu0 0.0
    %3728 = vmatprep.subr.mxu0 0.0
    %3729 = vmatpush2.msra.mxu0 0.0
    %3730 = vmatprep.subr.mxu0 0.0
    %3731 = vmatpush2.msra.mxu0 0.0
    %3732 = vmatprep.subr.mxu0 0.0
    %3733 = vmatpush2.msra.mxu0 0.0
    %3734 = vmatprep.subr.mxu0 0.0
    %3735 = vmatpush2.msra.mxu0 0.0
    %3736 = vmatprep.mubr.f32.mxu0 0.0
    %3737 = vmatmul.mubr.f32.gmra.mxu0 %v3668
    %v3738 = vpop.f32.mrf.mxu0
    %v3739 = vadd.f32 %v3641, %v3738
    %v3740 = vpop.f32.mrf.mxu0
    %3741 = vmatprep.mubr.f32.mxu0 0.0
    %3742 = vmatmul.mubr.f32.gmra.mxu0 %v3670
    %v3743 = vpop.f32.mrf.mxu0
    %v3744 = vadd.f32 %v3641, %v3743
    %v3745 = vpop.f32.mrf.mxu0
    %3746 = vdwg.mxu0
    %v3747 = vadd.f32 %v3624, %v3739
    %v3748 = vadd.f32 %v3629, %v3744
    %v3749 = vxor.u32 %v3747, 2147483648
    %v3750 = vxor.u32 %v3748, 2147483648
    %v3751 = vmul.f32 %v3749, 1.442695
    %v3752 = vpow.pop %v3751
    %v3753 = vmul.f32 %v3750, 1.442695
    %v3754 = vpow.pop %v3753
    %v3755 = vadd.f32 %v3752, 1.0
    %v3756 = vadd.f32 %v3754, 1.0
    %v3757 = vrcp.pop %v3755
    %v3758 = vmul.f32 1.0, %v3757
    %v3759 = vrcp.pop %v3756
    %v3760 = vmul.f32 1.0, %v3759
    %3763 = vrot.lane.b32.xlu0 %v3739, 64
    %v3764 = vpop.permute.xlu0 %3763
    %3765 = vrot.lane.b32.xlu0 %v3744, 64
    %v3766 = vpop.permute.xlu0 %3765
    %v3769 = vmul.f32 %v3758, %v3764
    %v3770 = vmul.f32 %v3760, %v3766
    %3773 = vrot.lane.b32.xlu0 %v3769, 64
    %v3774 = vpop.permute.xlu0 %3773
    %3775 = vrot.lane.b32.xlu0 %v3770, 64
    %v3776 = vpop.permute.xlu0 %3775
    %v3779 = vadd.f32 %v3624, %v3774
    %v3780 = vadd.f32 %v3629, %v3776
    %v3781 = vtanh.pop %v3779
    %v3782 = vtanh.pop %v3780
    %v3783 = vsub.f32 1.0, %v3758
    %v3784 = vsub.f32 1.0, %v3760
    %3787 = vrot.lane.b32.xlu0 %v3781, 96
    %v3788 = vpop.permute.xlu0 %3787
    %3789 = vrot.lane.b32.xlu0 %v3782, 96
    %v3790 = vpop.permute.xlu0 %3789
    %v3793 = vmul.f32 %v3783, %v3788
    %v3794 = vmul.f32 %v3784, %v3790
    %3795 = vrot.lane.b32.xlu0 %v3659, 32
    %v3796 = vpop.permute.xlu0 %3795
    %3797 = vrot.lane.b32.xlu0 %v3667, 32
    %v3798 = vpop.permute.xlu0 %3797
    %v3801 = vmul.f32 %v3758, %v3796
    %v3802 = vmul.f32 %v3760, %v3798
    %v3803 = vadd.f32 %v3793, %v3801
    %v3804 = vadd.f32 %v3794, %v3802
    %v3807 = vcombine.high %v3803, %v3803
    %v3809 = vunpack.c.l.s4 1983009808
    %v3810 = vunpack.c.0.s8 %v3809
    %v3811 = vlaneseq
    %v3812 = vshrl.u32 %v3811, 7
    %v3813 = vsub.s32 %v3810, %v3812
    %v3814 = vrot.slane %v3803, %v3813
    %v3816 = vunpack.c.l.s4 1983009808
    %v3817 = vunpack.c.0.s8 %v3816
    %v3818 = vlaneseq
    %v3819 = vshrl.u32 %v3818, 7
    %v3820 = vsub.s32 %v3817, %v3819
    %v3821 = vrot.slane %v3807, %v3820
    %v3822 = vcombine.high %v3814, %v3814
    %v3823 = vcombine.high %v3821, %v3821
    %v3825 = vunpack.c.l.s4 1983009808
    %v3826 = vunpack.c.0.s8 %v3825
    %v3827 = vlaneseq
    %v3828 = vshrl.u32 %v3827, 7
    %v3829 = vsub.s32 %v3826, %v3828
    %v3830 = vrot.slane %v3804, %v3829
    %v3831 = vcombine.high %v3830, %v3830
    %v3832 = vlaneseq
    %v3833 = vshrl.u32 %v3832, 7
    %v3834 = vsub.s32 0, %v3833
    %v3835 = vrot.slane %v3814, %v3834
    %v3836 = vlaneseq
    %v3837 = vshrl.u32 %v3836, 7
    %v3838 = vsub.s32 0, %v3837
    %v3839 = vrot.slane %v3823, %v3838
    %vm3840 = vcmask 1041409
    %v3841 = vsel %vm3840, %v3839, %v3835
    %3842 = vrot.lane.b32.xlu0 %v3841, 96
    %v3843 = vpop.permute.xlu0 %3842
    %v3845 = vlaneseq
    %v3846 = vshrl.u32 %v3845, 7
    %v3847 = vsub.s32 1, %v3846
    %v3848 = vrot.slane %v3814, %v3847
    %v3849 = vlaneseq
    %v3850 = vshrl.u32 %v3849, 7
    %v3851 = vsub.s32 1, %v3850
    %v3852 = vrot.slane %v3823, %v3851
    %v3853 = vsel %vm3840, %v3852, %v3848
    %v3855 = vlaneseq
    %v3856 = vshrl.u32 %v3855, 7
    %v3857 = vsub.s32 0, %v3856
    %v3858 = vrot.slane %v3822, %v3857
    %v3859 = vlaneseq
    %v3860 = vshrl.u32 %v3859, 7
    %v3861 = vsub.s32 0, %v3860
    %v3862 = vrot.slane %v3830, %v3861
    %v3863 = vsel %vm3840, %v3862, %v3858
    %3864 = vrot.lane.b32.xlu0 %v3863, 32
    %v3865 = vpop.permute.xlu0 %3864
    %v3867 = vlaneseq
    %v3868 = vshrl.u32 %v3867, 7
    %v3869 = vsub.s32 1, %v3868
    %v3870 = vrot.slane %v3822, %v3869
    %v3871 = vlaneseq
    %v3872 = vshrl.u32 %v3871, 7
    %v3873 = vsub.s32 1, %v3872
    %v3874 = vrot.slane %v3830, %v3873
    %v3875 = vsel %vm3840, %v3874, %v3870
    %3876 = vrot.lane.b32.xlu0 %v3875, 64
    %v3877 = vpop.permute.xlu0 %3876
    %v3879 = vlaneseq
    %v3880 = vshrl.u32 %v3879, 7
    %v3881 = vsub.s32 0, %v3880
    %v3882 = vrot.slane %v3821, %v3881
    %v3883 = vlaneseq
    %v3884 = vshrl.u32 %v3883, 7
    %v3885 = vsub.s32 0, %v3884
    %v3886 = vrot.slane %v3831, %v3885
    %v3887 = vsel %vm3840, %v3886, %v3882
    %3888 = vrot.lane.b32.xlu0 %v3887, 96
    %v3889 = vpop.permute.xlu0 %3888
    %v3891 = vlaneseq
    %v3892 = vshrl.u32 %v3891, 7
    %v3893 = vsub.s32 1, %v3892
    %v3894 = vrot.slane %v3821, %v3893
    %v3895 = vlaneseq
    %v3896 = vshrl.u32 %v3895, 7
    %v3897 = vsub.s32 1, %v3896
    %v3898 = vrot.slane %v3831, %v3897
    %v3899 = vsel %vm3840, %v3898, %v3894
    %v3901 = vsel %vm303, %v3843, %v3853
    %vm3902 = vcmask 523264
    %v3903 = vsel %vm3902, %v3901, %v3865
    %vm3904 = vcmask 785408
    %v3905 = vsel %vm3904, %v3903, %v3877
    %v3906 = vsel %vm303, %v3889, %v3899
    %v3909 = vcombine.low %v3905, %v3906
    %v3911 = vunpack.c.l.s4 1983009808
    %v3912 = vunpack.c.0.s8 %v3911
    %v3913 = vlaneseq
    %v3914 = vshrl.u32 %v3913, 7
    %v3915 = vsub.s32 %v3912, %v3914
    %v3916 = vrot.slane %v3909, %v3915
    %vm3918 = vcmask 519170
    %vm3919 = vmor %vm3918, %vm165
    %3920 = vst.msk [vmem:[#allocation4] sm:$0xf] %vm3919, %v3916
    %v3921 = vld [vmem:[%s25] sm:$0xff]
    %v3922 = vld [vmem:[%s25 + $0x8] sm:$0xff]
    %v3923 = vld [vmem:[%s25 + $0x10] sm:$0xff]
    %v3924 = vld [vmem:[%s25 + $0x18] sm:$0xff]
    %v3925 = vld [vmem:[%s26] sm:$0x1]
    %v3927 = vlaneseq
    %v3928 = vshrl.u32 %v3927, 7
    %v3929 = vsub.s32 0, %v3928
    %v3930 = vrot.slane %v3925, %v3929
    %3932 = vrot.lane.b32.xlu0 %v3803, 96
    %v3933 = vpop.permute.xlu0 %3932
    %3934 = vrot.lane.b32.xlu0 %v3804, 96
    %v3935 = vpop.permute.xlu0 %3934
    %v3936 = vsel %vm303, %v3933, 0
    %v3938 = vsel %vm303, %v3935, 0
    %3940 = vmatprep.subr.mxu0 0.0
    %3941 = vmatpush1.msra.mxu0 0.0
    %3942 = vmatprep.subr.mxu0 0.0
    %3943 = vmatpush1.msra.mxu0 0.0
    %3944 = vmatprep.subr.mxu0 0.0
    %3945 = vmatpush1.msra.mxu0 0.0
    %3946 = vmatprep.subr.mxu0 0.0
    %3947 = vmatpush1.msra.mxu0 0.0
    %3948 = vmatprep.subr.mxu0 0.0
    %3949 = vmatpush1.msra.mxu0 0.0
    %3950 = vmatprep.subr.mxu0 0.0
    %3951 = vmatpush1.msra.mxu0 0.0
    %3952 = vmatprep.subr.mxu0 0.0
    %3953 = vmatpush1.msra.mxu0 0.0
    %3954 = vmatprep.subr.mxu0 0.0
    %3955 = vmatpush1.msra.mxu0 0.0
    %3956 = vmatprep.subr.mxu0 0.0
    %3957 = vmatpush1.msra.mxu0 0.0
    %3958 = vmatprep.subr.mxu0 0.0
    %3959 = vmatpush1.msra.mxu0 0.0
    %3960 = vmatprep.subr.mxu0 0.0
    %3961 = vmatpush1.msra.mxu0 0.0
    %3962 = vmatprep.subr.mxu0 0.0
    %3963 = vmatpush1.msra.mxu0 0.0
    %3964 = vmatprep.subr.mxu0 0.0
    %3965 = vmatpush1.msra.mxu0 %v3924
    %3966 = vmatprep.subr.mxu0 0.0
    %3967 = vmatpush1.msra.mxu0 %v3923
    %3968 = vmatprep.subr.mxu0 0.0
    %3969 = vmatpush1.msra.mxu0 %v3922
    %3970 = vmatprep.subr.mxu0 0.0
    %3971 = vmatpush1.msra.mxu0 %v3921
    %3972 = vmatprep.subr.mxu0 0.0
    %3973 = vmatpush2.msra.mxu0 0.0
    %3974 = vmatprep.subr.mxu0 0.0
    %3975 = vmatpush2.msra.mxu0 0.0
    %3976 = vmatprep.subr.mxu0 0.0
    %3977 = vmatpush2.msra.mxu0 0.0
    %3978 = vmatprep.subr.mxu0 0.0
    %3979 = vmatpush2.msra.mxu0 0.0
    %3980 = vmatprep.subr.mxu0 0.0
    %3981 = vmatpush2.msra.mxu0 0.0
    %3982 = vmatprep.subr.mxu0 0.0
    %3983 = vmatpush2.msra.mxu0 0.0
    %3984 = vmatprep.subr.mxu0 0.0
    %3985 = vmatpush2.msra.mxu0 0.0
    %3986 = vmatprep.subr.mxu0 0.0
    %3987 = vmatpush2.msra.mxu0 0.0
    %3988 = vmatprep.subr.mxu0 0.0
    %3989 = vmatpush2.msra.mxu0 0.0
    %3990 = vmatprep.subr.mxu0 0.0
    %3991 = vmatpush2.msra.mxu0 0.0
    %3992 = vmatprep.subr.mxu0 0.0
    %3993 = vmatpush2.msra.mxu0 0.0
    %3994 = vmatprep.subr.mxu0 0.0
    %3995 = vmatpush2.msra.mxu0 0.0
    %3996 = vmatprep.subr.mxu0 0.0
    %3997 = vmatpush2.msra.mxu0 0.0
    %3998 = vmatprep.subr.mxu0 0.0
    %3999 = vmatpush2.msra.mxu0 0.0
    %4000 = vmatprep.subr.mxu0 0.0
    %4001 = vmatpush2.msra.mxu0 0.0
    %4002 = vmatprep.subr.mxu0 0.0
    %4003 = vmatpush2.msra.mxu0 0.0
    %4004 = vmatprep.mubr.f32.mxu0 0.0
    %4005 = vmatmul.mubr.f32.gmra.mxu0 %v3936
    %v4006 = vpop.f32.mrf.mxu0
    %v4007 = vadd.f32 %v3930, %v4006
    %v4008 = vpop.f32.mrf.mxu0
    %4009 = vmatprep.mubr.f32.mxu0 0.0
    %4010 = vmatmul.mubr.f32.gmra.mxu0 %v3938
    %v4011 = vpop.f32.mrf.mxu0
    %v4012 = vadd.f32 %v3930, %v4011
    %v4013 = vpop.f32.mrf.mxu0
    %4014 = vdwg.mxu0
    %v4017 = vcombine.high %v4007, %v4007
    %v4019 = vunpack.c.l.s4 1983009808
    %v4020 = vunpack.c.0.s8 %v4019
    %v4021 = vlaneseq
    %v4022 = vshrl.u32 %v4021, 7
    %v4023 = vsub.s32 %v4020, %v4022
    %v4024 = vrot.slane %v4007, %v4023
    %v4026 = vunpack.c.l.s4 1983009808
    %v4027 = vunpack.c.0.s8 %v4026
    %v4028 = vlaneseq
    %v4029 = vshrl.u32 %v4028, 7
    %v4030 = vsub.s32 %v4027, %v4029
    %v4031 = vrot.slane %v4017, %v4030
    %v4032 = vcombine.high %v4024, %v4024
    %v4033 = vcombine.high %v4031, %v4031
    %v4035 = vunpack.c.l.s4 1983009808
    %v4036 = vunpack.c.0.s8 %v4035
    %v4037 = vlaneseq
    %v4038 = vshrl.u32 %v4037, 7
    %v4039 = vsub.s32 %v4036, %v4038
    %v4040 = vrot.slane %v4012, %v4039
    %v4041 = vcombine.high %v4040, %v4040
    %4044 = vst [vmem:[#allocation2] sm:$0x3] 0.0
    %v4045 = vlaneseq
    %v4046 = vshrl.u32 %v4045, 7
    %v4047 = vsub.s32 0, %v4046
    %v4048 = vrot.slane %v4024, %v4047
    %v4049 = vlaneseq
    %v4050 = vshrl.u32 %v4049, 7
    %v4051 = vsub.s32 0, %v4050
    %v4052 = vrot.slane %v4033, %v4051
    %v4053 = vsel %vm3840, %v4052, %v4048
    %vm4055 = vcmask 41984
    %4056 = vst.msk [vmem:[#allocation2] sm:$0x3] %vm4055, %v4053
    %v4057 = vcombine.low %v4024, %v4032
    %v4059 = vunpack.c.l.s4 1983009808
    %v4060 = vunpack.c.0.s8 %v4059
    %v4061 = vlaneseq
    %v4062 = vshrl.u32 %v4061, 7
    %v4063 = vsub.s32 %v4060, %v4062
    %v4064 = vrot.slane %v4057, %v4063
    %v4065 = vcombine.low %v4033, %v4040
    %v4067 = vunpack.c.l.s4 1983009808
    %v4068 = vunpack.c.0.s8 %v4067
    %v4069 = vlaneseq
    %v4070 = vshrl.u32 %v4069, 7
    %v4071 = vsub.s32 %v4068, %v4070
    %v4072 = vrot.slane %v4065, %v4071
    %vm4075 = vcmask 44033
    %v4076 = vsel %vm4075, %v4064, 0.0
    %4077 = vadd.xlane.f32.xlu0 %v4076
    %v4078 = vpop.xlane.xlu0 %4077
    %v4079 = vsel %vm4075, %v4072, 0.0
    %4080 = vadd.xlane.f32.xlu0 %v4079
    %v4081 = vpop.xlane.xlu0 %4080
    %v4082 = vrcp.pop 6.0
    %v4083 = vmul.f32 %v4078, %v4082
    %v4084 = vmul.f32 %v4081, %v4082
    %v4087 = vlaneseq
    %v4088 = vand.u32 %v4087, 127
    %v4089 = vadd.s32 %v4088, 4294967291
    %v4090 = vlaneseq
    %v4091 = vshrl.u32 %v4090, 7
    %v4092 = vsub.s32 %v4089, %v4091
    %v4093 = vrot.slane %v4083, %v4092
    %v4094 = vlaneseq
    %v4095 = vshrl.u32 %v4094, 7
    %v4096 = vsub.s32 %v4089, %v4095
    %v4097 = vrot.slane %v4084, %v4096
    %vm4098 = vcmask 1042434
    %v4099 = vsel %vm4098, %v4097, %v4093
    %vm4101 = vcmask 67633
    %4102 = vst.msk [vmem:[#allocation2 - $0x1] sm:$0x6] %vm4101, %v4099
    %v4103 = vsel %vm4055, %v4031, 0.0
    %4104 = vadd.xlane.f32.xlu0 %v4103
    %v4105 = vpop.xlane.xlu0 %4104
    %v4106 = vsel %vm4055, %v4041, 0.0
    %4107 = vadd.xlane.f32.xlu0 %v4106
    %v4108 = vpop.xlane.xlu0 %4107
    %v4109 = vmul.f32 %v4105, %v4082
    %v4110 = vmul.f32 %v4108, %v4082
    %v4113 = vadd.s32 %v4088, 4294967287
    %v4114 = vlaneseq
    %v4115 = vshrl.u32 %v4114, 7
    %v4116 = vsub.s32 %v4113, %v4115
    %v4117 = vrot.slane %v4109, %v4116
    %v4118 = vlaneseq
    %v4119 = vshrl.u32 %v4118, 7
    %v4120 = vsub.s32 %v4113, %v4119
    %v4121 = vrot.slane %v4110, %v4120
    %v4122 = vsel %vm3840, %v4121, %v4117
    %vm4124 = vcmask 83016
    %4125 = vst.msk [vmem:[#allocation2] sm:$0x3] %vm4124, %v4122
    // Predicated region
    $region110: #{tpu_custom_call.1} parent=1 // pred_check
      _
    $region111: #{tpu_custom_call.1} parent=1 // pred_check_branch
      %4127 = sbr.rel (0) target = $region113
    $region112: #{tpu_custom_call.1} parent=1 // pred_region
      %s4129 = ssub.s32 32, 32
      %4130 = vsyncadd [#allocation3], %s4129
      %s4132 = sshll.u32 [#allocation2], 4
      %s4133 = int_to_ptr.vmem [resolvable:$true] %s4132
      %4135 = dma.vmem_to_hbm [thread:$0]  %s4133, 32, %s27, [#allocation3]
    $region113: #{tpu_custom_call.1} parent=1 // pred_fallthru
      _
    // Predicated region
    $region114: #{tpu_custom_call.1} parent=1 // pred_check
      _
    $region115: #{tpu_custom_call.1} parent=1 // pred_check_branch
      %4137 = sbr.rel (0) target = $region117
    $region116: #{tpu_custom_call.1} parent=1 // pred_region
      %s4139 = ssub.s32 64, 64
      %4140 = vsyncadd [#allocation5], %s4139
      %s4142 = sshll.u32 [#allocation4], 4
      %s4143 = int_to_ptr.vmem [resolvable:$true] %s4142
      %4145 = dma.vmem_to_hbm [thread:$0]  %s4143, 64, %s28, [#allocation5]
    $region117: #{tpu_custom_call.1} parent=1 // pred_fallthru
      _
    // Predicated region
    $region118: #{tpu_custom_call.1} parent=1 // pred_check
      _
    $region119: #{tpu_custom_call.1} parent=1 // pred_check_branch
      %4147 = sbr.rel (0) target = $region121
    $region120: #{tpu_custom_call.1} parent=1 // pred_region
      %4148 = dma.done [#allocation3], 32
    $region121: #{tpu_custom_call.1} parent=1 // pred_fallthru
      _
    // Predicated region
    $region122: #{tpu_custom_call.1} parent=1 // pred_check
      _
    $region123: #{tpu_custom_call.1} parent=1 // pred_check_branch
      %4150 = sbr.rel (0) target = $region125
    $region124: #{tpu_custom_call.1} parent=1 // pred_region
      %4151 = dma.done [#allocation5], 64
    $region125: #{tpu_custom_call.1} parent=1 // pred_fallthru
      _
    %4152 = vsyncpa [#allocation3], 1
    %4153 = vsyncpa [#allocation5], 1

</llo_original>
